<compile_context>
chip_gen: v6e
topology: v6e:2x2x1
jax: 0.10.0
libtpu: 0.0.40
codegen_flags: <defaults>
</compile_context>

<pallas_src>
import functools

import numpy as np
import jax
import jax.numpy as jnp
from jax.experimental import pallas as pl
from jax.experimental.pallas import tpu as pltpu

LEAKY_SLOPE = 0.01   # nn.LeakyReLU default
BN_EPS = 1e-3        # BatchNorm3d(eps=0.001)
LANE = 128           # lane-dense padding target (last dim)


def _round_up(x, m):
    return ((x + m - 1) // m) * m


# ----------------------------------------------------------------------------- kernels
def _conv_kernel(x_ref, w_ref, b_ref, o_ref, *, k, s, cin, Do, Ho, Wo, Hq, Wq):
    """Fused im2col + matmul + bias + LeakyReLU for one batch element.

    x_ref: (1, Dq, s*Hq, s*Wq, s*cin) space-to-depth packed channels-last input, so the
           patch of kernel offset (kd,kh,kw) is a contiguous window of the block.
    w_ref: (k^3 * cin, N_pad) BN(eval)-folded conv weight (padded rows/cols are zero).
    b_ref: (1, N_pad) f32 folded bias.
    o_ref: (1, Do, Ho, Wo, N_pad) bf16 activation (padded out-channel lanes end up 0).
    """
    offsets = [(kd, kh, kw) for kd in range(k) for kh in range(k) for kw in range(k)]
    n_pad = b_ref.shape[1]
    bias = b_ref[...]                                       # (1, N_pad) f32

    if cin == 1:
        # Rank-1 contraction: keep it on the VPU as k^3 broadcast-FMAs over the whole
        # (Do, Ho, Wo, N_pad) f32 accumulator (MXU would be idle columns anyway).
        acc = jnp.zeros((Do, Ho, Wo, n_pad), jnp.float32)
        for idx, (kd, kh, kw) in enumerate(offsets):
            xs = x_ref[0,
                       pl.ds(kd // s, Do),
                       pl.ds((kd % s) * Hq + kh // s, Ho),
                       pl.ds((kh % s) * Wq + kw // s, Wo),
                       pl.ds((kw % s) * cin, cin)]          # (Do, Ho, Wo, 1)
            w_row = w_ref[pl.ds(idx, 1), :]                 # (1, N_pad)
            acc = acc + xs.astype(jnp.float32) * w_row
        z = acc + bias
        z = jnp.maximum(z, LEAKY_SLOPE * z)                 # LeakyReLU
        o_ref[0] = z.astype(o_ref.dtype)
    else:
        # General path: per output row, accumulate the k^3 offset matmuls against the
        # VMEM-resident weight ((Wo, cin) x (cin, N_pad) MXU passes), then one store.
        # TODO(synk): for large Do*Ho outputs switch these python loops to lax.fori_loop
        #             (and tile the output spatial dims into the grid).
        for od in range(Do):
            for oh in range(Ho):
                acc = jnp.zeros((Wo, n_pad), jnp.float32)
                for idx, (kd, kh, kw) in enumerate(offsets):
                    row = x_ref[0,
                                od + kd // s,
                                (kd % s) * Hq + oh + kh // s,
                                pl.ds((kh % s) * Wq + kw // s, Wo),
                                pl.ds((kw % s) * cin, cin)]          # (Wo, cin)
                    w_off = w_ref[pl.ds(idx * cin, cin), :]          # (cin, N_pad)
                    acc = acc + jnp.dot(row.astype(w_off.dtype), w_off,
                                        preferred_element_type=jnp.float32)
                z = acc + bias
                z = jnp.maximum(z, LEAKY_SLOPE * z)
                o_ref[0, od, oh] = z.astype(o_ref.dtype)


def _ordinal_head_kernel(x_ref, wh_ref, bh_ref, wo_ref, bo_ref, tT_ref, tsq_ref, o_ref):
    # x_ref: (tile_b, F_pad) bf16 padded-slab features; wh: (F_pad, H_pad) bf16 packed
    # hidden weights (zero rows for padded channels); wo: (H_pad, U_pad) bf16
    # block-diagonal output weights (bias -30 on padded units so sigmoid ~ 0);
    # tT: (U_pad, C_pad) zero-padded target_class.T; tsq: (1, C_pad) |t_c|^2 (pack time).
    h = jnp.dot(x_ref[...], wh_ref[...], preferred_element_type=jnp.float32) + bh_ref[...]
    h = jnp.maximum(h, LEAKY_SLOPE * h)                     # LeakyReLU; Dropout = id (eval)
    logits = jnp.dot(h.astype(jnp.bfloat16), wo_ref[...],
                     preferred_element_type=jnp.float32) + bo_ref[...]
    o = pl.reciprocal(1.0 + jnp.exp(-logits), approx=True)  # sigmoid on the EUP slot
    # -cdist(o, target): d[b,c] = sqrt(|o_b|^2 + |t_c|^2 - 2 o_b . t_c)
    cross = jnp.dot(o, tT_ref[...], preferred_element_type=jnp.float32)
    o_sq = jnp.sum(o * o, axis=-1, keepdims=True)           # (tile_b, 1)
    d2 = jnp.maximum(o_sq + tsq_ref[...] - 2.0 * cross, 0.0)
    o_ref[...] = -jnp.sqrt(d2)


# ----------------------------------------------------------------------------- wrappers
def conv_layer(x, wk, bk, k, s):
    """x: (B, D, H, W, C) channels-last.  Returns (B, Do, Ho, Wo, N_pad) bf16."""
    B, D, H, W, C = x.shape
    Do, Ho, Wo = (D - k) // s + 1, (H - k) // s + 1, (W - k) // s + 1
    Dp, Hp, Wp = _round_up(D, s), _round_up(H, s), _round_up(W, s)
    # space-to-depth packing (one pad + one pure reshape); makes every in-kernel
    # kernel-offset patch a contiguous window -> no strided loads, no HBM patch matrix.
    xr = jnp.pad(x, ((0, 0), (0, Dp - D), (0, Hp - H), (0, Wp - W), (0, 0)))
    xr = xr.reshape(B, Dp // s, Hp, Wp, s * C)
    n_pad = wk.shape[1]
    x_block = (1, Dp // s, Hp, Wp, s * C)
    o_block = (1, Do, Ho, Wo, n_pad)
    kern = functools.partial(_conv_kernel, k=k, s=s, cin=C, Do=Do, Ho=Ho, Wo=Wo,
                             Hq=Hp // s, Wq=Wp // s)
    vmem = (2 * (int(np.prod(x_block)) * xr.dtype.itemsize + int(np.prod(o_block)) * 2)
            + wk.size * wk.dtype.itemsize + bk.size * 4 + (2 << 20))
    return pl.pallas_call(
        kern,
        out_shape=jax.ShapeDtypeStruct((B, Do, Ho, Wo, n_pad), jnp.bfloat16),
        grid_spec=pltpu.PrefetchScalarGridSpec(
            num_scalar_prefetch=0,
            grid=(B,),
            in_specs=[pl.BlockSpec(x_block, lambda b: (b, 0, 0, 0, 0)),
                      pl.BlockSpec(wk.shape, lambda b: (0, 0)),
                      pl.BlockSpec(bk.shape, lambda b: (0, 0))],
            out_specs=pl.BlockSpec(o_block, lambda b: (b, 0, 0, 0, 0))),
        compiler_params=pltpu.CompilerParams(
            dimension_semantics=("parallel",),
            vmem_limit_bytes=int(min(max(vmem, 4 << 20), 64 << 20))),
    )(xr, wk, bk)


def ordinal_head(feat, wh, bh, wo, bo, tT, tsq, tile_b):
    bp, f_pad = feat.shape
    c_pad = tT.shape[1]
    # TODO(synk): for very large F_pad add an 'arbitrary' accumulation axis over F so the
    #             resident wh tile stays within the v7x 64 MiB VMEM budget.
    vmem = (2 * (tile_b * f_pad * 2 + tile_b * c_pad * 4)
            + wh.size * 2 + wo.size * 2
            + (tT.size + tsq.size + bh.size + bo.size) * 4 + (2 << 20))
    return pl.pallas_call(
        _ordinal_head_kernel,
        out_shape=jax.ShapeDtypeStruct((bp, c_pad), jnp.float32),
        grid_spec=pltpu.PrefetchScalarGridSpec(
            num_scalar_prefetch=0,
            grid=(bp // tile_b,),
            in_specs=[pl.BlockSpec((tile_b, f_pad), lambda i: (i, 0)),
                      pl.BlockSpec(wh.shape, lambda i: (0, 0)),
                      pl.BlockSpec(bh.shape, lambda i: (0, 0)),
                      pl.BlockSpec(wo.shape, lambda i: (0, 0)),
                      pl.BlockSpec(bo.shape, lambda i: (0, 0)),
                      pl.BlockSpec(tT.shape, lambda i: (0, 0)),
                      pl.BlockSpec(tsq.shape, lambda i: (0, 0))],
            out_specs=pl.BlockSpec((tile_b, c_pad), lambda i: (i, 0))),
        compiler_params=pltpu.CompilerParams(
            dimension_semantics=("parallel",),
            vmem_limit_bytes=int(min(max(vmem, 4 << 20), 64 << 20))),
    )(feat, wh, bh, wo, bo, tT, tsq)


# ------------------------------------------------------------------------------- params
def init_params(key, image_shape, n_channels, k, s, hidden_size, n_classes):
    keys = iter(jax.random.split(key, 128))
    params = {"convs": [], "bns": []}
    shape = np.array(image_shape)
    for cin, cout in zip(n_channels[:-1], n_channels[1:]):
        w = 0.1 * jax.random.normal(next(keys), (cout, cin, k, k, k), jnp.float32)
        b = 0.1 * jax.random.normal(next(keys), (cout,), jnp.float32)
        params["convs"].append((w, b))
        gamma = 1.0 + 0.1 * jax.random.normal(next(keys), (cout,), jnp.float32)
        beta = 0.1 * jax.random.normal(next(keys), (cout,), jnp.float32)
        mean = 0.1 * jax.random.normal(next(keys), (cout,), jnp.float32)
        var = 1.0 + 0.1 * jax.random.uniform(next(keys), (cout,), jnp.float32)
        params["bns"].append((gamma, beta, mean, var))
        shape = np.floor((shape - (k - 1) - 1) / s + 1).astype(int)
    conv_output_size = n_channels[-1] * int(np.prod(shape))

    n_units = n_classes - 1
    hpu = int(np.round(hidden_size / n_units))
    params["dense_hidden"] = [
        (0.1 * jax.random.normal(next(keys), (hpu, conv_output_size), jnp.float32),
         0.1 * jax.random.normal(next(keys), (hpu,), jnp.float32))
        for _ in range(n_units)]
    params["dense_output"] = [
        (0.1 * jax.random.normal(next(keys), (1, hpu), jnp.float32),
         0.1 * jax.random.normal(next(keys), (1,), jnp.float32))
        for _ in range(n_units)]

    tc = np.ones((n_classes, n_units), np.float32)
    tc[np.triu_indices(n_classes, 0, n_units)] = 0.0
    params["target_class"] = jnp.asarray(tc)
    params["conv_output_size"] = conv_output_size
    params["hpu"] = hpu
    return params


def pack_params(params, k, n_channels):
    """One-time packing: fold eval BatchNorm into the conv weights, lay out conv weights
    as (k^3 * cin_kernel, N_pad) where cin_kernel matches the lane width of the layer
    input (so later layers consume the previous layer's padded 128-lane slab directly,
    padded rows are zero), bf16 MXU weights / f32 biases, dense-hidden weights permuted
    to the channels-last padded-slab feature order, block-diagonal dense-output weights,
    and |target_class|^2 precomputed."""
    packed = {"conv": []}
    cin_kernel = n_channels[0]
    for (w, b), (g, be, m, v) in zip(params["convs"], params["bns"]):
        w, b = np.asarray(w), np.asarray(b)
        g, be, m, v = (np.asarray(a) for a in (g, be, m, v))
        cout, cin = w.shape[0], w.shape[1]
        scale = g / np.sqrt(v + BN_EPS)                              # BN(eval) fold
        n_pad = _round_up(cout, LANE)
        wt = np.transpose(w, (2, 3, 4, 1, 0)) * scale                # (kd,kh,kw,cin,cout)
        wk = np.zeros((k ** 3, cin_kernel, n_pad), np.float32)
        wk[:, :cin, :cout] = wt.reshape(k ** 3, cin, cout)
        wk = wk.reshape(k ** 3 * cin_kernel, n_pad)
        bk = np.zeros((1, n_pad), np.float32)
        bk[0, :cout] = (b - m) * scale + be
        w_dtype = jnp.float32 if cin_kernel == 1 else jnp.bfloat16   # VPU path stays f32
        packed["conv"].append((jnp.asarray(wk, dtype=w_dtype), jnp.asarray(bk)))
        cin_kernel = n_pad                       # next layer consumes the padded slab

    n_units = len(params["dense_hidden"])
    hpu = params["hpu"]
    c_last = n_channels[-1]
    c_last_pad = _round_up(c_last, LANE)
    F = params["conv_output_size"]
    P = F // c_last                                                  # spatial positions
    UH = n_units * hpu
    H_pad = _round_up(UH, LANE)
    # feat layout is (spatial p, padded channel c); PyTorch flattens NCDHW (channel-major)
    # so the hidden weight columns are permuted accordingly, zero rows for padded lanes.
    wh = np.zeros((P, c_last_pad, H_pad), np.float32)
    bh = np.zeros((1, H_pad), np.float32)
    for j, (w, b) in enumerate(params["dense_hidden"]):
        w3 = np.asarray(w).reshape(hpu, c_last, P)
        wh[:, :c_last, j * hpu:(j + 1) * hpu] = np.transpose(w3, (2, 1, 0))
        bh[0, j * hpu:(j + 1) * hpu] = np.asarray(b)
    packed["wh"] = jnp.asarray(wh.reshape(P * c_last_pad, H_pad), dtype=jnp.bfloat16)
    packed["bh"] = jnp.asarray(bh)

    n_classes = params["target_class"].shape[0]
    U_pad, C_pad = _round_up(n_units, LANE), _round_up(n_classes, LANE)
    wo = np.zeros((H_pad, U_pad), np.float32)                        # block-diagonal
    bo = np.full((1, U_pad), -30.0, np.float32)                      # sigmoid(pad) ~ 0
    for j, (w, b) in enumerate(params["dense_output"]):
        wo[j * hpu:(j + 1) * hpu, j] = np.asarray(w)[0]
        bo[0, j] = float(np.asarray(b)[0])
    tT = np.zeros((U_pad, C_pad), np.float32)
    tT[:n_units, :n_classes] = np.asarray(params["target_class"]).T
    packed["wo"] = jnp.asarray(wo, dtype=jnp.bfloat16)
    packed["bo"] = jnp.asarray(bo)
    packed["tT"] = jnp.asarray(tT)
    packed["tsq"] = jnp.asarray(np.sum(tT * tT, axis=0, keepdims=True))  # |t_c|^2
    return packed


# ------------------------------------------------------------------------------ forward
def wrapper_ordinal_net_forward(packed, x, *, k, s, n_classes):
    x = jnp.transpose(x, (0, 2, 3, 4, 1))            # NCDHW -> NDHWC once, stay channels-last
    for wk, bk in packed["conv"]:
        x = conv_layer(x, wk, bk, k, s)              # (B, Do, Ho, Wo, 128) bf16, pad lanes = 0
    B = x.shape[0]
    feat = x.reshape(B, -1)                          # padded slab consumed directly by the head
    tile_b = min(_round_up(B, 8), 256)
    bp = _round_up(B, tile_b)
    feat = jnp.pad(feat, ((0, bp - B), (0, 0)))
    out = ordinal_head(feat, packed["wh"], packed["bh"], packed["wo"], packed["bo"],
                       packed["tT"], packed["tsq"], tile_b)
    return out[:B, :n_classes]                       # drop the padded batch rows / class lanes


# ------------------------------------------------------------------- pure-JAX reference
def reference_forward(params, x, k, s):
    B = x.shape[0]
    for (w, b), (g, be, m, v) in zip(params["convs"], params["bns"]):
        y = jax.lax.conv_general_dilated(
            x, w, (s, s, s), "VALID",
            dimension_numbers=("NCDHW", "OIDHW", "NCDHW"))
        y = y + b.reshape(1, -1, 1, 1, 1)
        y = ((y - m.reshape(1, -1, 1, 1, 1))
             * (g.reshape(1, -1, 1, 1, 1) / jnp.sqrt(v.reshape(1, -1, 1, 1, 1) + BN_EPS))
             + be.reshape(1, -1, 1, 1, 1))
        x = jnp.where(y > 0, y, LEAKY_SLOPE * y)
    feat = x.reshape(B, -1)
    outs = []
    for (wh, bh), (wo, bo) in zip(params["dense_hidden"], params["dense_output"]):
        h = feat @ wh.T + bh
        h = jnp.where(h > 0, h, LEAKY_SLOPE * h)
        outs.append(jax.nn.sigmoid(h @ wo.T + bo)[:, 0])
    o = jnp.stack(outs, axis=1)
    t = params["target_class"]
    d = jnp.sqrt(jnp.sum((o[:, None, :] - t[None, :, :]) ** 2, axis=-1))
    return -d


if __name__ == "__main__":
    key = jax.random.PRNGKey(0)
    kp, kx = jax.random.split(key)

    # small but consistent OrdinalNet configuration
    image_shape = (8, 8, 8)
    n_channels = (1, 4, 8)
    kernel_size, stride = 3, 2
    hidden_size, n_classes, dropout_rate = 32, 5, 0.5

    params = init_params(kp, image_shape, list(n_channels), kernel_size, stride,
                         hidden_size, n_classes)
    packed = pack_params(params, kernel_size, n_channels)   # static packing, out of forward
    x = jax.random.normal(kx, (2, n_channels[0], *image_shape), jnp.float32)

    fwd = jax.jit(functools.partial(
        wrapper_ordinal_net_forward, k=kernel_size, s=stride, n_classes=n_classes))
    out = jax.block_until_ready(fwd(packed, x))

    ref = reference_forward(params, x, kernel_size, stride)
    assert out.shape == (2, n_classes), out.shape
    assert bool(jnp.all(jnp.isfinite(out)))
    assert np.allclose(np.asarray(out), np.asarray(ref), rtol=2e-2, atol=2e-2), (out, ref)

    print("KERNEL_OK")
</pallas_src>

<mosaic_0001>
module attributes {stable_mosaic.version = 11 : i64} {
  func.func @_conv_kernel(%arg0: i32, %arg1: memref<1x4x8x8x2xf32, #tpu.memory_space<vmem>>, %arg2: memref<27x128xf32, #tpu.memory_space<vmem>>, %arg3: memref<1x128xf32, #tpu.memory_space<vmem>>, %arg4: memref<1x3x3x3x128xbf16, #tpu.memory_space<vmem>>) attributes {dimension_semantics = [#tpu.dimension_semantics<parallel>], iteration_bounds = array<i64: 2>, scalar_prefetch = 0 : i64, scratch_operands = 0 : i64, tpu.core_type = #tpu.core_type<tc>, window_params = [{transform_indices = @transform_0, window_bounds = array<i64: 1, 4, 8, 8, 2>}, {pipeline_mode = #tpu.pipeline_mode<synchronous>, transform_indices = @transform_1, window_bounds = array<i64: 27, 128>}, {pipeline_mode = #tpu.pipeline_mode<synchronous>, transform_indices = @transform_2, window_bounds = array<i64: 1, 128>}, {transform_indices = @transform_3, window_bounds = array<i64: 1, 3, 3, 3, 128>}]} {
    %c0 = arith.constant 0 : index
    %c0_0 = arith.constant 0 : index
    %0 = vector.load %arg3[%c0, %c0_0] : memref<1x128xf32, #tpu.memory_space<vmem>>, vector<1x128xf32>
    %cst = arith.constant 0.000000e+00 : f32
    %1 = vector.broadcast %cst : f32 to vector<3x3x3x128xf32>
    %c0_1 = arith.constant 0 : index
    %c0_2 = arith.constant 0 : index
    %c0_3 = arith.constant 0 : index
    %c0_4 = arith.constant 0 : index
    %c0_5 = arith.constant 0 : index
    %2 = vector.load %arg1[%c0_1, %c0_2, %c0_3, %c0_4, %c0_5] : memref<1x4x8x8x2xf32, #tpu.memory_space<vmem>>, vector<1x3x3x3x1xf32>
    %3 = vector.shape_cast %2 : vector<1x3x3x3x1xf32> to vector<3x3x3x1xf32>
    %c0_6 = arith.constant 0 : index
    %c0_7 = arith.constant 0 : index
    %4 = vector.load %arg2[%c0_6, %c0_7] : memref<27x128xf32, #tpu.memory_space<vmem>>, vector<1x128xf32>
    %5 = vector.shape_cast %4 : vector<1x128xf32> to vector<1x1x1x128xf32>
    %6 = vector.broadcast %3 : vector<3x3x3x1xf32> to vector<3x3x3x128xf32>
    %7 = vector.broadcast %5 : vector<1x1x1x128xf32> to vector<3x3x3x128xf32>
    %8 = arith.mulf %6, %7 : vector<3x3x3x128xf32>
    %9 = arith.addf %1, %8 : vector<3x3x3x128xf32>
    %c0_8 = arith.constant 0 : index
    %c0_9 = arith.constant 0 : index
    %c0_10 = arith.constant 0 : index
    %c0_11 = arith.constant 0 : index
    %c1 = arith.constant 1 : index
    %10 = vector.load %arg1[%c0_8, %c0_9, %c0_10, %c0_11, %c1] : memref<1x4x8x8x2xf32, #tpu.memory_space<vmem>>, vector<1x3x3x3x1xf32>
    %11 = vector.shape_cast %10 : vector<1x3x3x3x1xf32> to vector<3x3x3x1xf32>
    %c1_12 = arith.constant 1 : index
    %c0_13 = arith.constant 0 : index
    %12 = vector.load %arg2[%c1_12, %c0_13] : memref<27x128xf32, #tpu.memory_space<vmem>>, vector<1x128xf32>
    %13 = vector.shape_cast %12 : vector<1x128xf32> to vector<1x1x1x128xf32>
    %14 = vector.broadcast %11 : vector<3x3x3x1xf32> to vector<3x3x3x128xf32>
    %15 = vector.broadcast %13 : vector<1x1x1x128xf32> to vector<3x3x3x128xf32>
    %16 = arith.mulf %14, %15 : vector<3x3x3x128xf32>
    %17 = arith.addf %9, %16 : vector<3x3x3x128xf32>
    %c0_14 = arith.constant 0 : index
    %c0_15 = arith.constant 0 : index
    %c0_16 = arith.constant 0 : index
    %c1_17 = arith.constant 1 : index
    %c0_18 = arith.constant 0 : index
    %18 = vector.load %arg1[%c0_14, %c0_15, %c0_16, %c1_17, %c0_18] : memref<1x4x8x8x2xf32, #tpu.memory_space<vmem>>, vector<1x3x3x3x1xf32>
    %19 = vector.shape_cast %18 : vector<1x3x3x3x1xf32> to vector<3x3x3x1xf32>
    %c2 = arith.constant 2 : index
    %c0_19 = arith.constant 0 : index
    %20 = vector.load %arg2[%c2, %c0_19] : memref<27x128xf32, #tpu.memory_space<vmem>>, vector<1x128xf32>
    %21 = vector.shape_cast %20 : vector<1x128xf32> to vector<1x1x1x128xf32>
    %22 = vector.broadcast %19 : vector<3x3x3x1xf32> to vector<3x3x3x128xf32>
    %23 = vector.broadcast %21 : vector<1x1x1x128xf32> to vector<3x3x3x128xf32>
    %24 = arith.mulf %22, %23 : vector<3x3x3x128xf32>
    %25 = arith.addf %17, %24 : vector<3x3x3x128xf32>
    %c0_20 = arith.constant 0 : index
    %c0_21 = arith.constant 0 : index
    %c0_22 = arith.constant 0 : index
    %c4 = arith.constant 4 : index
    %c0_23 = arith.constant 0 : index
    %26 = vector.load %arg1[%c0_20, %c0_21, %c0_22, %c4, %c0_23] : memref<1x4x8x8x2xf32, #tpu.memory_space<vmem>>, vector<1x3x3x3x1xf32>
    %27 = vector.shape_cast %26 : vector<1x3x3x3x1xf32> to vector<3x3x3x1xf32>
    %c3 = arith.constant 3 : index
    %c0_24 = arith.constant 0 : index
    %28 = vector.load %arg2[%c3, %c0_24] : memref<27x128xf32, #tpu.memory_space<vmem>>, vector<1x128xf32>
    %29 = vector.shape_cast %28 : vector<1x128xf32> to vector<1x1x1x128xf32>
    %30 = vector.broadcast %27 : vector<3x3x3x1xf32> to vector<3x3x3x128xf32>
    %31 = vector.broadcast %29 : vector<1x1x1x128xf32> to vector<3x3x3x128xf32>
    %32 = arith.mulf %30, %31 : vector<3x3x3x128xf32>
    %33 = arith.addf %25, %32 : vector<3x3x3x128xf32>
    %c0_25 = arith.constant 0 : index
    %c0_26 = arith.constant 0 : index
    %c0_27 = arith.constant 0 : index
    %c4_28 = arith.constant 4 : index
    %c1_29 = arith.constant 1 : index
    %34 = vector.load %arg1[%c0_25, %c0_26, %c0_27, %c4_28, %c1_29] : memref<1x4x8x8x2xf32, #tpu.memory_space<vmem>>, vector<1x3x3x3x1xf32>
    %35 = vector.shape_cast %34 : vector<1x3x3x3x1xf32> to vector<3x3x3x1xf32>
    %c4_30 = arith.constant 4 : index
    %c0_31 = arith.constant 0 : index
    %36 = vector.load %arg2[%c4_30, %c0_31] : memref<27x128xf32, #tpu.memory_space<vmem>>, vector<1x128xf32>
    %37 = vector.shape_cast %36 : vector<1x128xf32> to vector<1x1x1x128xf32>
    %38 = vector.broadcast %35 : vector<3x3x3x1xf32> to vector<3x3x3x128xf32>
    %39 = vector.broadcast %37 : vector<1x1x1x128xf32> to vector<3x3x3x128xf32>
    %40 = arith.mulf %38, %39 : vector<3x3x3x128xf32>
    %41 = arith.addf %33, %40 : vector<3x3x3x128xf32>
    %c0_32 = arith.constant 0 : index
    %c0_33 = arith.constant 0 : index
    %c0_34 = arith.constant 0 : index
    %c5 = arith.constant 5 : index
    %c0_35 = arith.constant 0 : index
    %42 = vector.load %arg1[%c0_32, %c0_33, %c0_34, %c5, %c0_35] : memref<1x4x8x8x2xf32, #tpu.memory_space<vmem>>, vector<1x3x3x3x1xf32>
    %43 = vector.shape_cast %42 : vector<1x3x3x3x1xf32> to vector<3x3x3x1xf32>
    %c5_36 = arith.constant 5 : index
    %c0_37 = arith.constant 0 : index
    %44 = vector.load %arg2[%c5_36, %c0_37] : memref<27x128xf32, #tpu.memory_space<vmem>>, vector<1x128xf32>
    %45 = vector.shape_cast %44 : vector<1x128xf32> to vector<1x1x1x128xf32>
    %46 = vector.broadcast %43 : vector<3x3x3x1xf32> to vector<3x3x3x128xf32>
    %47 = vector.broadcast %45 : vector<1x1x1x128xf32> to vector<3x3x3x128xf32>
    %48 = arith.mulf %46, %47 : vector<3x3x3x128xf32>
    %49 = arith.addf %41, %48 : vector<3x3x3x128xf32>
    %c0_38 = arith.constant 0 : index
    %c0_39 = arith.constant 0 : index
    %c1_40 = arith.constant 1 : index
    %c0_41 = arith.constant 0 : index
    %c0_42 = arith.constant 0 : index
    %50 = vector.load %arg1[%c0_38, %c0_39, %c1_40, %c0_41, %c0_42] : memref<1x4x8x8x2xf32, #tpu.memory_space<vmem>>, vector<1x3x3x3x1xf32>
    %51 = vector.shape_cast %50 : vector<1x3x3x3x1xf32> to vector<3x3x3x1xf32>
    %c6 = arith.constant 6 : index
    %c0_43 = arith.constant 0 : index
    %52 = vector.load %arg2[%c6, %c0_43] : memref<27x128xf32, #tpu.memory_space<vmem>>, vector<1x128xf32>
    %53 = vector.shape_cast %52 : vector<1x128xf32> to vector<1x1x1x128xf32>
    %54 = vector.broadcast %51 : vector<3x3x3x1xf32> to vector<3x3x3x128xf32>
    %55 = vector.broadcast %53 : vector<1x1x1x128xf32> to vector<3x3x3x128xf32>
    %56 = arith.mulf %54, %55 : vector<3x3x3x128xf32>
    %57 = arith.addf %49, %56 : vector<3x3x3x128xf32>
    %c0_44 = arith.constant 0 : index
    %c0_45 = arith.constant 0 : index
    %c1_46 = arith.constant 1 : index
    %c0_47 = arith.constant 0 : index
    %c1_48 = arith.constant 1 : index
    %58 = vector.load %arg1[%c0_44, %c0_45, %c1_46, %c0_47, %c1_48] : memref<1x4x8x8x2xf32, #tpu.memory_space<vmem>>, vector<1x3x3x3x1xf32>
    %59 = vector.shape_cast %58 : vector<1x3x3x3x1xf32> to vector<3x3x3x1xf32>
    %c7 = arith.constant 7 : index
    %c0_49 = arith.constant 0 : index
    %60 = vector.load %arg2[%c7, %c0_49] : memref<27x128xf32, #tpu.memory_space<vmem>>, vector<1x128xf32>
    %61 = vector.shape_cast %60 : vector<1x128xf32> to vector<1x1x1x128xf32>
    %62 = vector.broadcast %59 : vector<3x3x3x1xf32> to vector<3x3x3x128xf32>
    %63 = vector.broadcast %61 : vector<1x1x1x128xf32> to vector<3x3x3x128xf32>
    %64 = arith.mulf %62, %63 : vector<3x3x3x128xf32>
    %65 = arith.addf %57, %64 : vector<3x3x3x128xf32>
    %c0_50 = arith.constant 0 : index
    %c0_51 = arith.constant 0 : index
    %c1_52 = arith.constant 1 : index
    %c1_53 = arith.constant 1 : index
    %c0_54 = arith.constant 0 : index
    %66 = vector.load %arg1[%c0_50, %c0_51, %c1_52, %c1_53, %c0_54] : memref<1x4x8x8x2xf32, #tpu.memory_space<vmem>>, vector<1x3x3x3x1xf32>
    %67 = vector.shape_cast %66 : vector<1x3x3x3x1xf32> to vector<3x3x3x1xf32>
    %c8 = arith.constant 8 : index
    %c0_55 = arith.constant 0 : index
    %68 = vector.load %arg2[%c8, %c0_55] : memref<27x128xf32, #tpu.memory_space<vmem>>, vector<1x128xf32>
    %69 = vector.shape_cast %68 : vector<1x128xf32> to vector<1x1x1x128xf32>
    %70 = vector.broadcast %67 : vector<3x3x3x1xf32> to vector<3x3x3x128xf32>
    %71 = vector.broadcast %69 : vector<1x1x1x128xf32> to vector<3x3x3x128xf32>
    %72 = arith.mulf %70, %71 : vector<3x3x3x128xf32>
    %73 = arith.addf %65, %72 : vector<3x3x3x128xf32>
    %c0_56 = arith.constant 0 : index
    %c0_57 = arith.constant 0 : index
    %c4_58 = arith.constant 4 : index
    %c0_59 = arith.constant 0 : index
    %c0_60 = arith.constant 0 : index
    %74 = vector.load %arg1[%c0_56, %c0_57, %c4_58, %c0_59, %c0_60] : memref<1x4x8x8x2xf32, #tpu.memory_space<vmem>>, vector<1x3x3x3x1xf32>
    %75 = vector.shape_cast %74 : vector<1x3x3x3x1xf32> to vector<3x3x3x1xf32>
    %c9 = arith.constant 9 : index
    %c0_61 = arith.constant 0 : index
    %76 = vector.load %arg2[%c9, %c0_61] : memref<27x128xf32, #tpu.memory_space<vmem>>, vector<1x128xf32>
    %77 = vector.shape_cast %76 : vector<1x128xf32> to vector<1x1x1x128xf32>
    %78 = vector.broadcast %75 : vector<3x3x3x1xf32> to vector<3x3x3x128xf32>
    %79 = vector.broadcast %77 : vector<1x1x1x128xf32> to vector<3x3x3x128xf32>
    %80 = arith.mulf %78, %79 : vector<3x3x3x128xf32>
    %81 = arith.addf %73, %80 : vector<3x3x3x128xf32>
    %c0_62 = arith.constant 0 : index
    %c0_63 = arith.constant 0 : index
    %c4_64 = arith.constant 4 : index
    %c0_65 = arith.constant 0 : index
    %c1_66 = arith.constant 1 : index
    %82 = vector.load %arg1[%c0_62, %c0_63, %c4_64, %c0_65, %c1_66] : memref<1x4x8x8x2xf32, #tpu.memory_space<vmem>>, vector<1x3x3x3x1xf32>
    %83 = vector.shape_cast %82 : vector<1x3x3x3x1xf32> to vector<3x3x3x1xf32>
    %c10 = arith.constant 10 : index
    %c0_67 = arith.constant 0 : index
    %84 = vector.load %arg2[%c10, %c0_67] : memref<27x128xf32, #tpu.memory_space<vmem>>, vector<1x128xf32>
    %85 = vector.shape_cast %84 : vector<1x128xf32> to vector<1x1x1x128xf32>
    %86 = vector.broadcast %83 : vector<3x3x3x1xf32> to vector<3x3x3x128xf32>
    %87 = vector.broadcast %85 : vector<1x1x1x128xf32> to vector<3x3x3x128xf32>
    %88 = arith.mulf %86, %87 : vector<3x3x3x128xf32>
    %89 = arith.addf %81, %88 : vector<3x3x3x128xf32>
    %c0_68 = arith.constant 0 : index
    %c0_69 = arith.constant 0 : index
    %c4_70 = arith.constant 4 : index
    %c1_71 = arith.constant 1 : index
    %c0_72 = arith.constant 0 : index
    %90 = vector.load %arg1[%c0_68, %c0_69, %c4_70, %c1_71, %c0_72] : memref<1x4x8x8x2xf32, #tpu.memory_space<vmem>>, vector<1x3x3x3x1xf32>
    %91 = vector.shape_cast %90 : vector<1x3x3x3x1xf32> to vector<3x3x3x1xf32>
    %c11 = arith.constant 11 : index
    %c0_73 = arith.constant 0 : index
    %92 = vector.load %arg2[%c11, %c0_73] : memref<27x128xf32, #tpu.memory_space<vmem>>, vector<1x128xf32>
    %93 = vector.shape_cast %92 : vector<1x128xf32> to vector<1x1x1x128xf32>
    %94 = vector.broadcast %91 : vector<3x3x3x1xf32> to vector<3x3x3x128xf32>
    %95 = vector.broadcast %93 : vector<1x1x1x128xf32> to vector<3x3x3x128xf32>
    %96 = arith.mulf %94, %95 : vector<3x3x3x128xf32>
    %97 = arith.addf %89, %96 : vector<3x3x3x128xf32>
    %c0_74 = arith.constant 0 : index
    %c0_75 = arith.constant 0 : index
    %c4_76 = arith.constant 4 : index
    %c4_77 = arith.constant 4 : index
    %c0_78 = arith.constant 0 : index
    %98 = vector.load %arg1[%c0_74, %c0_75, %c4_76, %c4_77, %c0_78] : memref<1x4x8x8x2xf32, #tpu.memory_space<vmem>>, vector<1x3x3x3x1xf32>
    %99 = vector.shape_cast %98 : vector<1x3x3x3x1xf32> to vector<3x3x3x1xf32>
    %c12 = arith.constant 12 : index
    %c0_79 = arith.constant 0 : index
    %100 = vector.load %arg2[%c12, %c0_79] : memref<27x128xf32, #tpu.memory_space<vmem>>, vector<1x128xf32>
    %101 = vector.shape_cast %100 : vector<1x128xf32> to vector<1x1x1x128xf32>
    %102 = vector.broadcast %99 : vector<3x3x3x1xf32> to vector<3x3x3x128xf32>
    %103 = vector.broadcast %101 : vector<1x1x1x128xf32> to vector<3x3x3x128xf32>
    %104 = arith.mulf %102, %103 : vector<3x3x3x128xf32>
    %105 = arith.addf %97, %104 : vector<3x3x3x128xf32>
    %c0_80 = arith.constant 0 : index
    %c0_81 = arith.constant 0 : index
    %c4_82 = arith.constant 4 : index
    %c4_83 = arith.constant 4 : index
    %c1_84 = arith.constant 1 : index
    %106 = vector.load %arg1[%c0_80, %c0_81, %c4_82, %c4_83, %c1_84] : memref<1x4x8x8x2xf32, #tpu.memory_space<vmem>>, vector<1x3x3x3x1xf32>
    %107 = vector.shape_cast %106 : vector<1x3x3x3x1xf32> to vector<3x3x3x1xf32>
    %c13 = arith.constant 13 : index
    %c0_85 = arith.constant 0 : index
    %108 = vector.load %arg2[%c13, %c0_85] : memref<27x128xf32, #tpu.memory_space<vmem>>, vector<1x128xf32>
    %109 = vector.shape_cast %108 : vector<1x128xf32> to vector<1x1x1x128xf32>
    %110 = vector.broadcast %107 : vector<3x3x3x1xf32> to vector<3x3x3x128xf32>
    %111 = vector.broadcast %109 : vector<1x1x1x128xf32> to vector<3x3x3x128xf32>
    %112 = arith.mulf %110, %111 : vector<3x3x3x128xf32>
    %113 = arith.addf %105, %112 : vector<3x3x3x128xf32>
    %c0_86 = arith.constant 0 : index
    %c0_87 = arith.constant 0 : index
    %c4_88 = arith.constant 4 : index
    %c5_89 = arith.constant 5 : index
    %c0_90 = arith.constant 0 : index
    %114 = vector.load %arg1[%c0_86, %c0_87, %c4_88, %c5_89, %c0_90] : memref<1x4x8x8x2xf32, #tpu.memory_space<vmem>>, vector<1x3x3x3x1xf32>
    %115 = vector.shape_cast %114 : vector<1x3x3x3x1xf32> to vector<3x3x3x1xf32>
    %c14 = arith.constant 14 : index
    %c0_91 = arith.constant 0 : index
    %116 = vector.load %arg2[%c14, %c0_91] : memref<27x128xf32, #tpu.memory_space<vmem>>, vector<1x128xf32>
    %117 = vector.shape_cast %116 : vector<1x128xf32> to vector<1x1x1x128xf32>
    %118 = vector.broadcast %115 : vector<3x3x3x1xf32> to vector<3x3x3x128xf32>
    %119 = vector.broadcast %117 : vector<1x1x1x128xf32> to vector<3x3x3x128xf32>
    %120 = arith.mulf %118, %119 : vector<3x3x3x128xf32>
    %121 = arith.addf %113, %120 : vector<3x3x3x128xf32>
    %c0_92 = arith.constant 0 : index
    %c0_93 = arith.constant 0 : index
    %c5_94 = arith.constant 5 : index
    %c0_95 = arith.constant 0 : index
    %c0_96 = arith.constant 0 : index
    %122 = vector.load %arg1[%c0_92, %c0_93, %c5_94, %c0_95, %c0_96] : memref<1x4x8x8x2xf32, #tpu.memory_space<vmem>>, vector<1x3x3x3x1xf32>
    %123 = vector.shape_cast %122 : vector<1x3x3x3x1xf32> to vector<3x3x3x1xf32>
    %c15 = arith.constant 15 : index
    %c0_97 = arith.constant 0 : index
    %124 = vector.load %arg2[%c15, %c0_97] : memref<27x128xf32, #tpu.memory_space<vmem>>, vector<1x128xf32>
    %125 = vector.shape_cast %124 : vector<1x128xf32> to vector<1x1x1x128xf32>
    %126 = vector.broadcast %123 : vector<3x3x3x1xf32> to vector<3x3x3x128xf32>
    %127 = vector.broadcast %125 : vector<1x1x1x128xf32> to vector<3x3x3x128xf32>
    %128 = arith.mulf %126, %127 : vector<3x3x3x128xf32>
    %129 = arith.addf %121, %128 : vector<3x3x3x128xf32>
    %c0_98 = arith.constant 0 : index
    %c0_99 = arith.constant 0 : index
    %c5_100 = arith.constant 5 : index
    %c0_101 = arith.constant 0 : index
    %c1_102 = arith.constant 1 : index
    %130 = vector.load %arg1[%c0_98, %c0_99, %c5_100, %c0_101, %c1_102] : memref<1x4x8x8x2xf32, #tpu.memory_space<vmem>>, vector<1x3x3x3x1xf32>
    %131 = vector.shape_cast %130 : vector<1x3x3x3x1xf32> to vector<3x3x3x1xf32>
    %c16 = arith.constant 16 : index
    %c0_103 = arith.constant 0 : index
    %132 = vector.load %arg2[%c16, %c0_103] : memref<27x128xf32, #tpu.memory_space<vmem>>, vector<1x128xf32>
    %133 = vector.shape_cast %132 : vector<1x128xf32> to vector<1x1x1x128xf32>
    %134 = vector.broadcast %131 : vector<3x3x3x1xf32> to vector<3x3x3x128xf32>
    %135 = vector.broadcast %133 : vector<1x1x1x128xf32> to vector<3x3x3x128xf32>
    %136 = arith.mulf %134, %135 : vector<3x3x3x128xf32>
    %137 = arith.addf %129, %136 : vector<3x3x3x128xf32>
    %c0_104 = arith.constant 0 : index
    %c0_105 = arith.constant 0 : index
    %c5_106 = arith.constant 5 : index
    %c1_107 = arith.constant 1 : index
    %c0_108 = arith.constant 0 : index
    %138 = vector.load %arg1[%c0_104, %c0_105, %c5_106, %c1_107, %c0_108] : memref<1x4x8x8x2xf32, #tpu.memory_space<vmem>>, vector<1x3x3x3x1xf32>
    %139 = vector.shape_cast %138 : vector<1x3x3x3x1xf32> to vector<3x3x3x1xf32>
    %c17 = arith.constant 17 : index
    %c0_109 = arith.constant 0 : index
    %140 = vector.load %arg2[%c17, %c0_109] : memref<27x128xf32, #tpu.memory_space<vmem>>, vector<1x128xf32>
    %141 = vector.shape_cast %140 : vector<1x128xf32> to vector<1x1x1x128xf32>
    %142 = vector.broadcast %139 : vector<3x3x3x1xf32> to vector<3x3x3x128xf32>
    %143 = vector.broadcast %141 : vector<1x1x1x128xf32> to vector<3x3x3x128xf32>
    %144 = arith.mulf %142, %143 : vector<3x3x3x128xf32>
    %145 = arith.addf %137, %144 : vector<3x3x3x128xf32>
    %c0_110 = arith.constant 0 : index
    %c1_111 = arith.constant 1 : index
    %c0_112 = arith.constant 0 : index
    %c0_113 = arith.constant 0 : index
    %c0_114 = arith.constant 0 : index
    %146 = vector.load %arg1[%c0_110, %c1_111, %c0_112, %c0_113, %c0_114] : memref<1x4x8x8x2xf32, #tpu.memory_space<vmem>>, vector<1x3x3x3x1xf32>
    %147 = vector.shape_cast %146 : vector<1x3x3x3x1xf32> to vector<3x3x3x1xf32>
    %c18 = arith.constant 18 : index
    %c0_115 = arith.constant 0 : index
    %148 = vector.load %arg2[%c18, %c0_115] : memref<27x128xf32, #tpu.memory_space<vmem>>, vector<1x128xf32>
    %149 = vector.shape_cast %148 : vector<1x128xf32> to vector<1x1x1x128xf32>
    %150 = vector.broadcast %147 : vector<3x3x3x1xf32> to vector<3x3x3x128xf32>
    %151 = vector.broadcast %149 : vector<1x1x1x128xf32> to vector<3x3x3x128xf32>
    %152 = arith.mulf %150, %151 : vector<3x3x3x128xf32>
    %153 = arith.addf %145, %152 : vector<3x3x3x128xf32>
    %c0_116 = arith.constant 0 : index
    %c1_117 = arith.constant 1 : index
    %c0_118 = arith.constant 0 : index
    %c0_119 = arith.constant 0 : index
    %c1_120 = arith.constant 1 : index
    %154 = vector.load %arg1[%c0_116, %c1_117, %c0_118, %c0_119, %c1_120] : memref<1x4x8x8x2xf32, #tpu.memory_space<vmem>>, vector<1x3x3x3x1xf32>
    %155 = vector.shape_cast %154 : vector<1x3x3x3x1xf32> to vector<3x3x3x1xf32>
    %c19 = arith.constant 19 : index
    %c0_121 = arith.constant 0 : index
    %156 = vector.load %arg2[%c19, %c0_121] : memref<27x128xf32, #tpu.memory_space<vmem>>, vector<1x128xf32>
    %157 = vector.shape_cast %156 : vector<1x128xf32> to vector<1x1x1x128xf32>
    %158 = vector.broadcast %155 : vector<3x3x3x1xf32> to vector<3x3x3x128xf32>
    %159 = vector.broadcast %157 : vector<1x1x1x128xf32> to vector<3x3x3x128xf32>
    %160 = arith.mulf %158, %159 : vector<3x3x3x128xf32>
    %161 = arith.addf %153, %160 : vector<3x3x3x128xf32>
    %c0_122 = arith.constant 0 : index
    %c1_123 = arith.constant 1 : index
    %c0_124 = arith.constant 0 : index
    %c1_125 = arith.constant 1 : index
    %c0_126 = arith.constant 0 : index
    %162 = vector.load %arg1[%c0_122, %c1_123, %c0_124, %c1_125, %c0_126] : memref<1x4x8x8x2xf32, #tpu.memory_space<vmem>>, vector<1x3x3x3x1xf32>
    %163 = vector.shape_cast %162 : vector<1x3x3x3x1xf32> to vector<3x3x3x1xf32>
    %c20 = arith.constant 20 : index
    %c0_127 = arith.constant 0 : index
    %164 = vector.load %arg2[%c20, %c0_127] : memref<27x128xf32, #tpu.memory_space<vmem>>, vector<1x128xf32>
    %165 = vector.shape_cast %164 : vector<1x128xf32> to vector<1x1x1x128xf32>
    %166 = vector.broadcast %163 : vector<3x3x3x1xf32> to vector<3x3x3x128xf32>
    %167 = vector.broadcast %165 : vector<1x1x1x128xf32> to vector<3x3x3x128xf32>
    %168 = arith.mulf %166, %167 : vector<3x3x3x128xf32>
    %169 = arith.addf %161, %168 : vector<3x3x3x128xf32>
    %c0_128 = arith.constant 0 : index
    %c1_129 = arith.constant 1 : index
    %c0_130 = arith.constant 0 : index
    %c4_131 = arith.constant 4 : index
    %c0_132 = arith.constant 0 : index
    %170 = vector.load %arg1[%c0_128, %c1_129, %c0_130, %c4_131, %c0_132] : memref<1x4x8x8x2xf32, #tpu.memory_space<vmem>>, vector<1x3x3x3x1xf32>
    %171 = vector.shape_cast %170 : vector<1x3x3x3x1xf32> to vector<3x3x3x1xf32>
    %c21 = arith.constant 21 : index
    %c0_133 = arith.constant 0 : index
    %172 = vector.load %arg2[%c21, %c0_133] : memref<27x128xf32, #tpu.memory_space<vmem>>, vector<1x128xf32>
    %173 = vector.shape_cast %172 : vector<1x128xf32> to vector<1x1x1x128xf32>
    %174 = vector.broadcast %171 : vector<3x3x3x1xf32> to vector<3x3x3x128xf32>
    %175 = vector.broadcast %173 : vector<1x1x1x128xf32> to vector<3x3x3x128xf32>
    %176 = arith.mulf %174, %175 : vector<3x3x3x128xf32>
    %177 = arith.addf %169, %176 : vector<3x3x3x128xf32>
    %c0_134 = arith.constant 0 : index
    %c1_135 = arith.constant 1 : index
    %c0_136 = arith.constant 0 : index
    %c4_137 = arith.constant 4 : index
    %c1_138 = arith.constant 1 : index
    %178 = vector.load %arg1[%c0_134, %c1_135, %c0_136, %c4_137, %c1_138] : memref<1x4x8x8x2xf32, #tpu.memory_space<vmem>>, vector<1x3x3x3x1xf32>
    %179 = vector.shape_cast %178 : vector<1x3x3x3x1xf32> to vector<3x3x3x1xf32>
    %c22 = arith.constant 22 : index
    %c0_139 = arith.constant 0 : index
    %180 = vector.load %arg2[%c22, %c0_139] : memref<27x128xf32, #tpu.memory_space<vmem>>, vector<1x128xf32>
    %181 = vector.shape_cast %180 : vector<1x128xf32> to vector<1x1x1x128xf32>
    %182 = vector.broadcast %179 : vector<3x3x3x1xf32> to vector<3x3x3x128xf32>
    %183 = vector.broadcast %181 : vector<1x1x1x128xf32> to vector<3x3x3x128xf32>
    %184 = arith.mulf %182, %183 : vector<3x3x3x128xf32>
    %185 = arith.addf %177, %184 : vector<3x3x3x128xf32>
    %c0_140 = arith.constant 0 : index
    %c1_141 = arith.constant 1 : index
    %c0_142 = arith.constant 0 : index
    %c5_143 = arith.constant 5 : index
    %c0_144 = arith.constant 0 : index
    %186 = vector.load %arg1[%c0_140, %c1_141, %c0_142, %c5_143, %c0_144] : memref<1x4x8x8x2xf32, #tpu.memory_space<vmem>>, vector<1x3x3x3x1xf32>
    %187 = vector.shape_cast %186 : vector<1x3x3x3x1xf32> to vector<3x3x3x1xf32>
    %c23 = arith.constant 23 : index
    %c0_145 = arith.constant 0 : index
    %188 = vector.load %arg2[%c23, %c0_145] : memref<27x128xf32, #tpu.memory_space<vmem>>, vector<1x128xf32>
    %189 = vector.shape_cast %188 : vector<1x128xf32> to vector<1x1x1x128xf32>
    %190 = vector.broadcast %187 : vector<3x3x3x1xf32> to vector<3x3x3x128xf32>
    %191 = vector.broadcast %189 : vector<1x1x1x128xf32> to vector<3x3x3x128xf32>
    %192 = arith.mulf %190, %191 : vector<3x3x3x128xf32>
    %193 = arith.addf %185, %192 : vector<3x3x3x128xf32>
    %c0_146 = arith.constant 0 : index
    %c1_147 = arith.constant 1 : index
    %c1_148 = arith.constant 1 : index
    %c0_149 = arith.constant 0 : index
    %c0_150 = arith.constant 0 : index
    %194 = vector.load %arg1[%c0_146, %c1_147, %c1_148, %c0_149, %c0_150] : memref<1x4x8x8x2xf32, #tpu.memory_space<vmem>>, vector<1x3x3x3x1xf32>
    %195 = vector.shape_cast %194 : vector<1x3x3x3x1xf32> to vector<3x3x3x1xf32>
    %c24 = arith.constant 24 : index
    %c0_151 = arith.constant 0 : index
    %196 = vector.load %arg2[%c24, %c0_151] : memref<27x128xf32, #tpu.memory_space<vmem>>, vector<1x128xf32>
    %197 = vector.shape_cast %196 : vector<1x128xf32> to vector<1x1x1x128xf32>
    %198 = vector.broadcast %195 : vector<3x3x3x1xf32> to vector<3x3x3x128xf32>
    %199 = vector.broadcast %197 : vector<1x1x1x128xf32> to vector<3x3x3x128xf32>
    %200 = arith.mulf %198, %199 : vector<3x3x3x128xf32>
    %201 = arith.addf %193, %200 : vector<3x3x3x128xf32>
    %c0_152 = arith.constant 0 : index
    %c1_153 = arith.constant 1 : index
    %c1_154 = arith.constant 1 : index
    %c0_155 = arith.constant 0 : index
    %c1_156 = arith.constant 1 : index
    %202 = vector.load %arg1[%c0_152, %c1_153, %c1_154, %c0_155, %c1_156] : memref<1x4x8x8x2xf32, #tpu.memory_space<vmem>>, vector<1x3x3x3x1xf32>
    %203 = vector.shape_cast %202 : vector<1x3x3x3x1xf32> to vector<3x3x3x1xf32>
    %c25 = arith.constant 25 : index
    %c0_157 = arith.constant 0 : index
    %204 = vector.load %arg2[%c25, %c0_157] : memref<27x128xf32, #tpu.memory_space<vmem>>, vector<1x128xf32>
    %205 = vector.shape_cast %204 : vector<1x128xf32> to vector<1x1x1x128xf32>
    %206 = vector.broadcast %203 : vector<3x3x3x1xf32> to vector<3x3x3x128xf32>
    %207 = vector.broadcast %205 : vector<1x1x1x128xf32> to vector<3x3x3x128xf32>
    %208 = arith.mulf %206, %207 : vector<3x3x3x128xf32>
    %209 = arith.addf %201, %208 : vector<3x3x3x128xf32>
    %c0_158 = arith.constant 0 : index
    %c1_159 = arith.constant 1 : index
    %c1_160 = arith.constant 1 : index
    %c1_161 = arith.constant 1 : index
    %c0_162 = arith.constant 0 : index
    %210 = vector.load %arg1[%c0_158, %c1_159, %c1_160, %c1_161, %c0_162] : memref<1x4x8x8x2xf32, #tpu.memory_space<vmem>>, vector<1x3x3x3x1xf32>
    %211 = vector.shape_cast %210 : vector<1x3x3x3x1xf32> to vector<3x3x3x1xf32>
    %c26 = arith.constant 26 : index
    %c0_163 = arith.constant 0 : index
    %212 = vector.load %arg2[%c26, %c0_163] : memref<27x128xf32, #tpu.memory_space<vmem>>, vector<1x128xf32>
    %213 = vector.shape_cast %212 : vector<1x128xf32> to vector<1x1x1x128xf32>
    %214 = vector.broadcast %211 : vector<3x3x3x1xf32> to vector<3x3x3x128xf32>
    %215 = vector.broadcast %213 : vector<1x1x1x128xf32> to vector<3x3x3x128xf32>
    %216 = arith.mulf %214, %215 : vector<3x3x3x128xf32>
    %217 = arith.addf %209, %216 : vector<3x3x3x128xf32>
    %218 = vector.shape_cast %0 : vector<1x128xf32> to vector<1x1x1x128xf32>
    %219 = vector.broadcast %218 : vector<1x1x1x128xf32> to vector<3x3x3x128xf32>
    %220 = arith.addf %217, %219 : vector<3x3x3x128xf32>
    %cst_164 = arith.constant 0.00999999977 : f32
    %221 = vector.broadcast %cst_164 : f32 to vector<3x3x3x128xf32>
    %222 = arith.mulf %221, %220 : vector<3x3x3x128xf32>
    %223 = arith.maximumf %220, %222 : vector<3x3x3x128xf32>
    %224 = arith.truncf %223 : vector<3x3x3x128xf32> to vector<3x3x3x128xbf16>
    %c0_165 = arith.constant 0 : index
    %c0_166 = arith.constant 0 : index
    %c0_167 = arith.constant 0 : index
    %c0_168 = arith.constant 0 : index
    %c0_169 = arith.constant 0 : index
    %225 = vector.load %arg4[%c0_165, %c0_166, %c0_167, %c0_168, %c0_169] : memref<1x3x3x3x128xbf16, #tpu.memory_space<vmem>>, vector<1x3x3x3x128xbf16>
    %226 = vector.shape_cast %225 : vector<1x3x3x3x128xbf16> to vector<3x3x3x128xbf16>
    %227 = vector.shape_cast %224 : vector<3x3x3x128xbf16> to vector<1x3x3x3x128xbf16>
    tpu.vector_store %arg4[%c0_165, %c0_166, %c0_167, %c0_168, %c0_169], %227 {strides = array<i32>} : memref<1x3x3x3x128xbf16, #tpu.memory_space<vmem>>, vector<1x3x3x3x128xbf16>,
    return
  }
  func.func @transform_0(%arg0: i32) -> (i32, i32, i32, i32, i32) {
    %c0_i32 = arith.constant 0 : i32
    %c0_i32_0 = arith.constant 0 : i32
    %c0_i32_1 = arith.constant 0 : i32
    %c0_i32_2 = arith.constant 0 : i32
    %c0_i32_3 = arith.constant 0 : i32
    return %arg0, %c0_i32, %c0_i32_0, %c0_i32_1, %c0_i32_2 : i32, i32, i32, i32, i32
  }
  func.func @transform_1(%arg0: i32) -> (i32, i32) {
    %c0_i32 = arith.constant 0 : i32
    %c0_i32_0 = arith.constant 0 : i32
    %c0_i32_1 = arith.constant 0 : i32
    return %c0_i32, %c0_i32_0 : i32, i32
  }
  func.func @transform_2(%arg0: i32) -> (i32, i32) {
    %c0_i32 = arith.constant 0 : i32
    %c0_i32_0 = arith.constant 0 : i32
    %c0_i32_1 = arith.constant 0 : i32
    return %c0_i32, %c0_i32_0 : i32, i32
  }
  func.func @transform_3(%arg0: i32) -> (i32, i32, i32, i32, i32) {
    %c0_i32 = arith.constant 0 : i32
    %c0_i32_0 = arith.constant 0 : i32
    %c0_i32_1 = arith.constant 0 : i32
    %c0_i32_2 = arith.constant 0 : i32
    %c0_i32_3 = arith.constant 0 : i32
    return %arg0, %c0_i32, %c0_i32_0, %c0_i32_1, %c0_i32_2 : i32, i32, i32, i32, i32
  }
}

module attributes {stable_mosaic.version = 11 : i64} {
  func.func @_conv_kernel(%arg0: i32, %arg1: memref<1x2x4x4x256xbf16, #tpu.memory_space<vmem>>, %arg2: memref<3456x128xbf16, #tpu.memory_space<vmem>>, %arg3: memref<1x128xf32, #tpu.memory_space<vmem>>, %arg4: memref<1x1x1x1x128xbf16, #tpu.memory_space<vmem>>) attributes {dimension_semantics = [#tpu.dimension_semantics<parallel>], iteration_bounds = array<i64: 2>, scalar_prefetch = 0 : i64, scratch_operands = 0 : i64, tpu.core_type = #tpu.core_type<tc>, window_params = [{transform_indices = @transform_0, window_bounds = array<i64: 1, 2, 4, 4, 256>}, {pipeline_mode = #tpu.pipeline_mode<synchronous>, transform_indices = @transform_1, window_bounds = array<i64: 3456, 128>}, {pipeline_mode = #tpu.pipeline_mode<synchronous>, transform_indices = @transform_2, window_bounds = array<i64: 1, 128>}, {transform_indices = @transform_3, window_bounds = array<i64: 1, 1, 1, 1, 128>}]} {
    %c0 = arith.constant 0 : index
    %c0_0 = arith.constant 0 : index
    %0 = vector.load %arg3[%c0, %c0_0] : memref<1x128xf32, #tpu.memory_space<vmem>>, vector<1x128xf32>
    %cst = arith.constant 0.000000e+00 : f32
    %1 = vector.broadcast %cst : f32 to vector<1x128xf32>
    %c0_1 = arith.constant 0 : index
    %c0_2 = arith.constant 0 : index
    %c0_3 = arith.constant 0 : index
    %c0_4 = arith.constant 0 : index
    %c0_5 = arith.constant 0 : index
    %2 = vector.load %arg1[%c0_1, %c0_2, %c0_3, %c0_4, %c0_5] : memref<1x2x4x4x256xbf16, #tpu.memory_space<vmem>>, vector<1x1x1x1x128xbf16>
    %3 = vector.shape_cast %2 : vector<1x1x1x1x128xbf16> to vector<1x128xbf16>
    %c0_6 = arith.constant 0 : index
    %c0_7 = arith.constant 0 : index
    %4 = vector.load %arg2[%c0_6, %c0_7] : memref<3456x128xbf16, #tpu.memory_space<vmem>>, vector<128x128xbf16>
    %cst_8 = arith.constant dense<0.000000e+00> : vector<1x128xf32>
    %5 = tpu.matmul %3, %4, %cst_8 {dimension_numbers = #tpu.dot_dimension_numbers<[1], [0], [0], [1], [0, 0, 1, 1], [], []>} : vector<1x128xbf16>, vector<128x128xbf16>, vector<1x128xf32> -> vector<1x128xf32>
    %6 = arith.addf %1, %5 : vector<1x128xf32>
    %c0_9 = arith.constant 0 : index
    %c0_10 = arith.constant 0 : index
    %c0_11 = arith.constant 0 : index
    %c0_12 = arith.constant 0 : index
    %c128 = arith.constant 128 : index
    %7 = vector.load %arg1[%c0_9, %c0_10, %c0_11, %c0_12, %c128] : memref<1x2x4x4x256xbf16, #tpu.memory_space<vmem>>, vector<1x1x1x1x128xbf16>
    %8 = vector.shape_cast %7 : vector<1x1x1x1x128xbf16> to vector<1x128xbf16>
    %c128_13 = arith.constant 128 : index
    %c0_14 = arith.constant 0 : index
    %9 = vector.load %arg2[%c128_13, %c0_14] : memref<3456x128xbf16, #tpu.memory_space<vmem>>, vector<128x128xbf16>
    %cst_15 = arith.constant dense<0.000000e+00> : vector<1x128xf32>
    %10 = tpu.matmul %8, %9, %cst_15 {dimension_numbers = #tpu.dot_dimension_numbers<[1], [0], [0], [1], [0, 0, 1, 1], [], []>} : vector<1x128xbf16>, vector<128x128xbf16>, vector<1x128xf32> -> vector<1x128xf32>
    %11 = arith.addf %6, %10 : vector<1x128xf32>
    %c0_16 = arith.constant 0 : index
    %c0_17 = arith.constant 0 : index
    %c0_18 = arith.constant 0 : index
    %c1 = arith.constant 1 : index
    %c0_19 = arith.constant 0 : index
    %12 = vector.load %arg1[%c0_16, %c0_17, %c0_18, %c1, %c0_19] : memref<1x2x4x4x256xbf16, #tpu.memory_space<vmem>>, vector<1x1x1x1x128xbf16>
    %13 = vector.shape_cast %12 : vector<1x1x1x1x128xbf16> to vector<1x128xbf16>
    %c256 = arith.constant 256 : index
    %c0_20 = arith.constant 0 : index
    %14 = vector.load %arg2[%c256, %c0_20] : memref<3456x128xbf16, #tpu.memory_space<vmem>>, vector<128x128xbf16>
    %cst_21 = arith.constant dense<0.000000e+00> : vector<1x128xf32>
    %15 = tpu.matmul %13, %14, %cst_21 {dimension_numbers = #tpu.dot_dimension_numbers<[1], [0], [0], [1], [0, 0, 1, 1], [], []>} : vector<1x128xbf16>, vector<128x128xbf16>, vector<1x128xf32> -> vector<1x128xf32>
    %16 = arith.addf %11, %15 : vector<1x128xf32>
    %c0_22 = arith.constant 0 : index
    %c0_23 = arith.constant 0 : index
    %c0_24 = arith.constant 0 : index
    %c2 = arith.constant 2 : index
    %c0_25 = arith.constant 0 : index
    %17 = vector.load %arg1[%c0_22, %c0_23, %c0_24, %c2, %c0_25] : memref<1x2x4x4x256xbf16, #tpu.memory_space<vmem>>, vector<1x1x1x1x128xbf16>
    %18 = vector.shape_cast %17 : vector<1x1x1x1x128xbf16> to vector<1x128xbf16>
    %c384 = arith.constant 384 : index
    %c0_26 = arith.constant 0 : index
    %19 = vector.load %arg2[%c384, %c0_26] : memref<3456x128xbf16, #tpu.memory_space<vmem>>, vector<128x128xbf16>
    %cst_27 = arith.constant dense<0.000000e+00> : vector<1x128xf32>
    %20 = tpu.matmul %18, %19, %cst_27 {dimension_numbers = #tpu.dot_dimension_numbers<[1], [0], [0], [1], [0, 0, 1, 1], [], []>} : vector<1x128xbf16>, vector<128x128xbf16>, vector<1x128xf32> -> vector<1x128xf32>
    %21 = arith.addf %16, %20 : vector<1x128xf32>
    %c0_28 = arith.constant 0 : index
    %c0_29 = arith.constant 0 : index
    %c0_30 = arith.constant 0 : index
    %c2_31 = arith.constant 2 : index
    %c128_32 = arith.constant 128 : index
    %22 = vector.load %arg1[%c0_28, %c0_29, %c0_30, %c2_31, %c128_32] : memref<1x2x4x4x256xbf16, #tpu.memory_space<vmem>>, vector<1x1x1x1x128xbf16>
    %23 = vector.shape_cast %22 : vector<1x1x1x1x128xbf16> to vector<1x128xbf16>
    %c512 = arith.constant 512 : index
    %c0_33 = arith.constant 0 : index
    %24 = vector.load %arg2[%c512, %c0_33] : memref<3456x128xbf16, #tpu.memory_space<vmem>>, vector<128x128xbf16>
    %cst_34 = arith.constant dense<0.000000e+00> : vector<1x128xf32>
    %25 = tpu.matmul %23, %24, %cst_34 {dimension_numbers = #tpu.dot_dimension_numbers<[1], [0], [0], [1], [0, 0, 1, 1], [], []>} : vector<1x128xbf16>, vector<128x128xbf16>, vector<1x128xf32> -> vector<1x128xf32>
    %26 = arith.addf %21, %25 : vector<1x128xf32>
    %c0_35 = arith.constant 0 : index
    %c0_36 = arith.constant 0 : index
    %c0_37 = arith.constant 0 : index
    %c3 = arith.constant 3 : index
    %c0_38 = arith.constant 0 : index
    %27 = vector.load %arg1[%c0_35, %c0_36, %c0_37, %c3, %c0_38] : memref<1x2x4x4x256xbf16, #tpu.memory_space<vmem>>, vector<1x1x1x1x128xbf16>
    %28 = vector.shape_cast %27 : vector<1x1x1x1x128xbf16> to vector<1x128xbf16>
    %c640 = arith.constant 640 : index
    %c0_39 = arith.constant 0 : index
    %29 = vector.load %arg2[%c640, %c0_39] : memref<3456x128xbf16, #tpu.memory_space<vmem>>, vector<128x128xbf16>
    %cst_40 = arith.constant dense<0.000000e+00> : vector<1x128xf32>
    %30 = tpu.matmul %28, %29, %cst_40 {dimension_numbers = #tpu.dot_dimension_numbers<[1], [0], [0], [1], [0, 0, 1, 1], [], []>} : vector<1x128xbf16>, vector<128x128xbf16>, vector<1x128xf32> -> vector<1x128xf32>
    %31 = arith.addf %26, %30 : vector<1x128xf32>
    %c0_41 = arith.constant 0 : index
    %c0_42 = arith.constant 0 : index
    %c1_43 = arith.constant 1 : index
    %c0_44 = arith.constant 0 : index
    %c0_45 = arith.constant 0 : index
    %32 = vector.load %arg1[%c0_41, %c0_42, %c1_43, %c0_44, %c0_45] : memref<1x2x4x4x256xbf16, #tpu.memory_space<vmem>>, vector<1x1x1x1x128xbf16>
    %33 = vector.shape_cast %32 : vector<1x1x1x1x128xbf16> to vector<1x128xbf16>
    %c768 = arith.constant 768 : index
    %c0_46 = arith.constant 0 : index
    %34 = vector.load %arg2[%c768, %c0_46] : memref<3456x128xbf16, #tpu.memory_space<vmem>>, vector<128x128xbf16>
    %cst_47 = arith.constant dense<0.000000e+00> : vector<1x128xf32>
    %35 = tpu.matmul %33, %34, %cst_47 {dimension_numbers = #tpu.dot_dimension_numbers<[1], [0], [0], [1], [0, 0, 1, 1], [], []>} : vector<1x128xbf16>, vector<128x128xbf16>, vector<1x128xf32> -> vector<1x128xf32>
    %36 = arith.addf %31, %35 : vector<1x128xf32>
    %c0_48 = arith.constant 0 : index
    %c0_49 = arith.constant 0 : index
    %c1_50 = arith.constant 1 : index
    %c0_51 = arith.constant 0 : index
    %c128_52 = arith.constant 128 : index
    %37 = vector.load %arg1[%c0_48, %c0_49, %c1_50, %c0_51, %c128_52] : memref<1x2x4x4x256xbf16, #tpu.memory_space<vmem>>, vector<1x1x1x1x128xbf16>
    %38 = vector.shape_cast %37 : vector<1x1x1x1x128xbf16> to vector<1x128xbf16>
    %c896 = arith.constant 896 : index
    %c0_53 = arith.constant 0 : index
    %39 = vector.load %arg2[%c896, %c0_53] : memref<3456x128xbf16, #tpu.memory_space<vmem>>, vector<128x128xbf16>
    %cst_54 = arith.constant dense<0.000000e+00> : vector<1x128xf32>
    %40 = tpu.matmul %38, %39, %cst_54 {dimension_numbers = #tpu.dot_dimension_numbers<[1], [0], [0], [1], [0, 0, 1, 1], [], []>} : vector<1x128xbf16>, vector<128x128xbf16>, vector<1x128xf32> -> vector<1x128xf32>
    %41 = arith.addf %36, %40 : vector<1x128xf32>
    %c0_55 = arith.constant 0 : index
    %c0_56 = arith.constant 0 : index
    %c1_57 = arith.constant 1 : index
    %c1_58 = arith.constant 1 : index
    %c0_59 = arith.constant 0 : index
    %42 = vector.load %arg1[%c0_55, %c0_56, %c1_57, %c1_58, %c0_59] : memref<1x2x4x4x256xbf16, #tpu.memory_space<vmem>>, vector<1x1x1x1x128xbf16>
    %43 = vector.shape_cast %42 : vector<1x1x1x1x128xbf16> to vector<1x128xbf16>
    %c1024 = arith.constant 1024 : index
    %c0_60 = arith.constant 0 : index
    %44 = vector.load %arg2[%c1024, %c0_60] : memref<3456x128xbf16, #tpu.memory_space<vmem>>, vector<128x128xbf16>
    %cst_61 = arith.constant dense<0.000000e+00> : vector<1x128xf32>
    %45 = tpu.matmul %43, %44, %cst_61 {dimension_numbers = #tpu.dot_dimension_numbers<[1], [0], [0], [1], [0, 0, 1, 1], [], []>} : vector<1x128xbf16>, vector<128x128xbf16>, vector<1x128xf32> -> vector<1x128xf32>
    %46 = arith.addf %41, %45 : vector<1x128xf32>
    %c0_62 = arith.constant 0 : index
    %c0_63 = arith.constant 0 : index
    %c2_64 = arith.constant 2 : index
    %c0_65 = arith.constant 0 : index
    %c0_66 = arith.constant 0 : index
    %47 = vector.load %arg1[%c0_62, %c0_63, %c2_64, %c0_65, %c0_66] : memref<1x2x4x4x256xbf16, #tpu.memory_space<vmem>>, vector<1x1x1x1x128xbf16>
    %48 = vector.shape_cast %47 : vector<1x1x1x1x128xbf16> to vector<1x128xbf16>
    %c1152 = arith.constant 1152 : index
    %c0_67 = arith.constant 0 : index
    %49 = vector.load %arg2[%c1152, %c0_67] : memref<3456x128xbf16, #tpu.memory_space<vmem>>, vector<128x128xbf16>
    %cst_68 = arith.constant dense<0.000000e+00> : vector<1x128xf32>
    %50 = tpu.matmul %48, %49, %cst_68 {dimension_numbers = #tpu.dot_dimension_numbers<[1], [0], [0], [1], [0, 0, 1, 1], [], []>} : vector<1x128xbf16>, vector<128x128xbf16>, vector<1x128xf32> -> vector<1x128xf32>
    %51 = arith.addf %46, %50 : vector<1x128xf32>
    %c0_69 = arith.constant 0 : index
    %c0_70 = arith.constant 0 : index
    %c2_71 = arith.constant 2 : index
    %c0_72 = arith.constant 0 : index
    %c128_73 = arith.constant 128 : index
    %52 = vector.load %arg1[%c0_69, %c0_70, %c2_71, %c0_72, %c128_73] : memref<1x2x4x4x256xbf16, #tpu.memory_space<vmem>>, vector<1x1x1x1x128xbf16>
    %53 = vector.shape_cast %52 : vector<1x1x1x1x128xbf16> to vector<1x128xbf16>
    %c1280 = arith.constant 1280 : index
    %c0_74 = arith.constant 0 : index
    %54 = vector.load %arg2[%c1280, %c0_74] : memref<3456x128xbf16, #tpu.memory_space<vmem>>, vector<128x128xbf16>
    %cst_75 = arith.constant dense<0.000000e+00> : vector<1x128xf32>
    %55 = tpu.matmul %53, %54, %cst_75 {dimension_numbers = #tpu.dot_dimension_numbers<[1], [0], [0], [1], [0, 0, 1, 1], [], []>} : vector<1x128xbf16>, vector<128x128xbf16>, vector<1x128xf32> -> vector<1x128xf32>
    %56 = arith.addf %51, %55 : vector<1x128xf32>
    %c0_76 = arith.constant 0 : index
    %c0_77 = arith.constant 0 : index
    %c2_78 = arith.constant 2 : index
    %c1_79 = arith.constant 1 : index
    %c0_80 = arith.constant 0 : index
    %57 = vector.load %arg1[%c0_76, %c0_77, %c2_78, %c1_79, %c0_80] : memref<1x2x4x4x256xbf16, #tpu.memory_space<vmem>>, vector<1x1x1x1x128xbf16>
    %58 = vector.shape_cast %57 : vector<1x1x1x1x128xbf16> to vector<1x128xbf16>
    %c1408 = arith.constant 1408 : index
    %c0_81 = arith.constant 0 : index
    %59 = vector.load %arg2[%c1408, %c0_81] : memref<3456x128xbf16, #tpu.memory_space<vmem>>, vector<128x128xbf16>
    %cst_82 = arith.constant dense<0.000000e+00> : vector<1x128xf32>
    %60 = tpu.matmul %58, %59, %cst_82 {dimension_numbers = #tpu.dot_dimension_numbers<[1], [0], [0], [1], [0, 0, 1, 1], [], []>} : vector<1x128xbf16>, vector<128x128xbf16>, vector<1x128xf32> -> vector<1x128xf32>
    %61 = arith.addf %56, %60 : vector<1x128xf32>
    %c0_83 = arith.constant 0 : index
    %c0_84 = arith.constant 0 : index
    %c2_85 = arith.constant 2 : index
    %c2_86 = arith.constant 2 : index
    %c0_87 = arith.constant 0 : index
    %62 = vector.load %arg1[%c0_83, %c0_84, %c2_85, %c2_86, %c0_87] : memref<1x2x4x4x256xbf16, #tpu.memory_space<vmem>>, vector<1x1x1x1x128xbf16>
    %63 = vector.shape_cast %62 : vector<1x1x1x1x128xbf16> to vector<1x128xbf16>
    %c1536 = arith.constant 1536 : index
    %c0_88 = arith.constant 0 : index
    %64 = vector.load %arg2[%c1536, %c0_88] : memref<3456x128xbf16, #tpu.memory_space<vmem>>, vector<128x128xbf16>
    %cst_89 = arith.constant dense<0.000000e+00> : vector<1x128xf32>
    %65 = tpu.matmul %63, %64, %cst_89 {dimension_numbers = #tpu.dot_dimension_numbers<[1], [0], [0], [1], [0, 0, 1, 1], [], []>} : vector<1x128xbf16>, vector<128x128xbf16>, vector<1x128xf32> -> vector<1x128xf32>
    %66 = arith.addf %61, %65 : vector<1x128xf32>
    %c0_90 = arith.constant 0 : index
    %c0_91 = arith.constant 0 : index
    %c2_92 = arith.constant 2 : index
    %c2_93 = arith.constant 2 : index
    %c128_94 = arith.constant 128 : index
    %67 = vector.load %arg1[%c0_90, %c0_91, %c2_92, %c2_93, %c128_94] : memref<1x2x4x4x256xbf16, #tpu.memory_space<vmem>>, vector<1x1x1x1x128xbf16>
    %68 = vector.shape_cast %67 : vector<1x1x1x1x128xbf16> to vector<1x128xbf16>
    %c1664 = arith.constant 1664 : index
    %c0_95 = arith.constant 0 : index
    %69 = vector.load %arg2[%c1664, %c0_95] : memref<3456x128xbf16, #tpu.memory_space<vmem>>, vector<128x128xbf16>
    %cst_96 = arith.constant dense<0.000000e+00> : vector<1x128xf32>
    %70 = tpu.matmul %68, %69, %cst_96 {dimension_numbers = #tpu.dot_dimension_numbers<[1], [0], [0], [1], [0, 0, 1, 1], [], []>} : vector<1x128xbf16>, vector<128x128xbf16>, vector<1x128xf32> -> vector<1x128xf32>
    %71 = arith.addf %66, %70 : vector<1x128xf32>
    %c0_97 = arith.constant 0 : index
    %c0_98 = arith.constant 0 : index
    %c2_99 = arith.constant 2 : index
    %c3_100 = arith.constant 3 : index
    %c0_101 = arith.constant 0 : index
    %72 = vector.load %arg1[%c0_97, %c0_98, %c2_99, %c3_100, %c0_101] : memref<1x2x4x4x256xbf16, #tpu.memory_space<vmem>>, vector<1x1x1x1x128xbf16>
    %73 = vector.shape_cast %72 : vector<1x1x1x1x128xbf16> to vector<1x128xbf16>
    %c1792 = arith.constant 1792 : index
    %c0_102 = arith.constant 0 : index
    %74 = vector.load %arg2[%c1792, %c0_102] : memref<3456x128xbf16, #tpu.memory_space<vmem>>, vector<128x128xbf16>
    %cst_103 = arith.constant dense<0.000000e+00> : vector<1x128xf32>
    %75 = tpu.matmul %73, %74, %cst_103 {dimension_numbers = #tpu.dot_dimension_numbers<[1], [0], [0], [1], [0, 0, 1, 1], [], []>} : vector<1x128xbf16>, vector<128x128xbf16>, vector<1x128xf32> -> vector<1x128xf32>
    %76 = arith.addf %71, %75 : vector<1x128xf32>
    %c0_104 = arith.constant 0 : index
    %c0_105 = arith.constant 0 : index
    %c3_106 = arith.constant 3 : index
    %c0_107 = arith.constant 0 : index
    %c0_108 = arith.constant 0 : index
    %77 = vector.load %arg1[%c0_104, %c0_105, %c3_106, %c0_107, %c0_108] : memref<1x2x4x4x256xbf16, #tpu.memory_space<vmem>>, vector<1x1x1x1x128xbf16>
    %78 = vector.shape_cast %77 : vector<1x1x1x1x128xbf16> to vector<1x128xbf16>
    %c1920 = arith.constant 1920 : index
    %c0_109 = arith.constant 0 : index
    %79 = vector.load %arg2[%c1920, %c0_109] : memref<3456x128xbf16, #tpu.memory_space<vmem>>, vector<128x128xbf16>
    %cst_110 = arith.constant dense<0.000000e+00> : vector<1x128xf32>
    %80 = tpu.matmul %78, %79, %cst_110 {dimension_numbers = #tpu.dot_dimension_numbers<[1], [0], [0], [1], [0, 0, 1, 1], [], []>} : vector<1x128xbf16>, vector<128x128xbf16>, vector<1x128xf32> -> vector<1x128xf32>
    %81 = arith.addf %76, %80 : vector<1x128xf32>
    %c0_111 = arith.constant 0 : index
    %c0_112 = arith.constant 0 : index
    %c3_113 = arith.constant 3 : index
    %c0_114 = arith.constant 0 : index
    %c128_115 = arith.constant 128 : index
    %82 = vector.load %arg1[%c0_111, %c0_112, %c3_113, %c0_114, %c128_115] : memref<1x2x4x4x256xbf16, #tpu.memory_space<vmem>>, vector<1x1x1x1x128xbf16>
    %83 = vector.shape_cast %82 : vector<1x1x1x1x128xbf16> to vector<1x128xbf16>
    %c2048 = arith.constant 2048 : index
    %c0_116 = arith.constant 0 : index
    %84 = vector.load %arg2[%c2048, %c0_116] : memref<3456x128xbf16, #tpu.memory_space<vmem>>, vector<128x128xbf16>
    %cst_117 = arith.constant dense<0.000000e+00> : vector<1x128xf32>
    %85 = tpu.matmul %83, %84, %cst_117 {dimension_numbers = #tpu.dot_dimension_numbers<[1], [0], [0], [1], [0, 0, 1, 1], [], []>} : vector<1x128xbf16>, vector<128x128xbf16>, vector<1x128xf32> -> vector<1x128xf32>
    %86 = arith.addf %81, %85 : vector<1x128xf32>
    %c0_118 = arith.constant 0 : index
    %c0_119 = arith.constant 0 : index
    %c3_120 = arith.constant 3 : index
    %c1_121 = arith.constant 1 : index
    %c0_122 = arith.constant 0 : index
    %87 = vector.load %arg1[%c0_118, %c0_119, %c3_120, %c1_121, %c0_122] : memref<1x2x4x4x256xbf16, #tpu.memory_space<vmem>>, vector<1x1x1x1x128xbf16>
    %88 = vector.shape_cast %87 : vector<1x1x1x1x128xbf16> to vector<1x128xbf16>
    %c2176 = arith.constant 2176 : index
    %c0_123 = arith.constant 0 : index
    %89 = vector.load %arg2[%c2176, %c0_123] : memref<3456x128xbf16, #tpu.memory_space<vmem>>, vector<128x128xbf16>
    %cst_124 = arith.constant dense<0.000000e+00> : vector<1x128xf32>
    %90 = tpu.matmul %88, %89, %cst_124 {dimension_numbers = #tpu.dot_dimension_numbers<[1], [0], [0], [1], [0, 0, 1, 1], [], []>} : vector<1x128xbf16>, vector<128x128xbf16>, vector<1x128xf32> -> vector<1x128xf32>
    %91 = arith.addf %86, %90 : vector<1x128xf32>
    %c0_125 = arith.constant 0 : index
    %c1_126 = arith.constant 1 : index
    %c0_127 = arith.constant 0 : index
    %c0_128 = arith.constant 0 : index
    %c0_129 = arith.constant 0 : index
    %92 = vector.load %arg1[%c0_125, %c1_126, %c0_127, %c0_128, %c0_129] : memref<1x2x4x4x256xbf16, #tpu.memory_space<vmem>>, vector<1x1x1x1x128xbf16>
    %93 = vector.shape_cast %92 : vector<1x1x1x1x128xbf16> to vector<1x128xbf16>
    %c2304 = arith.constant 2304 : index
    %c0_130 = arith.constant 0 : index
    %94 = vector.load %arg2[%c2304, %c0_130] : memref<3456x128xbf16, #tpu.memory_space<vmem>>, vector<128x128xbf16>
    %cst_131 = arith.constant dense<0.000000e+00> : vector<1x128xf32>
    %95 = tpu.matmul %93, %94, %cst_131 {dimension_numbers = #tpu.dot_dimension_numbers<[1], [0], [0], [1], [0, 0, 1, 1], [], []>} : vector<1x128xbf16>, vector<128x128xbf16>, vector<1x128xf32> -> vector<1x128xf32>
    %96 = arith.addf %91, %95 : vector<1x128xf32>
    %c0_132 = arith.constant 0 : index
    %c1_133 = arith.constant 1 : index
    %c0_134 = arith.constant 0 : index
    %c0_135 = arith.constant 0 : index
    %c128_136 = arith.constant 128 : index
    %97 = vector.load %arg1[%c0_132, %c1_133, %c0_134, %c0_135, %c128_136] : memref<1x2x4x4x256xbf16, #tpu.memory_space<vmem>>, vector<1x1x1x1x128xbf16>
    %98 = vector.shape_cast %97 : vector<1x1x1x1x128xbf16> to vector<1x128xbf16>
    %c2432 = arith.constant 2432 : index
    %c0_137 = arith.constant 0 : index
    %99 = vector.load %arg2[%c2432, %c0_137] : memref<3456x128xbf16, #tpu.memory_space<vmem>>, vector<128x128xbf16>
    %cst_138 = arith.constant dense<0.000000e+00> : vector<1x128xf32>
    %100 = tpu.matmul %98, %99, %cst_138 {dimension_numbers = #tpu.dot_dimension_numbers<[1], [0], [0], [1], [0, 0, 1, 1], [], []>} : vector<1x128xbf16>, vector<128x128xbf16>, vector<1x128xf32> -> vector<1x128xf32>
    %101 = arith.addf %96, %100 : vector<1x128xf32>
    %c0_139 = arith.constant 0 : index
    %c1_140 = arith.constant 1 : index
    %c0_141 = arith.constant 0 : index
    %c1_142 = arith.constant 1 : index
    %c0_143 = arith.constant 0 : index
    %102 = vector.load %arg1[%c0_139, %c1_140, %c0_141, %c1_142, %c0_143] : memref<1x2x4x4x256xbf16, #tpu.memory_space<vmem>>, vector<1x1x1x1x128xbf16>
    %103 = vector.shape_cast %102 : vector<1x1x1x1x128xbf16> to vector<1x128xbf16>
    %c2560 = arith.constant 2560 : index
    %c0_144 = arith.constant 0 : index
    %104 = vector.load %arg2[%c2560, %c0_144] : memref<3456x128xbf16, #tpu.memory_space<vmem>>, vector<128x128xbf16>
    %cst_145 = arith.constant dense<0.000000e+00> : vector<1x128xf32>
    %105 = tpu.matmul %103, %104, %cst_145 {dimension_numbers = #tpu.dot_dimension_numbers<[1], [0], [0], [1], [0, 0, 1, 1], [], []>} : vector<1x128xbf16>, vector<128x128xbf16>, vector<1x128xf32> -> vector<1x128xf32>
    %106 = arith.addf %101, %105 : vector<1x128xf32>
    %c0_146 = arith.constant 0 : index
    %c1_147 = arith.constant 1 : index
    %c0_148 = arith.constant 0 : index
    %c2_149 = arith.constant 2 : index
    %c0_150 = arith.constant 0 : index
    %107 = vector.load %arg1[%c0_146, %c1_147, %c0_148, %c2_149, %c0_150] : memref<1x2x4x4x256xbf16, #tpu.memory_space<vmem>>, vector<1x1x1x1x128xbf16>
    %108 = vector.shape_cast %107 : vector<1x1x1x1x128xbf16> to vector<1x128xbf16>
    %c2688 = arith.constant 2688 : index
    %c0_151 = arith.constant 0 : index
    %109 = vector.load %arg2[%c2688, %c0_151] : memref<3456x128xbf16, #tpu.memory_space<vmem>>, vector<128x128xbf16>
    %cst_152 = arith.constant dense<0.000000e+00> : vector<1x128xf32>
    %110 = tpu.matmul %108, %109, %cst_152 {dimension_numbers = #tpu.dot_dimension_numbers<[1], [0], [0], [1], [0, 0, 1, 1], [], []>} : vector<1x128xbf16>, vector<128x128xbf16>, vector<1x128xf32> -> vector<1x128xf32>
    %111 = arith.addf %106, %110 : vector<1x128xf32>
    %c0_153 = arith.constant 0 : index
    %c1_154 = arith.constant 1 : index
    %c0_155 = arith.constant 0 : index
    %c2_156 = arith.constant 2 : index
    %c128_157 = arith.constant 128 : index
    %112 = vector.load %arg1[%c0_153, %c1_154, %c0_155, %c2_156, %c128_157] : memref<1x2x4x4x256xbf16, #tpu.memory_space<vmem>>, vector<1x1x1x1x128xbf16>
    %113 = vector.shape_cast %112 : vector<1x1x1x1x128xbf16> to vector<1x128xbf16>
    %c2816 = arith.constant 2816 : index
    %c0_158 = arith.constant 0 : index
    %114 = vector.load %arg2[%c2816, %c0_158] : memref<3456x128xbf16, #tpu.memory_space<vmem>>, vector<128x128xbf16>
    %cst_159 = arith.constant dense<0.000000e+00> : vector<1x128xf32>
    %115 = tpu.matmul %113, %114, %cst_159 {dimension_numbers = #tpu.dot_dimension_numbers<[1], [0], [0], [1], [0, 0, 1, 1], [], []>} : vector<1x128xbf16>, vector<128x128xbf16>, vector<1x128xf32> -> vector<1x128xf32>
    %116 = arith.addf %111, %115 : vector<1x128xf32>
    %c0_160 = arith.constant 0 : index
    %c1_161 = arith.constant 1 : index
    %c0_162 = arith.constant 0 : index
    %c3_163 = arith.constant 3 : index
    %c0_164 = arith.constant 0 : index
    %117 = vector.load %arg1[%c0_160, %c1_161, %c0_162, %c3_163, %c0_164] : memref<1x2x4x4x256xbf16, #tpu.memory_space<vmem>>, vector<1x1x1x1x128xbf16>
    %118 = vector.shape_cast %117 : vector<1x1x1x1x128xbf16> to vector<1x128xbf16>
    %c2944 = arith.constant 2944 : index
    %c0_165 = arith.constant 0 : index
    %119 = vector.load %arg2[%c2944, %c0_165] : memref<3456x128xbf16, #tpu.memory_space<vmem>>, vector<128x128xbf16>
    %cst_166 = arith.constant dense<0.000000e+00> : vector<1x128xf32>
    %120 = tpu.matmul %118, %119, %cst_166 {dimension_numbers = #tpu.dot_dimension_numbers<[1], [0], [0], [1], [0, 0, 1, 1], [], []>} : vector<1x128xbf16>, vector<128x128xbf16>, vector<1x128xf32> -> vector<1x128xf32>
    %121 = arith.addf %116, %120 : vector<1x128xf32>
    %c0_167 = arith.constant 0 : index
    %c1_168 = arith.constant 1 : index
    %c1_169 = arith.constant 1 : index
    %c0_170 = arith.constant 0 : index
    %c0_171 = arith.constant 0 : index
    %122 = vector.load %arg1[%c0_167, %c1_168, %c1_169, %c0_170, %c0_171] : memref<1x2x4x4x256xbf16, #tpu.memory_space<vmem>>, vector<1x1x1x1x128xbf16>
    %123 = vector.shape_cast %122 : vector<1x1x1x1x128xbf16> to vector<1x128xbf16>
    %c3072 = arith.constant 3072 : index
    %c0_172 = arith.constant 0 : index
    %124 = vector.load %arg2[%c3072, %c0_172] : memref<3456x128xbf16, #tpu.memory_space<vmem>>, vector<128x128xbf16>
    %cst_173 = arith.constant dense<0.000000e+00> : vector<1x128xf32>
    %125 = tpu.matmul %123, %124, %cst_173 {dimension_numbers = #tpu.dot_dimension_numbers<[1], [0], [0], [1], [0, 0, 1, 1], [], []>} : vector<1x128xbf16>, vector<128x128xbf16>, vector<1x128xf32> -> vector<1x128xf32>
    %126 = arith.addf %121, %125 : vector<1x128xf32>
    %c0_174 = arith.constant 0 : index
    %c1_175 = arith.constant 1 : index
    %c1_176 = arith.constant 1 : index
    %c0_177 = arith.constant 0 : index
    %c128_178 = arith.constant 128 : index
    %127 = vector.load %arg1[%c0_174, %c1_175, %c1_176, %c0_177, %c128_178] : memref<1x2x4x4x256xbf16, #tpu.memory_space<vmem>>, vector<1x1x1x1x128xbf16>
    %128 = vector.shape_cast %127 : vector<1x1x1x1x128xbf16> to vector<1x128xbf16>
    %c3200 = arith.constant 3200 : index
    %c0_179 = arith.constant 0 : index
    %129 = vector.load %arg2[%c3200, %c0_179] : memref<3456x128xbf16, #tpu.memory_space<vmem>>, vector<128x128xbf16>
    %cst_180 = arith.constant dense<0.000000e+00> : vector<1x128xf32>
    %130 = tpu.matmul %128, %129, %cst_180 {dimension_numbers = #tpu.dot_dimension_numbers<[1], [0], [0], [1], [0, 0, 1, 1], [], []>} : vector<1x128xbf16>, vector<128x128xbf16>, vector<1x128xf32> -> vector<1x128xf32>
    %131 = arith.addf %126, %130 : vector<1x128xf32>
    %c0_181 = arith.constant 0 : index
    %c1_182 = arith.constant 1 : index
    %c1_183 = arith.constant 1 : index
    %c1_184 = arith.constant 1 : index
    %c0_185 = arith.constant 0 : index
    %132 = vector.load %arg1[%c0_181, %c1_182, %c1_183, %c1_184, %c0_185] : memref<1x2x4x4x256xbf16, #tpu.memory_space<vmem>>, vector<1x1x1x1x128xbf16>
    %133 = vector.shape_cast %132 : vector<1x1x1x1x128xbf16> to vector<1x128xbf16>
    %c3328 = arith.constant 3328 : index
    %c0_186 = arith.constant 0 : index
    %134 = vector.load %arg2[%c3328, %c0_186] : memref<3456x128xbf16, #tpu.memory_space<vmem>>, vector<128x128xbf16>
    %cst_187 = arith.constant dense<0.000000e+00> : vector<1x128xf32>
    %135 = tpu.matmul %133, %134, %cst_187 {dimension_numbers = #tpu.dot_dimension_numbers<[1], [0], [0], [1], [0, 0, 1, 1], [], []>} : vector<1x128xbf16>, vector<128x128xbf16>, vector<1x128xf32> -> vector<1x128xf32>
    %136 = arith.addf %131, %135 : vector<1x128xf32>
    %137 = arith.addf %136, %0 : vector<1x128xf32>
    %cst_188 = arith.constant 0.00999999977 : f32
    %138 = vector.broadcast %cst_188 : f32 to vector<1x128xf32>
    %139 = arith.mulf %138, %137 : vector<1x128xf32>
    %140 = arith.maximumf %137, %139 : vector<1x128xf32>
    %141 = arith.truncf %140 : vector<1x128xf32> to vector<1x128xbf16>
    %c0_189 = arith.constant 0 : index
    %c0_190 = arith.constant 0 : index
    %c0_191 = arith.constant 0 : index
    %c0_192 = arith.constant 0 : index
    %c0_193 = arith.constant 0 : index
    %142 = vector.load %arg4[%c0_189, %c0_190, %c0_191, %c0_192, %c0_193] : memref<1x1x1x1x128xbf16, #tpu.memory_space<vmem>>, vector<1x1x1x1x128xbf16>
    %143 = vector.shape_cast %142 : vector<1x1x1x1x128xbf16> to vector<1x128xbf16>
    %144 = vector.shape_cast %141 : vector<1x128xbf16> to vector<1x1x1x1x128xbf16>
    tpu.vector_store %arg4[%c0_189, %c0_190, %c0_191, %c0_192, %c0_193], %144 {strides = array<i32>} : memref<1x1x1x1x128xbf16, #tpu.memory_space<vmem>>, vector<1x1x1x1x128xbf16>,
    return
  }
  func.func @transform_0(%arg0: i32) -> (i32, i32, i32, i32, i32) {
    %c0_i32 = arith.constant 0 : i32
    %c0_i32_0 = arith.constant 0 : i32
    %c0_i32_1 = arith.constant 0 : i32
    %c0_i32_2 = arith.constant 0 : i32
    %c0_i32_3 = arith.constant 0 : i32
    return %arg0, %c0_i32, %c0_i32_0, %c0_i32_1, %c0_i32_2 : i32, i32, i32, i32, i32
  }
  func.func @transform_1(%arg0: i32) -> (i32, i32) {
    %c0_i32 = arith.constant 0 : i32
    %c0_i32_0 = arith.constant 0 : i32
    %c0_i32_1 = arith.constant 0 : i32
    return %c0_i32, %c0_i32_0 : i32, i32
  }
  func.func @transform_2(%arg0: i32) -> (i32, i32) {
    %c0_i32 = arith.constant 0 : i32
    %c0_i32_0 = arith.constant 0 : i32
    %c0_i32_1 = arith.constant 0 : i32
    return %c0_i32, %c0_i32_0 : i32, i32
  }
  func.func @transform_3(%arg0: i32) -> (i32, i32, i32, i32, i32) {
    %c0_i32 = arith.constant 0 : i32
    %c0_i32_0 = arith.constant 0 : i32
    %c0_i32_1 = arith.constant 0 : i32
    %c0_i32_2 = arith.constant 0 : i32
    %c0_i32_3 = arith.constant 0 : i32
    return %arg0, %c0_i32, %c0_i32_0, %c0_i32_1, %c0_i32_2 : i32, i32, i32, i32, i32
  }
}

module attributes {stable_mosaic.version = 11 : i64} {
  func.func @_ordinal_head_kernel(%arg0: i32, %arg1: memref<8x128xbf16, #tpu.memory_space<vmem>>, %arg2: memref<128x128xbf16, #tpu.memory_space<vmem>>, %arg3: memref<1x128xf32, #tpu.memory_space<vmem>>, %arg4: memref<128x128xbf16, #tpu.memory_space<vmem>>, %arg5: memref<1x128xf32, #tpu.memory_space<vmem>>, %arg6: memref<128x128xf32, #tpu.memory_space<vmem>>, %arg7: memref<1x128xf32, #tpu.memory_space<vmem>>, %arg8: memref<8x128xf32, #tpu.memory_space<vmem>>) attributes {dimension_semantics = [#tpu.dimension_semantics<parallel>], iteration_bounds = array<i64: 1>, scalar_prefetch = 0 : i64, scratch_operands = 0 : i64, tpu.core_type = #tpu.core_type<tc>, window_params = [{transform_indices = @transform_0, window_bounds = array<i64: 8, 128>}, {pipeline_mode = #tpu.pipeline_mode<synchronous>, transform_indices = @transform_1, window_bounds = array<i64: 128, 128>}, {pipeline_mode = #tpu.pipeline_mode<synchronous>, transform_indices = @transform_2, window_bounds = array<i64: 1, 128>}, {pipeline_mode = #tpu.pipeline_mode<synchronous>, transform_indices = @transform_3, window_bounds = array<i64: 128, 128>}, {pipeline_mode = #tpu.pipeline_mode<synchronous>, transform_indices = @transform_4, window_bounds = array<i64: 1, 128>}, {pipeline_mode = #tpu.pipeline_mode<synchronous>, transform_indices = @transform_5, window_bounds = array<i64: 128, 128>}, {pipeline_mode = #tpu.pipeline_mode<synchronous>, transform_indices = @transform_6, window_bounds = array<i64: 1, 128>}, {transform_indices = @transform_7, window_bounds = array<i64: 8, 128>}]} {
    %c0 = arith.constant 0 : index
    %c0_0 = arith.constant 0 : index
    %0 = vector.load %arg1[%c0, %c0_0] : memref<8x128xbf16, #tpu.memory_space<vmem>>, vector<8x128xbf16>
    %c0_1 = arith.constant 0 : index
    %c0_2 = arith.constant 0 : index
    %1 = vector.load %arg2[%c0_1, %c0_2] : memref<128x128xbf16, #tpu.memory_space<vmem>>, vector<128x128xbf16>
    %cst = arith.constant dense<0.000000e+00> : vector<8x128xf32>
    %2 = tpu.matmul %0, %1, %cst {dimension_numbers = #tpu.dot_dimension_numbers<[1], [0], [0], [1], [0, 0, 1, 1], [], []>} : vector<8x128xbf16>, vector<128x128xbf16>, vector<8x128xf32> -> vector<8x128xf32>
    %c0_3 = arith.constant 0 : index
    %c0_4 = arith.constant 0 : index
    %3 = vector.load %arg3[%c0_3, %c0_4] : memref<1x128xf32, #tpu.memory_space<vmem>>, vector<1x128xf32>
    %4 = vector.broadcast %3 : vector<1x128xf32> to vector<8x128xf32>
    %5 = arith.addf %2, %4 : vector<8x128xf32>
    %cst_5 = arith.constant 0.00999999977 : f32
    %6 = vector.broadcast %cst_5 : f32 to vector<8x128xf32>
    %7 = arith.mulf %6, %5 : vector<8x128xf32>
    %8 = arith.maximumf %5, %7 : vector<8x128xf32>
    %9 = arith.truncf %8 : vector<8x128xf32> to vector<8x128xbf16>
    %c0_6 = arith.constant 0 : index
    %c0_7 = arith.constant 0 : index
    %10 = vector.load %arg4[%c0_6, %c0_7] : memref<128x128xbf16, #tpu.memory_space<vmem>>, vector<128x128xbf16>
    %cst_8 = arith.constant dense<0.000000e+00> : vector<8x128xf32>
    %11 = tpu.matmul %9, %10, %cst_8 {dimension_numbers = #tpu.dot_dimension_numbers<[1], [0], [0], [1], [0, 0, 1, 1], [], []>} : vector<8x128xbf16>, vector<128x128xbf16>, vector<8x128xf32> -> vector<8x128xf32>
    %c0_9 = arith.constant 0 : index
    %c0_10 = arith.constant 0 : index
    %12 = vector.load %arg5[%c0_9, %c0_10] : memref<1x128xf32, #tpu.memory_space<vmem>>, vector<1x128xf32>
    %13 = vector.broadcast %12 : vector<1x128xf32> to vector<8x128xf32>
    %14 = arith.addf %11, %13 : vector<8x128xf32>
    %cst_11 = arith.constant 0.000000e+00 : f32
    %15 = vector.broadcast %cst_11 : f32 to vector<8x128xf32>
    %16 = arith.subf %15, %14 : vector<8x128xf32>
    %17 = math.exp %16 : vector<8x128xf32>
    %cst_12 = arith.constant 1.000000e+00 : f32
    %18 = vector.broadcast %cst_12 : f32 to vector<8x128xf32>
    %19 = arith.addf %18, %17 : vector<8x128xf32>
    %20 = tpu.reciprocal %19 {approx = true} : vector<8x128xf32> -> vector<8x128xf32>
    %c0_13 = arith.constant 0 : index
    %c0_14 = arith.constant 0 : index
    %21 = vector.load %arg6[%c0_13, %c0_14] : memref<128x128xf32, #tpu.memory_space<vmem>>, vector<128x128xf32>
    %cst_15 = arith.constant dense<0.000000e+00> : vector<8x128xf32>
    %22 = tpu.matmul %20, %21, %cst_15 {dimension_numbers = #tpu.dot_dimension_numbers<[1], [0], [0], [1], [0, 0, 1, 1], [], []>} : vector<8x128xf32>, vector<128x128xf32>, vector<8x128xf32> -> vector<8x128xf32>
    %23 = arith.mulf %20, %20 : vector<8x128xf32>
    %cst_16 = arith.constant dense<0.000000e+00> : vector<8xf32>
    %24 = vector.multi_reduction <add>, %23, %cst_16 [1] : vector<8x128xf32> to vector<8xf32>
    %25 = vector.shape_cast %24 : vector<8xf32> to vector<8x1xf32>
    %c0_17 = arith.constant 0 : index
    %c0_18 = arith.constant 0 : index
    %26 = vector.load %arg7[%c0_17, %c0_18] : memref<1x128xf32, #tpu.memory_space<vmem>>, vector<1x128xf32>
    %27 = vector.broadcast %25 : vector<8x1xf32> to vector<8x128xf32>
    %28 = vector.broadcast %26 : vector<1x128xf32> to vector<8x128xf32>
    %29 = arith.addf %27, %28 : vector<8x128xf32>
    %cst_19 = arith.constant 2.000000e+00 : f32
    %30 = vector.broadcast %cst_19 : f32 to vector<8x128xf32>
    %31 = arith.mulf %30, %22 : vector<8x128xf32>
    %32 = arith.subf %29, %31 : vector<8x128xf32>
    %cst_20 = arith.constant 0.000000e+00 : f32
    %33 = vector.broadcast %cst_20 : f32 to vector<8x128xf32>
    %34 = arith.maximumf %32, %33 : vector<8x128xf32>
    %35 = math.sqrt %34 : vector<8x128xf32>
    %cst_21 = arith.constant 0.000000e+00 : f32
    %36 = vector.broadcast %cst_21 : f32 to vector<8x128xf32>
    %37 = arith.subf %36, %35 : vector<8x128xf32>
    %c0_22 = arith.constant 0 : index
    %c0_23 = arith.constant 0 : index
    %38 = vector.load %arg8[%c0_22, %c0_23] : memref<8x128xf32, #tpu.memory_space<vmem>>, vector<8x128xf32>
    tpu.vector_store %arg8[%c0_22, %c0_23], %37 {strides = array<i32>} : memref<8x128xf32, #tpu.memory_space<vmem>>, vector<8x128xf32>,
    return
  }
  func.func @transform_0(%arg0: i32) -> (i32, i32) {
    %c0_i32 = arith.constant 0 : i32
    %c0_i32_0 = arith.constant 0 : i32
    return %arg0, %c0_i32 : i32, i32
  }
  func.func @transform_1(%arg0: i32) -> (i32, i32) {
    %c0_i32 = arith.constant 0 : i32
    %c0_i32_0 = arith.constant 0 : i32
    %c0_i32_1 = arith.constant 0 : i32
    return %c0_i32, %c0_i32_0 : i32, i32
  }
  func.func @transform_2(%arg0: i32) -> (i32, i32) {
    %c0_i32 = arith.constant 0 : i32
    %c0_i32_0 = arith.constant 0 : i32
    %c0_i32_1 = arith.constant 0 : i32
    return %c0_i32, %c0_i32_0 : i32, i32
  }
  func.func @transform_3(%arg0: i32) -> (i32, i32) {
    %c0_i32 = arith.constant 0 : i32
    %c0_i32_0 = arith.constant 0 : i32
    %c0_i32_1 = arith.constant 0 : i32
    return %c0_i32, %c0_i32_0 : i32, i32
  }
  func.func @transform_4(%arg0: i32) -> (i32, i32) {
    %c0_i32 = arith.constant 0 : i32
    %c0_i32_0 = arith.constant 0 : i32
    %c0_i32_1 = arith.constant 0 : i32
    return %c0_i32, %c0_i32_0 : i32, i32
  }
  func.func @transform_5(%arg0: i32) -> (i32, i32) {
    %c0_i32 = arith.constant 0 : i32
    %c0_i32_0 = arith.constant 0 : i32
    %c0_i32_1 = arith.constant 0 : i32
    return %c0_i32, %c0_i32_0 : i32, i32
  }
  func.func @transform_6(%arg0: i32) -> (i32, i32) {
    %c0_i32 = arith.constant 0 : i32
    %c0_i32_0 = arith.constant 0 : i32
    %c0_i32_1 = arith.constant 0 : i32
    return %c0_i32, %c0_i32_0 : i32, i32
  }
  func.func @transform_7(%arg0: i32) -> (i32, i32) {
    %c0_i32 = arith.constant 0 : i32
    %c0_i32_0 = arith.constant 0 : i32
    return %arg0, %c0_i32 : i32, i32
  }
}

</mosaic_0001>

<llo_original>
// kernel: wrapper_ordinal_net_forward.5
$region0: #{wrapper_ordinal_net_forward.5}
  #allocation0 [shape = 'u32[]', space=smem, size = 0x4, offset = 0x4, fixed_abs, tag = 'smem constant byte address 0x4 - core index']
  #allocation1 [shape = 'u32[144,128]{1,0:T(1,128)}', space=vmem, size = 0x12000, scoped, tag = 'internal scratch']
  %s0 = inlined_call_operand.vmem [shape: bf16[8,128], index: 0, kind: input, shape index: {}]
  %s1 = inlined_call_operand.vmem [shape: bf16[128,128], index: 1, kind: input, shape index: {}]
  %s2 = inlined_call_operand.vmem [shape: f32[1,128], index: 2, kind: input, shape index: {}]
  %s3 = inlined_call_operand.vmem [shape: bf16[128,128], index: 3, kind: input, shape index: {}]
  %s4 = inlined_call_operand.vmem [shape: f32[1,128], index: 4, kind: input, shape index: {}]
  %s5 = inlined_call_operand.vmem [shape: f32[128,128], index: 5, kind: input, shape index: {}]
  %s6 = inlined_call_operand.vmem [shape: f32[1,128], index: 6, kind: input, shape index: {}]
  %s7 = inlined_call_operand.vmem [shape: f32[8,128], index: 7, kind: output, shape index: {}]
  %s8 = sld [smem:[#allocation0]]
  $region38: #{wrapper_ordinal_net_forward.5} parent=0
    _
  %s10 = ssub.s32 1, %s8
  %s11 = scalar_select 0, %s10, %s8
  // Predicated region
  $region2: #{wrapper_ordinal_net_forward.5} parent=0 // pred_check
    _
  $region3: #{wrapper_ordinal_net_forward.5} parent=0 // pred_check_branch
    %13 = sbr.rel (0) target = $region5
  $region4: #{wrapper_ordinal_net_forward.5} parent=0 // pred_region
    _
  $region5: #{wrapper_ordinal_net_forward.5} parent=0 // pred_fallthru
    _
  // Predicated region
  $region6: #{wrapper_ordinal_net_forward.5} parent=0 // pred_check
    _
  $region7: #{wrapper_ordinal_net_forward.5} parent=0 // pred_check_branch
    %15 = sbr.rel (0) target = $region9
  $region8: #{wrapper_ordinal_net_forward.5} parent=0 // pred_region
    _
  $region9: #{wrapper_ordinal_net_forward.5} parent=0 // pred_fallthru
    _
  // Predicated region
  $region10: #{wrapper_ordinal_net_forward.5} parent=0 // pred_check
    _
  $region11: #{wrapper_ordinal_net_forward.5} parent=0 // pred_check_branch
    %17 = sbr.rel (0) target = $region13
  $region12: #{wrapper_ordinal_net_forward.5} parent=0 // pred_region
    _
  $region13: #{wrapper_ordinal_net_forward.5} parent=0 // pred_fallthru
    _
  // Predicated region
  $region14: #{wrapper_ordinal_net_forward.5} parent=0 // pred_check
    _
  $region15: #{wrapper_ordinal_net_forward.5} parent=0 // pred_check_branch
    %19 = sbr.rel (0) target = $region17
  $region16: #{wrapper_ordinal_net_forward.5} parent=0 // pred_region
    _
  $region17: #{wrapper_ordinal_net_forward.5} parent=0 // pred_fallthru
    _
  // Predicated region
  $region18: #{wrapper_ordinal_net_forward.5} parent=0 // pred_check
    _
  $region19: #{wrapper_ordinal_net_forward.5} parent=0 // pred_check_branch
    %21 = sbr.rel (0) target = $region21
  $region20: #{wrapper_ordinal_net_forward.5} parent=0 // pred_region
    _
  $region21: #{wrapper_ordinal_net_forward.5} parent=0 // pred_fallthru
    _
  // Predicated region
  $region22: #{wrapper_ordinal_net_forward.5} parent=0 // pred_check
    _
  $region23: #{wrapper_ordinal_net_forward.5} parent=0 // pred_check_branch
    %23 = sbr.rel (0) target = $region25
  $region24: #{wrapper_ordinal_net_forward.5} parent=0 // pred_region
    _
  $region25: #{wrapper_ordinal_net_forward.5} parent=0 // pred_fallthru
    _
  // Predicated region
  $region26: #{wrapper_ordinal_net_forward.5} parent=0 // pred_check
    _
  $region27: #{wrapper_ordinal_net_forward.5} parent=0 // pred_check_branch
    %25 = sbr.rel (0) target = $region29
  $region28: #{wrapper_ordinal_net_forward.5} parent=0 // pred_region
    _
  $region29: #{wrapper_ordinal_net_forward.5} parent=0 // pred_fallthru
    _
  %v27 = vld [vmem:[%s0] sm:$0xf]
  %v28 = vld [vmem:[%s1] sm:$0xf]
  %v29 = vld [vmem:[%s1 + $0x4] sm:$0xf]
  %v30 = vld [vmem:[%s1 + $0x8] sm:$0xf]
  %v31 = vld [vmem:[%s1 + $0xc] sm:$0xf]
  %v32 = vld [vmem:[%s1 + $0x10] sm:$0xf]
  %v33 = vld [vmem:[%s1 + $0x14] sm:$0xf]
  %v34 = vld [vmem:[%s1 + $0x18] sm:$0xf]
  %v35 = vld [vmem:[%s1 + $0x1c] sm:$0xf]
  %v36 = vld [vmem:[%s1 + $0x20] sm:$0xf]
  %v37 = vld [vmem:[%s1 + $0x24] sm:$0xf]
  %v38 = vld [vmem:[%s1 + $0x28] sm:$0xf]
  %v39 = vld [vmem:[%s1 + $0x2c] sm:$0xf]
  %v40 = vld [vmem:[%s1 + $0x30] sm:$0xf]
  %v41 = vld [vmem:[%s1 + $0x34] sm:$0xf]
  %v42 = vld [vmem:[%s1 + $0x38] sm:$0xf]
  %v43 = vld [vmem:[%s1 + $0x3c] sm:$0xf]
  %v44 = vld [vmem:[%s2] sm:$0x1]
  %v46 = vlaneseq
  %v47 = vshrl.u32 %v46, 7
  %v48 = vsub.s32 0, %v47
  %v49 = vrot.slane %v44, %v48
  %v67 = vunpack.c.l.b16 %v28
  %v68 = vunpack.c.l.b16 %v29
  %v69 = vunpack.c.l.b16 %v30
  %v70 = vunpack.c.l.b16 %v31
  %v71 = vunpack.c.l.b16 %v32
  %v72 = vunpack.c.l.b16 %v33
  %v73 = vunpack.c.l.b16 %v34
  %v74 = vunpack.c.l.b16 %v35
  %v75 = vunpack.c.l.b16 %v36
  %v76 = vunpack.c.l.b16 %v37
  %v77 = vunpack.c.l.b16 %v38
  %v78 = vunpack.c.l.b16 %v39
  %v79 = vunpack.c.l.b16 %v40
  %v80 = vunpack.c.l.b16 %v41
  %v81 = vunpack.c.l.b16 %v42
  %v82 = vunpack.c.l.b16 %v43
  %v83 = vpack.c.b16 %v68, %v67
  %v84 = vpack.c.b16 %v70, %v69
  %v85 = vpack.c.b16 %v72, %v71
  %v86 = vpack.c.b16 %v74, %v73
  %v87 = vpack.c.b16 %v76, %v75
  %v88 = vpack.c.b16 %v78, %v77
  %v89 = vpack.c.b16 %v80, %v79
  %v90 = vpack.c.b16 %v82, %v81
  %99 = vmatprep.subr.bf16.mxu0 0
  %100 = vmatpush1.bf16.msra.mxu0 %v90
  %101 = vmatprep.subr.bf16.mxu0 0
  %102 = vmatpush1.bf16.msra.mxu0 %v89
  %103 = vmatprep.subr.bf16.mxu0 0
  %104 = vmatpush1.bf16.msra.mxu0 %v88
  %105 = vmatprep.subr.bf16.mxu0 0
  %106 = vmatpush1.bf16.msra.mxu0 %v87
  %107 = vmatprep.subr.bf16.mxu0 0
  %108 = vmatpush1.bf16.msra.mxu0 %v86
  %109 = vmatprep.subr.bf16.mxu0 0
  %110 = vmatpush1.bf16.msra.mxu0 %v85
  %111 = vmatprep.subr.bf16.mxu0 0
  %112 = vmatpush1.bf16.msra.mxu0 %v84
  %113 = vmatprep.subr.bf16.mxu0 0
  %114 = vmatpush1.bf16.msra.mxu0 %v83
  %115 = vmatprep.subr.bf16.mxu0 0
  %116 = vmatpush2.bf16.msra.mxu0 0
  %117 = vmatprep.subr.bf16.mxu0 0
  %118 = vmatpush2.bf16.msra.mxu0 0
  %119 = vmatprep.subr.bf16.mxu0 0
  %120 = vmatpush2.bf16.msra.mxu0 0
  %121 = vmatprep.subr.bf16.mxu0 0
  %122 = vmatpush2.bf16.msra.mxu0 0
  %123 = vmatprep.subr.bf16.mxu0 0
  %124 = vmatpush2.bf16.msra.mxu0 0
  %125 = vmatprep.subr.bf16.mxu0 0
  %126 = vmatpush2.bf16.msra.mxu0 0
  %127 = vmatprep.subr.bf16.mxu0 0
  %128 = vmatpush2.bf16.msra.mxu0 0
  %129 = vmatprep.subr.bf16.mxu0 0
  %130 = vmatpush2.bf16.msra.mxu0 0
  %131 = vmatprep.mubr.bf16.mxu0 0
  %132 = vmatmul.mubr.bf16.gmra.mxu0 %v27
  %v133 = vpop.f32.mrf.mxu0
  %v134 = vadd.f32 %v49, %v133
  %v135 = vpop.f32.mrf.mxu0
  %v136 = vpop.f32.mrf.mxu0
  %v137 = vpop.f32.mrf.mxu0
  %138 = vdwg.mxu0
  %v139 = vmul.f32 %v134, 0.01
  %v140 = vmax.f32 %v134, %v139
  %v141 = vpack.c.bf16 %v140, %v140
  %v142 = vld [vmem:[%s3] sm:$0xf]
  %v143 = vld [vmem:[%s3 + $0x4] sm:$0xf]
  %v144 = vld [vmem:[%s3 + $0x8] sm:$0xf]
  %v145 = vld [vmem:[%s3 + $0xc] sm:$0xf]
  %v146 = vld [vmem:[%s3 + $0x10] sm:$0xf]
  %v147 = vld [vmem:[%s3 + $0x14] sm:$0xf]
  %v148 = vld [vmem:[%s3 + $0x18] sm:$0xf]
  %v149 = vld [vmem:[%s3 + $0x1c] sm:$0xf]
  %v150 = vld [vmem:[%s3 + $0x20] sm:$0xf]
  %v151 = vld [vmem:[%s3 + $0x24] sm:$0xf]
  %v152 = vld [vmem:[%s3 + $0x28] sm:$0xf]
  %v153 = vld [vmem:[%s3 + $0x2c] sm:$0xf]
  %v154 = vld [vmem:[%s3 + $0x30] sm:$0xf]
  %v155 = vld [vmem:[%s3 + $0x34] sm:$0xf]
  %v156 = vld [vmem:[%s3 + $0x38] sm:$0xf]
  %v157 = vld [vmem:[%s3 + $0x3c] sm:$0xf]
  %v158 = vld [vmem:[%s4] sm:$0x1]
  %v160 = vlaneseq
  %v161 = vshrl.u32 %v160, 7
  %v162 = vsub.s32 0, %v161
  %v163 = vrot.slane %v158, %v162
  %v181 = vunpack.c.l.b16 %v142
  %v182 = vunpack.c.l.b16 %v143
  %v183 = vunpack.c.l.b16 %v144
  %v184 = vunpack.c.l.b16 %v145
  %v185 = vunpack.c.l.b16 %v146
  %v186 = vunpack.c.l.b16 %v147
  %v187 = vunpack.c.l.b16 %v148
  %v188 = vunpack.c.l.b16 %v149
  %v189 = vunpack.c.l.b16 %v150
  %v190 = vunpack.c.l.b16 %v151
  %v191 = vunpack.c.l.b16 %v152
  %v192 = vunpack.c.l.b16 %v153
  %v193 = vunpack.c.l.b16 %v154
  %v194 = vunpack.c.l.b16 %v155
  %v195 = vunpack.c.l.b16 %v156
  %v196 = vunpack.c.l.b16 %v157
  %v197 = vpack.c.b16 %v182, %v181
  %v198 = vpack.c.b16 %v184, %v183
  %v199 = vpack.c.b16 %v186, %v185
  %v200 = vpack.c.b16 %v188, %v187
  %v201 = vpack.c.b16 %v190, %v189
  %v202 = vpack.c.b16 %v192, %v191
  %v203 = vpack.c.b16 %v194, %v193
  %v204 = vpack.c.b16 %v196, %v195
  %213 = vmatprep.subr.bf16.mxu0 0
  %214 = vmatpush1.bf16.msra.mxu0 %v204
  %215 = vmatprep.subr.bf16.mxu0 0
  %216 = vmatpush1.bf16.msra.mxu0 %v203
  %217 = vmatprep.subr.bf16.mxu0 0
  %218 = vmatpush1.bf16.msra.mxu0 %v202
  %219 = vmatprep.subr.bf16.mxu0 0
  %220 = vmatpush1.bf16.msra.mxu0 %v201
  %221 = vmatprep.subr.bf16.mxu0 0
  %222 = vmatpush1.bf16.msra.mxu0 %v200
  %223 = vmatprep.subr.bf16.mxu0 0
  %224 = vmatpush1.bf16.msra.mxu0 %v199
  %225 = vmatprep.subr.bf16.mxu0 0
  %226 = vmatpush1.bf16.msra.mxu0 %v198
  %227 = vmatprep.subr.bf16.mxu0 0
  %228 = vmatpush1.bf16.msra.mxu0 %v197
  %229 = vmatprep.subr.bf16.mxu0 0
  %230 = vmatpush2.bf16.msra.mxu0 0
  %231 = vmatprep.subr.bf16.mxu0 0
  %232 = vmatpush2.bf16.msra.mxu0 0
  %233 = vmatprep.subr.bf16.mxu0 0
  %234 = vmatpush2.bf16.msra.mxu0 0
  %235 = vmatprep.subr.bf16.mxu0 0
  %236 = vmatpush2.bf16.msra.mxu0 0
  %237 = vmatprep.subr.bf16.mxu0 0
  %238 = vmatpush2.bf16.msra.mxu0 0
  %239 = vmatprep.subr.bf16.mxu0 0
  %240 = vmatpush2.bf16.msra.mxu0 0
  %241 = vmatprep.subr.bf16.mxu0 0
  %242 = vmatpush2.bf16.msra.mxu0 0
  %243 = vmatprep.subr.bf16.mxu0 0
  %244 = vmatpush2.bf16.msra.mxu0 0
  %245 = vmatprep.mubr.bf16.mxu0 0
  %246 = vmatmul.mubr.bf16.gmra.mxu0 %v141
  %v247 = vpop.f32.mrf.mxu0
  %v248 = vadd.f32 %v163, %v247
  %v249 = vpop.f32.mrf.mxu0
  %v250 = vpop.f32.mrf.mxu0
  %v251 = vpop.f32.mrf.mxu0
  %252 = vdwg.mxu0
  %v253 = vsub.f32 0.0, %v248
  %v254 = vmul.f32 %v253, 1.442695
  %v255 = vpow.pop %v254
  %v256 = vadd.f32 %v255, 1.0
  %v257 = vrcp.pop %v256
  %v258 = vld [vmem:[%s5] sm:$0xff]
  %v259 = vld [vmem:[%s5 + $0x8] sm:$0xff]
  %v260 = vld [vmem:[%s5 + $0x10] sm:$0xff]
  %v261 = vld [vmem:[%s5 + $0x18] sm:$0xff]
  %v262 = vld [vmem:[%s5 + $0x20] sm:$0xff]
  %v263 = vld [vmem:[%s5 + $0x28] sm:$0xff]
  %v264 = vld [vmem:[%s5 + $0x30] sm:$0xff]
  %v265 = vld [vmem:[%s5 + $0x38] sm:$0xff]
  %v266 = vld [vmem:[%s5 + $0x40] sm:$0xff]
  %v267 = vld [vmem:[%s5 + $0x48] sm:$0xff]
  %v268 = vld [vmem:[%s5 + $0x50] sm:$0xff]
  %v269 = vld [vmem:[%s5 + $0x58] sm:$0xff]
  %v270 = vld [vmem:[%s5 + $0x60] sm:$0xff]
  %v271 = vld [vmem:[%s5 + $0x68] sm:$0xff]
  %v272 = vld [vmem:[%s5 + $0x70] sm:$0xff]
  %v273 = vld [vmem:[%s5 + $0x78] sm:$0xff]
  %274 = vmatprep.subr.mxu0 0.0
  %275 = vmatpush1.msra.mxu0 %v273
  %276 = vmatprep.subr.mxu0 0.0
  %277 = vmatpush1.msra.mxu0 %v272
  %278 = vmatprep.subr.mxu0 0.0
  %279 = vmatpush1.msra.mxu0 %v271
  %280 = vmatprep.subr.mxu0 0.0
  %281 = vmatpush1.msra.mxu0 %v270
  %282 = vmatprep.subr.mxu0 0.0
  %283 = vmatpush1.msra.mxu0 %v269
  %284 = vmatprep.subr.mxu0 0.0
  %285 = vmatpush1.msra.mxu0 %v268
  %286 = vmatprep.subr.mxu0 0.0
  %287 = vmatpush1.msra.mxu0 %v267
  %288 = vmatprep.subr.mxu0 0.0
  %289 = vmatpush1.msra.mxu0 %v266
  %290 = vmatprep.subr.mxu0 0.0
  %291 = vmatpush1.msra.mxu0 %v265
  %292 = vmatprep.subr.mxu0 0.0
  %293 = vmatpush1.msra.mxu0 %v264
  %294 = vmatprep.subr.mxu0 0.0
  %295 = vmatpush1.msra.mxu0 %v263
  %296 = vmatprep.subr.mxu0 0.0
  %297 = vmatpush1.msra.mxu0 %v262
  %298 = vmatprep.subr.mxu0 0.0
  %299 = vmatpush1.msra.mxu0 %v261
  %300 = vmatprep.subr.mxu0 0.0
  %301 = vmatpush1.msra.mxu0 %v260
  %302 = vmatprep.subr.mxu0 0.0
  %303 = vmatpush1.msra.mxu0 %v259
  %304 = vmatprep.subr.mxu0 0.0
  %305 = vmatpush1.msra.mxu0 %v258
  %306 = vmatprep.subr.mxu0 0.0
  %307 = vmatpush2.msra.mxu0 0.0
  %308 = vmatprep.subr.mxu0 0.0
  %309 = vmatpush2.msra.mxu0 0.0
  %310 = vmatprep.subr.mxu0 0.0
  %311 = vmatpush2.msra.mxu0 0.0
  %312 = vmatprep.subr.mxu0 0.0
  %313 = vmatpush2.msra.mxu0 0.0
  %314 = vmatprep.subr.mxu0 0.0
  %315 = vmatpush2.msra.mxu0 0.0
  %316 = vmatprep.subr.mxu0 0.0
  %317 = vmatpush2.msra.mxu0 0.0
  %318 = vmatprep.subr.mxu0 0.0
  %319 = vmatpush2.msra.mxu0 0.0
  %320 = vmatprep.subr.mxu0 0.0
  %321 = vmatpush2.msra.mxu0 0.0
  %322 = vmatprep.subr.mxu0 0.0
  %323 = vmatpush2.msra.mxu0 0.0
  %324 = vmatprep.subr.mxu0 0.0
  %325 = vmatpush2.msra.mxu0 0.0
  %326 = vmatprep.subr.mxu0 0.0
  %327 = vmatpush2.msra.mxu0 0.0
  %328 = vmatprep.subr.mxu0 0.0
  %329 = vmatpush2.msra.mxu0 0.0
  %330 = vmatprep.subr.mxu0 0.0
  %331 = vmatpush2.msra.mxu0 0.0
  %332 = vmatprep.subr.mxu0 0.0
  %333 = vmatpush2.msra.mxu0 0.0
  %334 = vmatprep.subr.mxu0 0.0
  %335 = vmatpush2.msra.mxu0 0.0
  %336 = vmatprep.subr.mxu0 0.0
  %337 = vmatpush2.msra.mxu0 0.0
  %338 = vmatprep.mubr.f32.mxu0 0.0
  %339 = vmatmul.mubr.f32.gmra.mxu0 %v257
  %v340 = vpop.f32.mrf.mxu0
  %v341 = vadd.f32 0.0, %v340
  %v342 = vpop.f32.mrf.mxu0
  %343 = vdwg.mxu0
  %v344 = vmul.f32 %v257, %v257
  %345 = vadd.xlane.f32.xlu0 %v344
  %v346 = vpop.xlane.xlu0 %345
  %v347 = vld [vmem:[%s6] sm:$0x1]
  %v349 = vlaneseq
  %v350 = vshrl.u32 %v349, 7
  %v351 = vsub.s32 0, %v350
  %v352 = vrot.slane %v347, %v351
  %v354 = vadd.f32 %v346, %v352
  %v355 = vmul.f32 %v341, 2.0
  %v356 = vsub.f32 %v354, %v355
  %v357 = vmax.f32 %v356, 0.0
  %v358 = vrsqrt.pop %v357
  %v359 = vmul.f32 %v357, %v358
  %vm360 = vcmp.eq.f32.partialorder %v357, inf
  %v361 = vsel %vm360, %v357, %v359
  %vm362 = vcmp.eq.f32.partialorder %v357, 0.0
  %v363 = vand.u32 %v357, 2147483648
  %v364 = vsel %vm362, %v363, %v361
  %v365 = vsub.f32 0.0, %v364
  %366 = vst [vmem:[%s7] sm:$0xff] %v365
  // Predicated region
  $region30: #{wrapper_ordinal_net_forward.5} parent=0 // pred_check
    _
  $region31: #{wrapper_ordinal_net_forward.5} parent=0 // pred_check_branch
    %368 = sbr.rel (0) target = $region33
  $region32: #{wrapper_ordinal_net_forward.5} parent=0 // pred_region
    _
  $region33: #{wrapper_ordinal_net_forward.5} parent=0 // pred_fallthru
    _
  // Predicated region
  $region34: #{wrapper_ordinal_net_forward.5} parent=0 // pred_check
    _
  $region35: #{wrapper_ordinal_net_forward.5} parent=0 // pred_check_branch
    %370 = sbr.rel (0) target = $region37
  $region36: #{wrapper_ordinal_net_forward.5} parent=0 // pred_region
    _
  $region37: #{wrapper_ordinal_net_forward.5} parent=0 // pred_fallthru
    _

// kernel: wrapper_ordinal_net_forward.3
$region0: #{wrapper_ordinal_net_forward.3}
  #allocation0 [shape = 'u32[]', space=smem, size = 0x4, offset = 0x4, fixed_abs, tag = 'smem constant byte address 0x4 - core index']
  #allocation1 [shape = 'u32[144,128]{1,0:T(1,128)}', space=vmem, size = 0x12000, scoped, tag = 'internal scratch']
  %s0 = inlined_call_operand.vmem [shape: f32[2,4,8,8,2], index: 0, kind: input, shape index: {}]
  %s1 = inlined_call_operand.vmem [shape: f32[27,128], index: 1, kind: input, shape index: {}]
  %s2 = inlined_call_operand.vmem [shape: f32[1,128], index: 2, kind: input, shape index: {}]
  %s3 = inlined_call_operand.vmem [shape: bf16[2,3,3,3,128], index: 3, kind: output, shape index: {}]
  %s4 = sld [smem:[#allocation0]]
  $region45: #{wrapper_ordinal_net_forward.3} parent=0
    _
  %s6 = ssub.s32 1, %s4
  %s7 = scalar_select 0, %s6, %s4
  loop: start=0, step=1, limit=4
  $region2: #{wrapper_ordinal_net_forward.3} parent=0 // loop_pre_header
    _
  $region3: #{wrapper_ordinal_net_forward.3} parent=0 // loop_header
    %s9 = sphi 0, %s13
    %p10 = scmp.ge.s32.totalorder %s9, 4
    %s19 = sphi 0, %s21
    %s22 = sphi 0, %s19
    %s23 = sphi 0, %s22
    %s39 = sphi 0, %s23
    %s43 = sphi 0, %s43
    %s45 = sphi 0, %s43
    %s46 = sphi 0, %s45
    %s60 = sphi 0, %s46
    %s64 = sphi 0, %s64
    %s66 = sphi 0, %s64
    %s67 = sphi 0, %s66
    %s81 = sphi 0, %s67
    %s87 = sphi 0, %s89
    %s90 = sphi 0, %s87
    %s91 = sphi 0, %s90
    %s107 = sphi 0, %s91
  $region4: #{wrapper_ordinal_net_forward.3} parent=0 // loop_header_branch
    %12 = sbr.rel (%p10) target = $region8
  $region5: #{wrapper_ordinal_net_forward.3} parent=0 // loop_body
    %s14 = ssub.s32 %s9, 1
    %s15 = ssub.s32 %s9, 2
    %s16 = sadd.s32 %s9, 1
    %s17 = ssub.s32 %s9, %s16
    %p18 = scmp.eq.s32.totalorder %s17, 0
    %s20 = sadd.s32 %s19, 1
    %s21 = scalar_select %p18, %s19, %s20
    %p24 = pneg %p18
    %p25 = scmp.eq.s32.totalorder %s9, 1
    %p26 = por %p24, %p25
    %p27 = scmp.ne.s32.totalorder %s19, %s22
    %p28 = scmp.eq.s32.totalorder %s9, 0
    %p29 = por %p27, %p28
    %p30 = scmp.ne.s32.totalorder %s19, %s22
    %p31 = scmp.eq.s32.totalorder %s14, 1
    %p32 = por %p30, %p31
    %p33 = scmp.ne.s32.totalorder %s22, %s23
    %p34 = scmp.eq.s32.totalorder %s14, 0
    %p35 = por %p33, %p34
    %p36 = scmp.ne.s32.totalorder %s22, %s23
    %p37 = scmp.eq.s32.totalorder %s15, 1
    %p38 = por %p36, %p37
    %p40 = scmp.ne.s32.totalorder %s23, %s39
    %p41 = scmp.eq.s32.totalorder %s15, 0
    %p42 = por %p40, %p41
    %s44 = sadd.s32 %s43, 1
    %p47 = scmp.eq.s32.totalorder %s9, 1
    %p48 = scmp.ne.s32.totalorder %s43, %s45
    %p49 = scmp.eq.s32.totalorder %s9, 0
    %p50 = por %p48, %p49
    %p51 = scmp.ne.s32.totalorder %s43, %s45
    %p52 = scmp.eq.s32.totalorder %s14, 1
    %p53 = por %p51, %p52
    %p54 = scmp.ne.s32.totalorder %s45, %s46
    %p55 = scmp.eq.s32.totalorder %s14, 0
    %p56 = por %p54, %p55
    %p57 = scmp.ne.s32.totalorder %s45, %s46
    %p58 = scmp.eq.s32.totalorder %s15, 1
    %p59 = por %p57, %p58
    %p61 = scmp.ne.s32.totalorder %s46, %s60
    %p62 = scmp.eq.s32.totalorder %s15, 0
    %p63 = por %p61, %p62
    %s65 = sadd.s32 %s64, 1
    %p68 = scmp.eq.s32.totalorder %s9, 1
    %p69 = scmp.ne.s32.totalorder %s64, %s66
    %p70 = scmp.eq.s32.totalorder %s9, 0
    %p71 = por %p69, %p70
    %p72 = scmp.ne.s32.totalorder %s64, %s66
    %p73 = scmp.eq.s32.totalorder %s14, 1
    %p74 = por %p72, %p73
    %p75 = scmp.ne.s32.totalorder %s66, %s67
    %p76 = scmp.eq.s32.totalorder %s14, 0
    %p77 = por %p75, %p76
    %p78 = scmp.ne.s32.totalorder %s66, %s67
    %p79 = scmp.eq.s32.totalorder %s15, 1
    %p80 = por %p78, %p79
    %p82 = scmp.ne.s32.totalorder %s67, %s81
    %p83 = scmp.eq.s32.totalorder %s15, 0
    %p84 = por %p82, %p83
    %s85 = ssub.s32 %s9, %s16
    %p86 = scmp.eq.s32.totalorder %s85, 0
    %s88 = sadd.s32 %s87, 1
    %s89 = scalar_select %p86, %s87, %s88
    %p92 = pneg %p86
    %p93 = scmp.eq.s32.totalorder %s9, 1
    %p94 = por %p92, %p93
    %p95 = scmp.ne.s32.totalorder %s87, %s90
    %p96 = scmp.eq.s32.totalorder %s9, 0
    %p97 = por %p95, %p96
    %p98 = scmp.ne.s32.totalorder %s87, %s90
    %p99 = scmp.eq.s32.totalorder %s14, 1
    %p100 = por %p98, %p99
    %p101 = scmp.ne.s32.totalorder %s90, %s91
    %p102 = scmp.eq.s32.totalorder %s14, 0
    %p103 = por %p101, %p102
    %p104 = scmp.ne.s32.totalorder %s90, %s91
    %p105 = scmp.eq.s32.totalorder %s15, 1
    %p106 = por %p104, %p105
    %p108 = scmp.ne.s32.totalorder %s91, %s107
    %p109 = scmp.eq.s32.totalorder %s15, 0
    %p110 = por %p108, %p109
    %p111 = scmp.le.s32.totalorder 1, %s9
    %p112 = scmp.lt.s32.totalorder %s9, 3
    %p113 = pnand %p111, %p112
    %p114 = pneg %p113
    // Predicated region
    $region9: #{wrapper_ordinal_net_forward.3} parent=5 // pred_check
      _
    $region10: #{wrapper_ordinal_net_forward.3} parent=5 // pred_check_branch
      %116 = sbr.rel (%p113) target = $region12
    $region11: #{wrapper_ordinal_net_forward.3} parent=5 // pred_region
      %s117 = ssub.s32 %s9, 1
      // Predicated region
      $region13: #{wrapper_ordinal_net_forward.3} parent=11 // pred_check
        %p118 = pneg %p56
      $region14: #{wrapper_ordinal_net_forward.3} parent=11 // pred_check_branch
        %120 = sbr.rel (%p118) target = $region16
      $region15: #{wrapper_ordinal_net_forward.3} parent=11 // pred_region
        _
      $region16: #{wrapper_ordinal_net_forward.3} parent=11 // pred_fallthru
        _
      // Predicated region
      $region17: #{wrapper_ordinal_net_forward.3} parent=11 // pred_check
        %p121 = pneg %p77
      $region18: #{wrapper_ordinal_net_forward.3} parent=11 // pred_check_branch
        %123 = sbr.rel (%p121) target = $region20
      $region19: #{wrapper_ordinal_net_forward.3} parent=11 // pred_region
        _
      $region20: #{wrapper_ordinal_net_forward.3} parent=11 // pred_fallthru
        _
    $region12: #{wrapper_ordinal_net_forward.3} parent=5 // pred_fallthru
      _
    %p124 = scmp.lt.s32.totalorder %s9, 2
    // Predicated region
    $region21: #{wrapper_ordinal_net_forward.3} parent=5 // pred_check
      %p125 = pneg %p124
    $region22: #{wrapper_ordinal_net_forward.3} parent=5 // pred_check_branch
      %127 = sbr.rel (%p125) target = $region24
    $region23: #{wrapper_ordinal_net_forward.3} parent=5 // pred_region
      // Predicated region
      $region25: #{wrapper_ordinal_net_forward.3} parent=23 // pred_check
        %p128 = pneg %p29
      $region26: #{wrapper_ordinal_net_forward.3} parent=23 // pred_check_branch
        %130 = sbr.rel (%p128) target = $region28
      $region27: #{wrapper_ordinal_net_forward.3} parent=23 // pred_region
        %p131 = scmp.lt.s32.totalorder %s9, 1
        %s132 = scalar_select %p131, %s9, 1
        %s133 = smul.addr %s132, 32
        %s134 = smul.addr %s133, 8
        %s135 = scalar_lea.vmem %s0, %s134
      $region28: #{wrapper_ordinal_net_forward.3} parent=23 // pred_fallthru
        _
    $region24: #{wrapper_ordinal_net_forward.3} parent=5 // pred_fallthru
      _
    %p136 = scmp.le.s32.totalorder 1, %s9
    %p137 = scmp.lt.s32.totalorder %s9, 3
    %p138 = pnand %p136, %p137
    %p139 = pneg %p138
    // Predicated region
    $region29: #{wrapper_ordinal_net_forward.3} parent=5 // pred_check
      _
    $region30: #{wrapper_ordinal_net_forward.3} parent=5 // pred_check_branch
      %141 = sbr.rel (%p138) target = $region32
    $region31: #{wrapper_ordinal_net_forward.3} parent=5 // pred_region
      %s142 = ssub.s32 %s9, 1
      %p143 = scmp.lt.s32.totalorder %s14, 1
      %s144 = scalar_select %p143, %s14, 1
      %s145 = smul.addr %s144, 32
      %s146 = smul.addr %s145, 8
      %s147 = scalar_lea.vmem %s0, %s146
      %p148 = pneg %p35
      %p149 = pneg %p32
      %p150 = pneg %p56
      %p151 = pneg %p53
      %p152 = pneg %p77
      %p153 = pneg %p74
      %p154 = pneg %p103
      %p155 = pneg %p100
      %p156 = scmp.lt.s32.totalorder %s14, 1
      %s157 = scalar_select %p156, %s14, 1
      %s158 = smul.addr %s157, 9
      %s159 = smul.addr %s158, 2
      %s160 = scalar_lea.vmem %s3, %s159
      %p161 = scmp.lt.s32.totalorder %s14, 1
      %s162 = scalar_select %p161, %s14, 1
      %s163 = smul.addr %s162, 32
      %s164 = smul.addr %s163, 8
      %s165 = scalar_lea.vmem %s0, %s164
      %p166 = scmp.lt.s32.totalorder %s14, 1
      %s167 = scalar_select %p166, %s14, 1
      %s168 = smul.addr %s167, 9
      %s169 = smul.addr %s168, 2
      %s170 = scalar_lea.vmem %s3, %s169
      %v171 = vld [vmem:[%s2] sm:$0x1]
      %v172 = vld [vmem:[%s165] sm:$0x7]
      %v173 = vld [vmem:[%s165 + $0x8] sm:$0x7]
      %v174 = vld [vmem:[%s165 + $0x10] sm:$0x7]
      %v175 = vld [vmem:[%s165 + $0x40] sm:$0x7]
      %v176 = vld [vmem:[%s165 + $0x48] sm:$0x7]
      %v177 = vld [vmem:[%s165 + $0x50] sm:$0x7]
      %v178 = vld [vmem:[%s165 + $0x80] sm:$0x7]
      %v179 = vld [vmem:[%s165 + $0x88] sm:$0x7]
      %v180 = vld [vmem:[%s165 + $0x90] sm:$0x7]
      %v181 = vld [vmem:[%s1] sm:$0x1]
      %183 = vset.pattern.permute.xlu0 0
      %184 = vperm.xlu0 %183, %v172
      %v185 = vpop.permute.xlu0 %184
      %188 = vset.pattern.permute.xlu0 0
      %189 = vperm.xlu0 %188, %v173
      %v190 = vpop.permute.xlu0 %189
      %193 = vset.pattern.permute.xlu0 0
      %194 = vperm.xlu0 %193, %v174
      %v195 = vpop.permute.xlu0 %194
      %198 = vset.pattern.permute.xlu0 0
      %199 = vperm.xlu0 %198, %v175
      %v200 = vpop.permute.xlu0 %199
      %203 = vset.pattern.permute.xlu0 0
      %204 = vperm.xlu0 %203, %v176
      %v205 = vpop.permute.xlu0 %204
      %208 = vset.pattern.permute.xlu0 0
      %209 = vperm.xlu0 %208, %v177
      %v210 = vpop.permute.xlu0 %209
      %213 = vset.pattern.permute.xlu0 0
      %214 = vperm.xlu0 %213, %v178
      %v215 = vpop.permute.xlu0 %214
      %218 = vset.pattern.permute.xlu0 0
      %219 = vperm.xlu0 %218, %v179
      %v220 = vpop.permute.xlu0 %219
      %223 = vset.pattern.permute.xlu0 0
      %224 = vperm.xlu0 %223, %v180
      %v225 = vpop.permute.xlu0 %224
      %v227 = vlaneseq
      %v228 = vshrl.u32 %v227, 7
      %v229 = vsub.s32 0, %v228
      %v230 = vrot.slane %v181, %v229
      %v231 = vmul.f32 %v185, %v230
      %v232 = vmul.f32 %v190, %v230
      %v233 = vmul.f32 %v195, %v230
      %v234 = vmul.f32 %v200, %v230
      %v235 = vmul.f32 %v205, %v230
      %v236 = vmul.f32 %v210, %v230
      %v237 = vmul.f32 %v215, %v230
      %v238 = vmul.f32 %v220, %v230
      %v239 = vmul.f32 %v225, %v230
      %v240 = vadd.f32 %v231, 0.0
      %v241 = vadd.f32 %v232, 0.0
      %v242 = vadd.f32 %v233, 0.0
      %v243 = vadd.f32 %v234, 0.0
      %v244 = vadd.f32 %v235, 0.0
      %v245 = vadd.f32 %v236, 0.0
      %v246 = vadd.f32 %v237, 0.0
      %v247 = vadd.f32 %v238, 0.0
      %v248 = vadd.f32 %v239, 0.0
      %v249 = vld [vmem:[%s1 + $0x1] sm:$0x1]
      %250 = vset.pattern.permute.xlu0 1
      %251 = vperm.xlu0 %250, %v172
      %v252 = vpop.permute.xlu0 %251
      %254 = vset.pattern.permute.xlu0 1
      %255 = vperm.xlu0 %254, %v173
      %v256 = vpop.permute.xlu0 %255
      %258 = vset.pattern.permute.xlu0 1
      %259 = vperm.xlu0 %258, %v174
      %v260 = vpop.permute.xlu0 %259
      %262 = vset.pattern.permute.xlu0 1
      %263 = vperm.xlu0 %262, %v175
      %v264 = vpop.permute.xlu0 %263
      %266 = vset.pattern.permute.xlu0 1
      %267 = vperm.xlu0 %266, %v176
      %v268 = vpop.permute.xlu0 %267
      %270 = vset.pattern.permute.xlu0 1
      %271 = vperm.xlu0 %270, %v177
      %v272 = vpop.permute.xlu0 %271
      %274 = vset.pattern.permute.xlu0 1
      %275 = vperm.xlu0 %274, %v178
      %v276 = vpop.permute.xlu0 %275
      %278 = vset.pattern.permute.xlu0 1
      %279 = vperm.xlu0 %278, %v179
      %v280 = vpop.permute.xlu0 %279
      %282 = vset.pattern.permute.xlu0 1
      %283 = vperm.xlu0 %282, %v180
      %v284 = vpop.permute.xlu0 %283
      %v286 = vlaneseq
      %v287 = vshrl.u32 %v286, 7
      %v288 = vsub.s32 0, %v287
      %v289 = vrot.slane %v249, %v288
      %v290 = vmul.f32 %v252, %v289
      %v291 = vmul.f32 %v256, %v289
      %v292 = vmul.f32 %v260, %v289
      %v293 = vmul.f32 %v264, %v289
      %v294 = vmul.f32 %v268, %v289
      %v295 = vmul.f32 %v272, %v289
      %v296 = vmul.f32 %v276, %v289
      %v297 = vmul.f32 %v280, %v289
      %v298 = vmul.f32 %v284, %v289
      %v299 = vadd.f32 %v240, %v290
      %v300 = vadd.f32 %v241, %v291
      %v301 = vadd.f32 %v242, %v292
      %v302 = vadd.f32 %v243, %v293
      %v303 = vadd.f32 %v244, %v294
      %v304 = vadd.f32 %v245, %v295
      %v305 = vadd.f32 %v246, %v296
      %v306 = vadd.f32 %v247, %v297
      %v307 = vadd.f32 %v248, %v298
      %v308 = vld [vmem:[%s165 + $0x1] sm:$0x7]
      %v309 = vld [vmem:[%s165 + $0x9] sm:$0x7]
      %v310 = vld [vmem:[%s165 + $0x11] sm:$0x7]
      %v311 = vld [vmem:[%s165 + $0x41] sm:$0x7]
      %v312 = vld [vmem:[%s165 + $0x49] sm:$0x7]
      %v313 = vld [vmem:[%s165 + $0x51] sm:$0x7]
      %v314 = vld [vmem:[%s165 + $0x81] sm:$0x7]
      %v315 = vld [vmem:[%s165 + $0x89] sm:$0x7]
      %v316 = vld [vmem:[%s165 + $0x91] sm:$0x7]
      %v317 = vld [vmem:[%s1 + $0x2] sm:$0x1]
      %319 = vset.pattern.permute.xlu0 0
      %320 = vperm.xlu0 %319, %v308
      %v321 = vpop.permute.xlu0 %320
      %324 = vset.pattern.permute.xlu0 0
      %325 = vperm.xlu0 %324, %v309
      %v326 = vpop.permute.xlu0 %325
      %329 = vset.pattern.permute.xlu0 0
      %330 = vperm.xlu0 %329, %v310
      %v331 = vpop.permute.xlu0 %330
      %334 = vset.pattern.permute.xlu0 0
      %335 = vperm.xlu0 %334, %v311
      %v336 = vpop.permute.xlu0 %335
      %339 = vset.pattern.permute.xlu0 0
      %340 = vperm.xlu0 %339, %v312
      %v341 = vpop.permute.xlu0 %340
      %344 = vset.pattern.permute.xlu0 0
      %345 = vperm.xlu0 %344, %v313
      %v346 = vpop.permute.xlu0 %345
      %349 = vset.pattern.permute.xlu0 0
      %350 = vperm.xlu0 %349, %v314
      %v351 = vpop.permute.xlu0 %350
      %354 = vset.pattern.permute.xlu0 0
      %355 = vperm.xlu0 %354, %v315
      %v356 = vpop.permute.xlu0 %355
      %359 = vset.pattern.permute.xlu0 0
      %360 = vperm.xlu0 %359, %v316
      %v361 = vpop.permute.xlu0 %360
      %v363 = vlaneseq
      %v364 = vshrl.u32 %v363, 7
      %v365 = vsub.s32 0, %v364
      %v366 = vrot.slane %v317, %v365
      %v367 = vmul.f32 %v321, %v366
      %v368 = vmul.f32 %v326, %v366
      %v369 = vmul.f32 %v331, %v366
      %v370 = vmul.f32 %v336, %v366
      %v371 = vmul.f32 %v341, %v366
      %v372 = vmul.f32 %v346, %v366
      %v373 = vmul.f32 %v351, %v366
      %v374 = vmul.f32 %v356, %v366
      %v375 = vmul.f32 %v361, %v366
      %v376 = vadd.f32 %v299, %v367
      %v377 = vadd.f32 %v300, %v368
      %v378 = vadd.f32 %v301, %v369
      %v379 = vadd.f32 %v302, %v370
      %v380 = vadd.f32 %v303, %v371
      %v381 = vadd.f32 %v304, %v372
      %v382 = vadd.f32 %v305, %v373
      %v383 = vadd.f32 %v306, %v374
      %v384 = vadd.f32 %v307, %v375
      %v385 = vld [vmem:[%s165 + $0x4] sm:$0x7]
      %v386 = vld [vmem:[%s165 + $0xc] sm:$0x7]
      %v387 = vld [vmem:[%s165 + $0x14] sm:$0x7]
      %v388 = vld [vmem:[%s165 + $0x44] sm:$0x7]
      %v389 = vld [vmem:[%s165 + $0x4c] sm:$0x7]
      %v390 = vld [vmem:[%s165 + $0x54] sm:$0x7]
      %v391 = vld [vmem:[%s165 + $0x84] sm:$0x7]
      %v392 = vld [vmem:[%s165 + $0x8c] sm:$0x7]
      %v393 = vld [vmem:[%s165 + $0x94] sm:$0x7]
      %v394 = vld [vmem:[%s1 + $0x3] sm:$0x1]
      %396 = vset.pattern.permute.xlu0 0
      %397 = vperm.xlu0 %396, %v385
      %v398 = vpop.permute.xlu0 %397
      %401 = vset.pattern.permute.xlu0 0
      %402 = vperm.xlu0 %401, %v386
      %v403 = vpop.permute.xlu0 %402
      %406 = vset.pattern.permute.xlu0 0
      %407 = vperm.xlu0 %406, %v387
      %v408 = vpop.permute.xlu0 %407
      %411 = vset.pattern.permute.xlu0 0
      %412 = vperm.xlu0 %411, %v388
      %v413 = vpop.permute.xlu0 %412
      %416 = vset.pattern.permute.xlu0 0
      %417 = vperm.xlu0 %416, %v389
      %v418 = vpop.permute.xlu0 %417
      %421 = vset.pattern.permute.xlu0 0
      %422 = vperm.xlu0 %421, %v390
      %v423 = vpop.permute.xlu0 %422
      %426 = vset.pattern.permute.xlu0 0
      %427 = vperm.xlu0 %426, %v391
      %v428 = vpop.permute.xlu0 %427
      %431 = vset.pattern.permute.xlu0 0
      %432 = vperm.xlu0 %431, %v392
      %v433 = vpop.permute.xlu0 %432
      %436 = vset.pattern.permute.xlu0 0
      %437 = vperm.xlu0 %436, %v393
      %v438 = vpop.permute.xlu0 %437
      %v440 = vlaneseq
      %v441 = vshrl.u32 %v440, 7
      %v442 = vsub.s32 0, %v441
      %v443 = vrot.slane %v394, %v442
      %v444 = vmul.f32 %v398, %v443
      %v445 = vmul.f32 %v403, %v443
      %v446 = vmul.f32 %v408, %v443
      %v447 = vmul.f32 %v413, %v443
      %v448 = vmul.f32 %v418, %v443
      %v449 = vmul.f32 %v423, %v443
      %v450 = vmul.f32 %v428, %v443
      %v451 = vmul.f32 %v433, %v443
      %v452 = vmul.f32 %v438, %v443
      %v453 = vadd.f32 %v376, %v444
      %v454 = vadd.f32 %v377, %v445
      %v455 = vadd.f32 %v378, %v446
      %v456 = vadd.f32 %v379, %v447
      %v457 = vadd.f32 %v380, %v448
      %v458 = vadd.f32 %v381, %v449
      %v459 = vadd.f32 %v382, %v450
      %v460 = vadd.f32 %v383, %v451
      %v461 = vadd.f32 %v384, %v452
      %v462 = vld [vmem:[%s1 + $0x4] sm:$0x1]
      %463 = vset.pattern.permute.xlu0 1
      %464 = vperm.xlu0 %463, %v385
      %v465 = vpop.permute.xlu0 %464
      %467 = vset.pattern.permute.xlu0 1
      %468 = vperm.xlu0 %467, %v386
      %v469 = vpop.permute.xlu0 %468
      %471 = vset.pattern.permute.xlu0 1
      %472 = vperm.xlu0 %471, %v387
      %v473 = vpop.permute.xlu0 %472
      %475 = vset.pattern.permute.xlu0 1
      %476 = vperm.xlu0 %475, %v388
      %v477 = vpop.permute.xlu0 %476
      %479 = vset.pattern.permute.xlu0 1
      %480 = vperm.xlu0 %479, %v389
      %v481 = vpop.permute.xlu0 %480
      %483 = vset.pattern.permute.xlu0 1
      %484 = vperm.xlu0 %483, %v390
      %v485 = vpop.permute.xlu0 %484
      %487 = vset.pattern.permute.xlu0 1
      %488 = vperm.xlu0 %487, %v391
      %v489 = vpop.permute.xlu0 %488
      %491 = vset.pattern.permute.xlu0 1
      %492 = vperm.xlu0 %491, %v392
      %v493 = vpop.permute.xlu0 %492
      %495 = vset.pattern.permute.xlu0 1
      %496 = vperm.xlu0 %495, %v393
      %v497 = vpop.permute.xlu0 %496
      %v499 = vlaneseq
      %v500 = vshrl.u32 %v499, 7
      %v501 = vsub.s32 0, %v500
      %v502 = vrot.slane %v462, %v501
      %v503 = vmul.f32 %v465, %v502
      %v504 = vmul.f32 %v469, %v502
      %v505 = vmul.f32 %v473, %v502
      %v506 = vmul.f32 %v477, %v502
      %v507 = vmul.f32 %v481, %v502
      %v508 = vmul.f32 %v485, %v502
      %v509 = vmul.f32 %v489, %v502
      %v510 = vmul.f32 %v493, %v502
      %v511 = vmul.f32 %v497, %v502
      %v512 = vadd.f32 %v453, %v503
      %v513 = vadd.f32 %v454, %v504
      %v514 = vadd.f32 %v455, %v505
      %v515 = vadd.f32 %v456, %v506
      %v516 = vadd.f32 %v457, %v507
      %v517 = vadd.f32 %v458, %v508
      %v518 = vadd.f32 %v459, %v509
      %v519 = vadd.f32 %v460, %v510
      %v520 = vadd.f32 %v461, %v511
      %v521 = vld [vmem:[%s165 + $0x5] sm:$0x7]
      %v522 = vld [vmem:[%s165 + $0xd] sm:$0x7]
      %v523 = vld [vmem:[%s165 + $0x15] sm:$0x7]
      %v524 = vld [vmem:[%s165 + $0x45] sm:$0x7]
      %v525 = vld [vmem:[%s165 + $0x4d] sm:$0x7]
      %v526 = vld [vmem:[%s165 + $0x55] sm:$0x7]
      %v527 = vld [vmem:[%s165 + $0x85] sm:$0x7]
      %v528 = vld [vmem:[%s165 + $0x8d] sm:$0x7]
      %v529 = vld [vmem:[%s165 + $0x95] sm:$0x7]
      %v530 = vld [vmem:[%s1 + $0x5] sm:$0x1]
      %532 = vset.pattern.permute.xlu0 0
      %533 = vperm.xlu0 %532, %v521
      %v534 = vpop.permute.xlu0 %533
      %537 = vset.pattern.permute.xlu0 0
      %538 = vperm.xlu0 %537, %v522
      %v539 = vpop.permute.xlu0 %538
      %542 = vset.pattern.permute.xlu0 0
      %543 = vperm.xlu0 %542, %v523
      %v544 = vpop.permute.xlu0 %543
      %547 = vset.pattern.permute.xlu0 0
      %548 = vperm.xlu0 %547, %v524
      %v549 = vpop.permute.xlu0 %548
      %552 = vset.pattern.permute.xlu0 0
      %553 = vperm.xlu0 %552, %v525
      %v554 = vpop.permute.xlu0 %553
      %557 = vset.pattern.permute.xlu0 0
      %558 = vperm.xlu0 %557, %v526
      %v559 = vpop.permute.xlu0 %558
      %562 = vset.pattern.permute.xlu0 0
      %563 = vperm.xlu0 %562, %v527
      %v564 = vpop.permute.xlu0 %563
      %567 = vset.pattern.permute.xlu0 0
      %568 = vperm.xlu0 %567, %v528
      %v569 = vpop.permute.xlu0 %568
      %572 = vset.pattern.permute.xlu0 0
      %573 = vperm.xlu0 %572, %v529
      %v574 = vpop.permute.xlu0 %573
      %v576 = vlaneseq
      %v577 = vshrl.u32 %v576, 7
      %v578 = vsub.s32 0, %v577
      %v579 = vrot.slane %v530, %v578
      %v580 = vmul.f32 %v534, %v579
      %v581 = vmul.f32 %v539, %v579
      %v582 = vmul.f32 %v544, %v579
      %v583 = vmul.f32 %v549, %v579
      %v584 = vmul.f32 %v554, %v579
      %v585 = vmul.f32 %v559, %v579
      %v586 = vmul.f32 %v564, %v579
      %v587 = vmul.f32 %v569, %v579
      %v588 = vmul.f32 %v574, %v579
      %v589 = vadd.f32 %v512, %v580
      %v590 = vadd.f32 %v513, %v581
      %v591 = vadd.f32 %v514, %v582
      %v592 = vadd.f32 %v515, %v583
      %v593 = vadd.f32 %v516, %v584
      %v594 = vadd.f32 %v517, %v585
      %v595 = vadd.f32 %v518, %v586
      %v596 = vadd.f32 %v519, %v587
      %v597 = vadd.f32 %v520, %v588
      %s598 = scalar_lea.vmem %s165, 8
      %v599 = vld [vmem:[%s598] sm:$0x7]
      %v600 = vld [vmem:[%s598 + $0x8] sm:$0x7]
      %v601 = vld [vmem:[%s598 + $0x10] sm:$0x7]
      %v602 = vld [vmem:[%s598 + $0x40] sm:$0x7]
      %v603 = vld [vmem:[%s598 + $0x48] sm:$0x7]
      %v604 = vld [vmem:[%s598 + $0x50] sm:$0x7]
      %v605 = vld [vmem:[%s598 + $0x80] sm:$0x7]
      %v606 = vld [vmem:[%s598 + $0x88] sm:$0x7]
      %v607 = vld [vmem:[%s598 + $0x90] sm:$0x7]
      %v608 = vld [vmem:[%s1 + $0x6] sm:$0x1]
      %610 = vset.pattern.permute.xlu0 0
      %611 = vperm.xlu0 %610, %v599
      %v612 = vpop.permute.xlu0 %611
      %615 = vset.pattern.permute.xlu0 0
      %616 = vperm.xlu0 %615, %v600
      %v617 = vpop.permute.xlu0 %616
      %620 = vset.pattern.permute.xlu0 0
      %621 = vperm.xlu0 %620, %v601
      %v622 = vpop.permute.xlu0 %621
      %625 = vset.pattern.permute.xlu0 0
      %626 = vperm.xlu0 %625, %v602
      %v627 = vpop.permute.xlu0 %626
      %630 = vset.pattern.permute.xlu0 0
      %631 = vperm.xlu0 %630, %v603
      %v632 = vpop.permute.xlu0 %631
      %635 = vset.pattern.permute.xlu0 0
      %636 = vperm.xlu0 %635, %v604
      %v637 = vpop.permute.xlu0 %636
      %640 = vset.pattern.permute.xlu0 0
      %641 = vperm.xlu0 %640, %v605
      %v642 = vpop.permute.xlu0 %641
      %645 = vset.pattern.permute.xlu0 0
      %646 = vperm.xlu0 %645, %v606
      %v647 = vpop.permute.xlu0 %646
      %650 = vset.pattern.permute.xlu0 0
      %651 = vperm.xlu0 %650, %v607
      %v652 = vpop.permute.xlu0 %651
      %v654 = vlaneseq
      %v655 = vshrl.u32 %v654, 7
      %v656 = vsub.s32 0, %v655
      %v657 = vrot.slane %v608, %v656
      %v658 = vmul.f32 %v612, %v657
      %v659 = vmul.f32 %v617, %v657
      %v660 = vmul.f32 %v622, %v657
      %v661 = vmul.f32 %v627, %v657
      %v662 = vmul.f32 %v632, %v657
      %v663 = vmul.f32 %v637, %v657
      %v664 = vmul.f32 %v642, %v657
      %v665 = vmul.f32 %v647, %v657
      %v666 = vmul.f32 %v652, %v657
      %v667 = vadd.f32 %v589, %v658
      %v668 = vadd.f32 %v590, %v659
      %v669 = vadd.f32 %v591, %v660
      %v670 = vadd.f32 %v592, %v661
      %v671 = vadd.f32 %v593, %v662
      %v672 = vadd.f32 %v594, %v663
      %v673 = vadd.f32 %v595, %v664
      %v674 = vadd.f32 %v596, %v665
      %v675 = vadd.f32 %v597, %v666
      %v676 = vld [vmem:[%s1 + $0x7] sm:$0x1]
      %677 = vset.pattern.permute.xlu0 1
      %678 = vperm.xlu0 %677, %v599
      %v679 = vpop.permute.xlu0 %678
      %681 = vset.pattern.permute.xlu0 1
      %682 = vperm.xlu0 %681, %v600
      %v683 = vpop.permute.xlu0 %682
      %685 = vset.pattern.permute.xlu0 1
      %686 = vperm.xlu0 %685, %v601
      %v687 = vpop.permute.xlu0 %686
      %689 = vset.pattern.permute.xlu0 1
      %690 = vperm.xlu0 %689, %v602
      %v691 = vpop.permute.xlu0 %690
      %693 = vset.pattern.permute.xlu0 1
      %694 = vperm.xlu0 %693, %v603
      %v695 = vpop.permute.xlu0 %694
      %697 = vset.pattern.permute.xlu0 1
      %698 = vperm.xlu0 %697, %v604
      %v699 = vpop.permute.xlu0 %698
      %701 = vset.pattern.permute.xlu0 1
      %702 = vperm.xlu0 %701, %v605
      %v703 = vpop.permute.xlu0 %702
      %705 = vset.pattern.permute.xlu0 1
      %706 = vperm.xlu0 %705, %v606
      %v707 = vpop.permute.xlu0 %706
      %709 = vset.pattern.permute.xlu0 1
      %710 = vperm.xlu0 %709, %v607
      %v711 = vpop.permute.xlu0 %710
      %v713 = vlaneseq
      %v714 = vshrl.u32 %v713, 7
      %v715 = vsub.s32 0, %v714
      %v716 = vrot.slane %v676, %v715
      %v717 = vmul.f32 %v679, %v716
      %v718 = vmul.f32 %v683, %v716
      %v719 = vmul.f32 %v687, %v716
      %v720 = vmul.f32 %v691, %v716
      %v721 = vmul.f32 %v695, %v716
      %v722 = vmul.f32 %v699, %v716
      %v723 = vmul.f32 %v703, %v716
      %v724 = vmul.f32 %v707, %v716
      %v725 = vmul.f32 %v711, %v716
      %v726 = vadd.f32 %v667, %v717
      %v727 = vadd.f32 %v668, %v718
      %v728 = vadd.f32 %v669, %v719
      %v729 = vadd.f32 %v670, %v720
      %v730 = vadd.f32 %v671, %v721
      %v731 = vadd.f32 %v672, %v722
      %v732 = vadd.f32 %v673, %v723
      %v733 = vadd.f32 %v674, %v724
      %v734 = vadd.f32 %v675, %v725
      %v735 = vld [vmem:[%s598 + $0x1] sm:$0x7]
      %v736 = vld [vmem:[%s598 + $0x9] sm:$0x7]
      %v737 = vld [vmem:[%s598 + $0x11] sm:$0x7]
      %v738 = vld [vmem:[%s598 + $0x41] sm:$0x7]
      %v739 = vld [vmem:[%s598 + $0x49] sm:$0x7]
      %v740 = vld [vmem:[%s598 + $0x51] sm:$0x7]
      %v741 = vld [vmem:[%s598 + $0x81] sm:$0x7]
      %v742 = vld [vmem:[%s598 + $0x89] sm:$0x7]
      %v743 = vld [vmem:[%s598 + $0x91] sm:$0x7]
      %v744 = vld [vmem:[%s1 + $0x8] sm:$0x1]
      %746 = vset.pattern.permute.xlu0 0
      %747 = vperm.xlu0 %746, %v735
      %v748 = vpop.permute.xlu0 %747
      %751 = vset.pattern.permute.xlu0 0
      %752 = vperm.xlu0 %751, %v736
      %v753 = vpop.permute.xlu0 %752
      %756 = vset.pattern.permute.xlu0 0
      %757 = vperm.xlu0 %756, %v737
      %v758 = vpop.permute.xlu0 %757
      %761 = vset.pattern.permute.xlu0 0
      %762 = vperm.xlu0 %761, %v738
      %v763 = vpop.permute.xlu0 %762
      %766 = vset.pattern.permute.xlu0 0
      %767 = vperm.xlu0 %766, %v739
      %v768 = vpop.permute.xlu0 %767
      %771 = vset.pattern.permute.xlu0 0
      %772 = vperm.xlu0 %771, %v740
      %v773 = vpop.permute.xlu0 %772
      %776 = vset.pattern.permute.xlu0 0
      %777 = vperm.xlu0 %776, %v741
      %v778 = vpop.permute.xlu0 %777
      %781 = vset.pattern.permute.xlu0 0
      %782 = vperm.xlu0 %781, %v742
      %v783 = vpop.permute.xlu0 %782
      %786 = vset.pattern.permute.xlu0 0
      %787 = vperm.xlu0 %786, %v743
      %v788 = vpop.permute.xlu0 %787
      %v790 = vlaneseq
      %v791 = vshrl.u32 %v790, 7
      %v792 = vsub.s32 0, %v791
      %v793 = vrot.slane %v744, %v792
      %v794 = vmul.f32 %v748, %v793
      %v795 = vmul.f32 %v753, %v793
      %v796 = vmul.f32 %v758, %v793
      %v797 = vmul.f32 %v763, %v793
      %v798 = vmul.f32 %v768, %v793
      %v799 = vmul.f32 %v773, %v793
      %v800 = vmul.f32 %v778, %v793
      %v801 = vmul.f32 %v783, %v793
      %v802 = vmul.f32 %v788, %v793
      %v803 = vadd.f32 %v726, %v794
      %v804 = vadd.f32 %v727, %v795
      %v805 = vadd.f32 %v728, %v796
      %v806 = vadd.f32 %v729, %v797
      %v807 = vadd.f32 %v730, %v798
      %v808 = vadd.f32 %v731, %v799
      %v809 = vadd.f32 %v732, %v800
      %v810 = vadd.f32 %v733, %v801
      %v811 = vadd.f32 %v734, %v802
      %s812 = scalar_lea.vmem %s165, 32
      %v813 = vld [vmem:[%s812] sm:$0x7]
      %v814 = vld [vmem:[%s812 + $0x8] sm:$0x7]
      %v815 = vld [vmem:[%s812 + $0x10] sm:$0x7]
      %v816 = vld [vmem:[%s812 + $0x40] sm:$0x7]
      %v817 = vld [vmem:[%s812 + $0x48] sm:$0x7]
      %v818 = vld [vmem:[%s812 + $0x50] sm:$0x7]
      %v819 = vld [vmem:[%s812 + $0x80] sm:$0x7]
      %v820 = vld [vmem:[%s812 + $0x88] sm:$0x7]
      %v821 = vld [vmem:[%s812 + $0x90] sm:$0x7]
      %v822 = vld [vmem:[%s1 + $0x9] sm:$0x1]
      %824 = vset.pattern.permute.xlu0 0
      %825 = vperm.xlu0 %824, %v813
      %v826 = vpop.permute.xlu0 %825
      %829 = vset.pattern.permute.xlu0 0
      %830 = vperm.xlu0 %829, %v814
      %v831 = vpop.permute.xlu0 %830
      %834 = vset.pattern.permute.xlu0 0
      %835 = vperm.xlu0 %834, %v815
      %v836 = vpop.permute.xlu0 %835
      %839 = vset.pattern.permute.xlu0 0
      %840 = vperm.xlu0 %839, %v816
      %v841 = vpop.permute.xlu0 %840
      %844 = vset.pattern.permute.xlu0 0
      %845 = vperm.xlu0 %844, %v817
      %v846 = vpop.permute.xlu0 %845
      %849 = vset.pattern.permute.xlu0 0
      %850 = vperm.xlu0 %849, %v818
      %v851 = vpop.permute.xlu0 %850
      %854 = vset.pattern.permute.xlu0 0
      %855 = vperm.xlu0 %854, %v819
      %v856 = vpop.permute.xlu0 %855
      %859 = vset.pattern.permute.xlu0 0
      %860 = vperm.xlu0 %859, %v820
      %v861 = vpop.permute.xlu0 %860
      %864 = vset.pattern.permute.xlu0 0
      %865 = vperm.xlu0 %864, %v821
      %v866 = vpop.permute.xlu0 %865
      %v868 = vlaneseq
      %v869 = vshrl.u32 %v868, 7
      %v870 = vsub.s32 0, %v869
      %v871 = vrot.slane %v822, %v870
      %v872 = vmul.f32 %v826, %v871
      %v873 = vmul.f32 %v831, %v871
      %v874 = vmul.f32 %v836, %v871
      %v875 = vmul.f32 %v841, %v871
      %v876 = vmul.f32 %v846, %v871
      %v877 = vmul.f32 %v851, %v871
      %v878 = vmul.f32 %v856, %v871
      %v879 = vmul.f32 %v861, %v871
      %v880 = vmul.f32 %v866, %v871
      %v881 = vadd.f32 %v803, %v872
      %v882 = vadd.f32 %v804, %v873
      %v883 = vadd.f32 %v805, %v874
      %v884 = vadd.f32 %v806, %v875
      %v885 = vadd.f32 %v807, %v876
      %v886 = vadd.f32 %v808, %v877
      %v887 = vadd.f32 %v809, %v878
      %v888 = vadd.f32 %v810, %v879
      %v889 = vadd.f32 %v811, %v880
      %v890 = vld [vmem:[%s1 + $0xa] sm:$0x1]
      %891 = vset.pattern.permute.xlu0 1
      %892 = vperm.xlu0 %891, %v813
      %v893 = vpop.permute.xlu0 %892
      %895 = vset.pattern.permute.xlu0 1
      %896 = vperm.xlu0 %895, %v814
      %v897 = vpop.permute.xlu0 %896
      %899 = vset.pattern.permute.xlu0 1
      %900 = vperm.xlu0 %899, %v815
      %v901 = vpop.permute.xlu0 %900
      %903 = vset.pattern.permute.xlu0 1
      %904 = vperm.xlu0 %903, %v816
      %v905 = vpop.permute.xlu0 %904
      %907 = vset.pattern.permute.xlu0 1
      %908 = vperm.xlu0 %907, %v817
      %v909 = vpop.permute.xlu0 %908
      %911 = vset.pattern.permute.xlu0 1
      %912 = vperm.xlu0 %911, %v818
      %v913 = vpop.permute.xlu0 %912
      %915 = vset.pattern.permute.xlu0 1
      %916 = vperm.xlu0 %915, %v819
      %v917 = vpop.permute.xlu0 %916
      %919 = vset.pattern.permute.xlu0 1
      %920 = vperm.xlu0 %919, %v820
      %v921 = vpop.permute.xlu0 %920
      %923 = vset.pattern.permute.xlu0 1
      %924 = vperm.xlu0 %923, %v821
      %v925 = vpop.permute.xlu0 %924
      %v927 = vlaneseq
      %v928 = vshrl.u32 %v927, 7
      %v929 = vsub.s32 0, %v928
      %v930 = vrot.slane %v890, %v929
      %v931 = vmul.f32 %v893, %v930
      %v932 = vmul.f32 %v897, %v930
      %v933 = vmul.f32 %v901, %v930
      %v934 = vmul.f32 %v905, %v930
      %v935 = vmul.f32 %v909, %v930
      %v936 = vmul.f32 %v913, %v930
      %v937 = vmul.f32 %v917, %v930
      %v938 = vmul.f32 %v921, %v930
      %v939 = vmul.f32 %v925, %v930
      %v940 = vadd.f32 %v881, %v931
      %v941 = vadd.f32 %v882, %v932
      %v942 = vadd.f32 %v883, %v933
      %v943 = vadd.f32 %v884, %v934
      %v944 = vadd.f32 %v885, %v935
      %v945 = vadd.f32 %v886, %v936
      %v946 = vadd.f32 %v887, %v937
      %v947 = vadd.f32 %v888, %v938
      %v948 = vadd.f32 %v889, %v939
      %v949 = vld [vmem:[%s812 + $0x1] sm:$0x7]
      %v950 = vld [vmem:[%s812 + $0x9] sm:$0x7]
      %v951 = vld [vmem:[%s812 + $0x11] sm:$0x7]
      %v952 = vld [vmem:[%s812 + $0x41] sm:$0x7]
      %v953 = vld [vmem:[%s812 + $0x49] sm:$0x7]
      %v954 = vld [vmem:[%s812 + $0x51] sm:$0x7]
      %v955 = vld [vmem:[%s812 + $0x81] sm:$0x7]
      %v956 = vld [vmem:[%s812 + $0x89] sm:$0x7]
      %v957 = vld [vmem:[%s812 + $0x91] sm:$0x7]
      %v958 = vld [vmem:[%s1 + $0xb] sm:$0x1]
      %960 = vset.pattern.permute.xlu0 0
      %961 = vperm.xlu0 %960, %v949
      %v962 = vpop.permute.xlu0 %961
      %965 = vset.pattern.permute.xlu0 0
      %966 = vperm.xlu0 %965, %v950
      %v967 = vpop.permute.xlu0 %966
      %970 = vset.pattern.permute.xlu0 0
      %971 = vperm.xlu0 %970, %v951
      %v972 = vpop.permute.xlu0 %971
      %975 = vset.pattern.permute.xlu0 0
      %976 = vperm.xlu0 %975, %v952
      %v977 = vpop.permute.xlu0 %976
      %980 = vset.pattern.permute.xlu0 0
      %981 = vperm.xlu0 %980, %v953
      %v982 = vpop.permute.xlu0 %981
      %985 = vset.pattern.permute.xlu0 0
      %986 = vperm.xlu0 %985, %v954
      %v987 = vpop.permute.xlu0 %986
      %990 = vset.pattern.permute.xlu0 0
      %991 = vperm.xlu0 %990, %v955
      %v992 = vpop.permute.xlu0 %991
      %995 = vset.pattern.permute.xlu0 0
      %996 = vperm.xlu0 %995, %v956
      %v997 = vpop.permute.xlu0 %996
      %1000 = vset.pattern.permute.xlu0 0
      %1001 = vperm.xlu0 %1000, %v957
      %v1002 = vpop.permute.xlu0 %1001
      %v1004 = vlaneseq
      %v1005 = vshrl.u32 %v1004, 7
      %v1006 = vsub.s32 0, %v1005
      %v1007 = vrot.slane %v958, %v1006
      %v1008 = vmul.f32 %v962, %v1007
      %v1009 = vmul.f32 %v967, %v1007
      %v1010 = vmul.f32 %v972, %v1007
      %v1011 = vmul.f32 %v977, %v1007
      %v1012 = vmul.f32 %v982, %v1007
      %v1013 = vmul.f32 %v987, %v1007
      %v1014 = vmul.f32 %v992, %v1007
      %v1015 = vmul.f32 %v997, %v1007
      %v1016 = vmul.f32 %v1002, %v1007
      %v1017 = vadd.f32 %v940, %v1008
      %v1018 = vadd.f32 %v941, %v1009
      %v1019 = vadd.f32 %v942, %v1010
      %v1020 = vadd.f32 %v943, %v1011
      %v1021 = vadd.f32 %v944, %v1012
      %v1022 = vadd.f32 %v945, %v1013
      %v1023 = vadd.f32 %v946, %v1014
      %v1024 = vadd.f32 %v947, %v1015
      %v1025 = vadd.f32 %v948, %v1016
      %v1026 = vld [vmem:[%s812 + $0x4] sm:$0x7]
      %v1027 = vld [vmem:[%s812 + $0xc] sm:$0x7]
      %v1028 = vld [vmem:[%s812 + $0x14] sm:$0x7]
      %v1029 = vld [vmem:[%s812 + $0x44] sm:$0x7]
      %v1030 = vld [vmem:[%s812 + $0x4c] sm:$0x7]
      %v1031 = vld [vmem:[%s812 + $0x54] sm:$0x7]
      %v1032 = vld [vmem:[%s812 + $0x84] sm:$0x7]
      %v1033 = vld [vmem:[%s812 + $0x8c] sm:$0x7]
      %v1034 = vld [vmem:[%s812 + $0x94] sm:$0x7]
      %v1035 = vld [vmem:[%s1 + $0xc] sm:$0x1]
      %1037 = vset.pattern.permute.xlu0 0
      %1038 = vperm.xlu0 %1037, %v1026
      %v1039 = vpop.permute.xlu0 %1038
      %1042 = vset.pattern.permute.xlu0 0
      %1043 = vperm.xlu0 %1042, %v1027
      %v1044 = vpop.permute.xlu0 %1043
      %1047 = vset.pattern.permute.xlu0 0
      %1048 = vperm.xlu0 %1047, %v1028
      %v1049 = vpop.permute.xlu0 %1048
      %1052 = vset.pattern.permute.xlu0 0
      %1053 = vperm.xlu0 %1052, %v1029
      %v1054 = vpop.permute.xlu0 %1053
      %1057 = vset.pattern.permute.xlu0 0
      %1058 = vperm.xlu0 %1057, %v1030
      %v1059 = vpop.permute.xlu0 %1058
      %1062 = vset.pattern.permute.xlu0 0
      %1063 = vperm.xlu0 %1062, %v1031
      %v1064 = vpop.permute.xlu0 %1063
      %1067 = vset.pattern.permute.xlu0 0
      %1068 = vperm.xlu0 %1067, %v1032
      %v1069 = vpop.permute.xlu0 %1068
      %1072 = vset.pattern.permute.xlu0 0
      %1073 = vperm.xlu0 %1072, %v1033
      %v1074 = vpop.permute.xlu0 %1073
      %1077 = vset.pattern.permute.xlu0 0
      %1078 = vperm.xlu0 %1077, %v1034
      %v1079 = vpop.permute.xlu0 %1078
      %v1081 = vlaneseq
      %v1082 = vshrl.u32 %v1081, 7
      %v1083 = vsub.s32 0, %v1082
      %v1084 = vrot.slane %v1035, %v1083
      %v1085 = vmul.f32 %v1039, %v1084
      %v1086 = vmul.f32 %v1044, %v1084
      %v1087 = vmul.f32 %v1049, %v1084
      %v1088 = vmul.f32 %v1054, %v1084
      %v1089 = vmul.f32 %v1059, %v1084
      %v1090 = vmul.f32 %v1064, %v1084
      %v1091 = vmul.f32 %v1069, %v1084
      %v1092 = vmul.f32 %v1074, %v1084
      %v1093 = vmul.f32 %v1079, %v1084
      %v1094 = vadd.f32 %v1017, %v1085
      %v1095 = vadd.f32 %v1018, %v1086
      %v1096 = vadd.f32 %v1019, %v1087
      %v1097 = vadd.f32 %v1020, %v1088
      %v1098 = vadd.f32 %v1021, %v1089
      %v1099 = vadd.f32 %v1022, %v1090
      %v1100 = vadd.f32 %v1023, %v1091
      %v1101 = vadd.f32 %v1024, %v1092
      %v1102 = vadd.f32 %v1025, %v1093
      %v1103 = vld [vmem:[%s1 + $0xd] sm:$0x1]
      %1104 = vset.pattern.permute.xlu0 1
      %1105 = vperm.xlu0 %1104, %v1026
      %v1106 = vpop.permute.xlu0 %1105
      %1108 = vset.pattern.permute.xlu0 1
      %1109 = vperm.xlu0 %1108, %v1027
      %v1110 = vpop.permute.xlu0 %1109
      %1112 = vset.pattern.permute.xlu0 1
      %1113 = vperm.xlu0 %1112, %v1028
      %v1114 = vpop.permute.xlu0 %1113
      %1116 = vset.pattern.permute.xlu0 1
      %1117 = vperm.xlu0 %1116, %v1029
      %v1118 = vpop.permute.xlu0 %1117
      %1120 = vset.pattern.permute.xlu0 1
      %1121 = vperm.xlu0 %1120, %v1030
      %v1122 = vpop.permute.xlu0 %1121
      %1124 = vset.pattern.permute.xlu0 1
      %1125 = vperm.xlu0 %1124, %v1031
      %v1126 = vpop.permute.xlu0 %1125
      %1128 = vset.pattern.permute.xlu0 1
      %1129 = vperm.xlu0 %1128, %v1032
      %v1130 = vpop.permute.xlu0 %1129
      %1132 = vset.pattern.permute.xlu0 1
      %1133 = vperm.xlu0 %1132, %v1033
      %v1134 = vpop.permute.xlu0 %1133
      %1136 = vset.pattern.permute.xlu0 1
      %1137 = vperm.xlu0 %1136, %v1034
      %v1138 = vpop.permute.xlu0 %1137
      %v1140 = vlaneseq
      %v1141 = vshrl.u32 %v1140, 7
      %v1142 = vsub.s32 0, %v1141
      %v1143 = vrot.slane %v1103, %v1142
      %v1144 = vmul.f32 %v1106, %v1143
      %v1145 = vmul.f32 %v1110, %v1143
      %v1146 = vmul.f32 %v1114, %v1143
      %v1147 = vmul.f32 %v1118, %v1143
      %v1148 = vmul.f32 %v1122, %v1143
      %v1149 = vmul.f32 %v1126, %v1143
      %v1150 = vmul.f32 %v1130, %v1143
      %v1151 = vmul.f32 %v1134, %v1143
      %v1152 = vmul.f32 %v1138, %v1143
      %v1153 = vadd.f32 %v1094, %v1144
      %v1154 = vadd.f32 %v1095, %v1145
      %v1155 = vadd.f32 %v1096, %v1146
      %v1156 = vadd.f32 %v1097, %v1147
      %v1157 = vadd.f32 %v1098, %v1148
      %v1158 = vadd.f32 %v1099, %v1149
      %v1159 = vadd.f32 %v1100, %v1150
      %v1160 = vadd.f32 %v1101, %v1151
      %v1161 = vadd.f32 %v1102, %v1152
      %v1162 = vld [vmem:[%s812 + $0x5] sm:$0x7]
      %v1163 = vld [vmem:[%s812 + $0xd] sm:$0x7]
      %v1164 = vld [vmem:[%s812 + $0x15] sm:$0x7]
      %v1165 = vld [vmem:[%s812 + $0x45] sm:$0x7]
      %v1166 = vld [vmem:[%s812 + $0x4d] sm:$0x7]
      %v1167 = vld [vmem:[%s812 + $0x55] sm:$0x7]
      %v1168 = vld [vmem:[%s812 + $0x85] sm:$0x7]
      %v1169 = vld [vmem:[%s812 + $0x8d] sm:$0x7]
      %v1170 = vld [vmem:[%s812 + $0x95] sm:$0x7]
      %v1171 = vld [vmem:[%s1 + $0xe] sm:$0x1]
      %1173 = vset.pattern.permute.xlu0 0
      %1174 = vperm.xlu0 %1173, %v1162
      %v1175 = vpop.permute.xlu0 %1174
      %1178 = vset.pattern.permute.xlu0 0
      %1179 = vperm.xlu0 %1178, %v1163
      %v1180 = vpop.permute.xlu0 %1179
      %1183 = vset.pattern.permute.xlu0 0
      %1184 = vperm.xlu0 %1183, %v1164
      %v1185 = vpop.permute.xlu0 %1184
      %1188 = vset.pattern.permute.xlu0 0
      %1189 = vperm.xlu0 %1188, %v1165
      %v1190 = vpop.permute.xlu0 %1189
      %1193 = vset.pattern.permute.xlu0 0
      %1194 = vperm.xlu0 %1193, %v1166
      %v1195 = vpop.permute.xlu0 %1194
      %1198 = vset.pattern.permute.xlu0 0
      %1199 = vperm.xlu0 %1198, %v1167
      %v1200 = vpop.permute.xlu0 %1199
      %1203 = vset.pattern.permute.xlu0 0
      %1204 = vperm.xlu0 %1203, %v1168
      %v1205 = vpop.permute.xlu0 %1204
      %1208 = vset.pattern.permute.xlu0 0
      %1209 = vperm.xlu0 %1208, %v1169
      %v1210 = vpop.permute.xlu0 %1209
      %1213 = vset.pattern.permute.xlu0 0
      %1214 = vperm.xlu0 %1213, %v1170
      %v1215 = vpop.permute.xlu0 %1214
      %v1217 = vlaneseq
      %v1218 = vshrl.u32 %v1217, 7
      %v1219 = vsub.s32 0, %v1218
      %v1220 = vrot.slane %v1171, %v1219
      %v1221 = vmul.f32 %v1175, %v1220
      %v1222 = vmul.f32 %v1180, %v1220
      %v1223 = vmul.f32 %v1185, %v1220
      %v1224 = vmul.f32 %v1190, %v1220
      %v1225 = vmul.f32 %v1195, %v1220
      %v1226 = vmul.f32 %v1200, %v1220
      %v1227 = vmul.f32 %v1205, %v1220
      %v1228 = vmul.f32 %v1210, %v1220
      %v1229 = vmul.f32 %v1215, %v1220
      %v1230 = vadd.f32 %v1153, %v1221
      %v1231 = vadd.f32 %v1154, %v1222
      %v1232 = vadd.f32 %v1155, %v1223
      %v1233 = vadd.f32 %v1156, %v1224
      %v1234 = vadd.f32 %v1157, %v1225
      %v1235 = vadd.f32 %v1158, %v1226
      %v1236 = vadd.f32 %v1159, %v1227
      %v1237 = vadd.f32 %v1160, %v1228
      %v1238 = vadd.f32 %v1161, %v1229
      %s1239 = scalar_lea.vmem %s165, 40
      %v1240 = vld [vmem:[%s1239] sm:$0x7]
      %v1241 = vld [vmem:[%s1239 + $0x8] sm:$0x7]
      %v1242 = vld [vmem:[%s1239 + $0x10] sm:$0x7]
      %v1243 = vld [vmem:[%s1239 + $0x40] sm:$0x7]
      %v1244 = vld [vmem:[%s1239 + $0x48] sm:$0x7]
      %v1245 = vld [vmem:[%s1239 + $0x50] sm:$0x7]
      %v1246 = vld [vmem:[%s1239 + $0x80] sm:$0x7]
      %v1247 = vld [vmem:[%s1239 + $0x88] sm:$0x7]
      %v1248 = vld [vmem:[%s1239 + $0x90] sm:$0x7]
      %v1249 = vld [vmem:[%s1 + $0xf] sm:$0x1]
      %1251 = vset.pattern.permute.xlu0 0
      %1252 = vperm.xlu0 %1251, %v1240
      %v1253 = vpop.permute.xlu0 %1252
      %1256 = vset.pattern.permute.xlu0 0
      %1257 = vperm.xlu0 %1256, %v1241
      %v1258 = vpop.permute.xlu0 %1257
      %1261 = vset.pattern.permute.xlu0 0
      %1262 = vperm.xlu0 %1261, %v1242
      %v1263 = vpop.permute.xlu0 %1262
      %1266 = vset.pattern.permute.xlu0 0
      %1267 = vperm.xlu0 %1266, %v1243
      %v1268 = vpop.permute.xlu0 %1267
      %1271 = vset.pattern.permute.xlu0 0
      %1272 = vperm.xlu0 %1271, %v1244
      %v1273 = vpop.permute.xlu0 %1272
      %1276 = vset.pattern.permute.xlu0 0
      %1277 = vperm.xlu0 %1276, %v1245
      %v1278 = vpop.permute.xlu0 %1277
      %1281 = vset.pattern.permute.xlu0 0
      %1282 = vperm.xlu0 %1281, %v1246
      %v1283 = vpop.permute.xlu0 %1282
      %1286 = vset.pattern.permute.xlu0 0
      %1287 = vperm.xlu0 %1286, %v1247
      %v1288 = vpop.permute.xlu0 %1287
      %1291 = vset.pattern.permute.xlu0 0
      %1292 = vperm.xlu0 %1291, %v1248
      %v1293 = vpop.permute.xlu0 %1292
      %v1295 = vlaneseq
      %v1296 = vshrl.u32 %v1295, 7
      %v1297 = vsub.s32 0, %v1296
      %v1298 = vrot.slane %v1249, %v1297
      %v1299 = vmul.f32 %v1253, %v1298
      %v1300 = vmul.f32 %v1258, %v1298
      %v1301 = vmul.f32 %v1263, %v1298
      %v1302 = vmul.f32 %v1268, %v1298
      %v1303 = vmul.f32 %v1273, %v1298
      %v1304 = vmul.f32 %v1278, %v1298
      %v1305 = vmul.f32 %v1283, %v1298
      %v1306 = vmul.f32 %v1288, %v1298
      %v1307 = vmul.f32 %v1293, %v1298
      %v1308 = vadd.f32 %v1230, %v1299
      %v1309 = vadd.f32 %v1231, %v1300
      %v1310 = vadd.f32 %v1232, %v1301
      %v1311 = vadd.f32 %v1233, %v1302
      %v1312 = vadd.f32 %v1234, %v1303
      %v1313 = vadd.f32 %v1235, %v1304
      %v1314 = vadd.f32 %v1236, %v1305
      %v1315 = vadd.f32 %v1237, %v1306
      %v1316 = vadd.f32 %v1238, %v1307
      %v1317 = vld [vmem:[%s1 + $0x10] sm:$0x1]
      %1318 = vset.pattern.permute.xlu0 1
      %1319 = vperm.xlu0 %1318, %v1240
      %v1320 = vpop.permute.xlu0 %1319
      %1322 = vset.pattern.permute.xlu0 1
      %1323 = vperm.xlu0 %1322, %v1241
      %v1324 = vpop.permute.xlu0 %1323
      %1326 = vset.pattern.permute.xlu0 1
      %1327 = vperm.xlu0 %1326, %v1242
      %v1328 = vpop.permute.xlu0 %1327
      %1330 = vset.pattern.permute.xlu0 1
      %1331 = vperm.xlu0 %1330, %v1243
      %v1332 = vpop.permute.xlu0 %1331
      %1334 = vset.pattern.permute.xlu0 1
      %1335 = vperm.xlu0 %1334, %v1244
      %v1336 = vpop.permute.xlu0 %1335
      %1338 = vset.pattern.permute.xlu0 1
      %1339 = vperm.xlu0 %1338, %v1245
      %v1340 = vpop.permute.xlu0 %1339
      %1342 = vset.pattern.permute.xlu0 1
      %1343 = vperm.xlu0 %1342, %v1246
      %v1344 = vpop.permute.xlu0 %1343
      %1346 = vset.pattern.permute.xlu0 1
      %1347 = vperm.xlu0 %1346, %v1247
      %v1348 = vpop.permute.xlu0 %1347
      %1350 = vset.pattern.permute.xlu0 1
      %1351 = vperm.xlu0 %1350, %v1248
      %v1352 = vpop.permute.xlu0 %1351
      %v1354 = vlaneseq
      %v1355 = vshrl.u32 %v1354, 7
      %v1356 = vsub.s32 0, %v1355
      %v1357 = vrot.slane %v1317, %v1356
      %v1358 = vmul.f32 %v1320, %v1357
      %v1359 = vmul.f32 %v1324, %v1357
      %v1360 = vmul.f32 %v1328, %v1357
      %v1361 = vmul.f32 %v1332, %v1357
      %v1362 = vmul.f32 %v1336, %v1357
      %v1363 = vmul.f32 %v1340, %v1357
      %v1364 = vmul.f32 %v1344, %v1357
      %v1365 = vmul.f32 %v1348, %v1357
      %v1366 = vmul.f32 %v1352, %v1357
      %v1367 = vadd.f32 %v1308, %v1358
      %v1368 = vadd.f32 %v1309, %v1359
      %v1369 = vadd.f32 %v1310, %v1360
      %v1370 = vadd.f32 %v1311, %v1361
      %v1371 = vadd.f32 %v1312, %v1362
      %v1372 = vadd.f32 %v1313, %v1363
      %v1373 = vadd.f32 %v1314, %v1364
      %v1374 = vadd.f32 %v1315, %v1365
      %v1375 = vadd.f32 %v1316, %v1366
      %v1376 = vld [vmem:[%s1239 + $0x1] sm:$0x7]
      %v1377 = vld [vmem:[%s1239 + $0x9] sm:$0x7]
      %v1378 = vld [vmem:[%s1239 + $0x11] sm:$0x7]
      %v1379 = vld [vmem:[%s1239 + $0x41] sm:$0x7]
      %v1380 = vld [vmem:[%s1239 + $0x49] sm:$0x7]
      %v1381 = vld [vmem:[%s1239 + $0x51] sm:$0x7]
      %v1382 = vld [vmem:[%s1239 + $0x81] sm:$0x7]
      %v1383 = vld [vmem:[%s1239 + $0x89] sm:$0x7]
      %v1384 = vld [vmem:[%s1239 + $0x91] sm:$0x7]
      %v1385 = vld [vmem:[%s1 + $0x11] sm:$0x1]
      %1387 = vset.pattern.permute.xlu0 0
      %1388 = vperm.xlu0 %1387, %v1376
      %v1389 = vpop.permute.xlu0 %1388
      %1392 = vset.pattern.permute.xlu0 0
      %1393 = vperm.xlu0 %1392, %v1377
      %v1394 = vpop.permute.xlu0 %1393
      %1397 = vset.pattern.permute.xlu0 0
      %1398 = vperm.xlu0 %1397, %v1378
      %v1399 = vpop.permute.xlu0 %1398
      %1402 = vset.pattern.permute.xlu0 0
      %1403 = vperm.xlu0 %1402, %v1379
      %v1404 = vpop.permute.xlu0 %1403
      %1407 = vset.pattern.permute.xlu0 0
      %1408 = vperm.xlu0 %1407, %v1380
      %v1409 = vpop.permute.xlu0 %1408
      %1412 = vset.pattern.permute.xlu0 0
      %1413 = vperm.xlu0 %1412, %v1381
      %v1414 = vpop.permute.xlu0 %1413
      %1417 = vset.pattern.permute.xlu0 0
      %1418 = vperm.xlu0 %1417, %v1382
      %v1419 = vpop.permute.xlu0 %1418
      %1422 = vset.pattern.permute.xlu0 0
      %1423 = vperm.xlu0 %1422, %v1383
      %v1424 = vpop.permute.xlu0 %1423
      %1427 = vset.pattern.permute.xlu0 0
      %1428 = vperm.xlu0 %1427, %v1384
      %v1429 = vpop.permute.xlu0 %1428
      %v1431 = vlaneseq
      %v1432 = vshrl.u32 %v1431, 7
      %v1433 = vsub.s32 0, %v1432
      %v1434 = vrot.slane %v1385, %v1433
      %v1435 = vmul.f32 %v1389, %v1434
      %v1436 = vmul.f32 %v1394, %v1434
      %v1437 = vmul.f32 %v1399, %v1434
      %v1438 = vmul.f32 %v1404, %v1434
      %v1439 = vmul.f32 %v1409, %v1434
      %v1440 = vmul.f32 %v1414, %v1434
      %v1441 = vmul.f32 %v1419, %v1434
      %v1442 = vmul.f32 %v1424, %v1434
      %v1443 = vmul.f32 %v1429, %v1434
      %v1444 = vadd.f32 %v1367, %v1435
      %v1445 = vadd.f32 %v1368, %v1436
      %v1446 = vadd.f32 %v1369, %v1437
      %v1447 = vadd.f32 %v1370, %v1438
      %v1448 = vadd.f32 %v1371, %v1439
      %v1449 = vadd.f32 %v1372, %v1440
      %v1450 = vadd.f32 %v1373, %v1441
      %v1451 = vadd.f32 %v1374, %v1442
      %v1452 = vadd.f32 %v1375, %v1443
      %s1453 = scalar_lea.vmem %s165, 64
      %v1454 = vld [vmem:[%s1453] sm:$0x7]
      %v1455 = vld [vmem:[%s1453 + $0x8] sm:$0x7]
      %v1456 = vld [vmem:[%s1453 + $0x10] sm:$0x7]
      %v1457 = vld [vmem:[%s1453 + $0x40] sm:$0x7]
      %v1458 = vld [vmem:[%s1453 + $0x48] sm:$0x7]
      %v1459 = vld [vmem:[%s1453 + $0x50] sm:$0x7]
      %v1460 = vld [vmem:[%s1453 + $0x80] sm:$0x7]
      %v1461 = vld [vmem:[%s1453 + $0x88] sm:$0x7]
      %v1462 = vld [vmem:[%s1453 + $0x90] sm:$0x7]
      %v1463 = vld [vmem:[%s1 + $0x12] sm:$0x1]
      %1465 = vset.pattern.permute.xlu0 0
      %1466 = vperm.xlu0 %1465, %v1454
      %v1467 = vpop.permute.xlu0 %1466
      %1470 = vset.pattern.permute.xlu0 0
      %1471 = vperm.xlu0 %1470, %v1455
      %v1472 = vpop.permute.xlu0 %1471
      %1475 = vset.pattern.permute.xlu0 0
      %1476 = vperm.xlu0 %1475, %v1456
      %v1477 = vpop.permute.xlu0 %1476
      %1480 = vset.pattern.permute.xlu0 0
      %1481 = vperm.xlu0 %1480, %v1457
      %v1482 = vpop.permute.xlu0 %1481
      %1485 = vset.pattern.permute.xlu0 0
      %1486 = vperm.xlu0 %1485, %v1458
      %v1487 = vpop.permute.xlu0 %1486
      %1490 = vset.pattern.permute.xlu0 0
      %1491 = vperm.xlu0 %1490, %v1459
      %v1492 = vpop.permute.xlu0 %1491
      %1495 = vset.pattern.permute.xlu0 0
      %1496 = vperm.xlu0 %1495, %v1460
      %v1497 = vpop.permute.xlu0 %1496
      %1500 = vset.pattern.permute.xlu0 0
      %1501 = vperm.xlu0 %1500, %v1461
      %v1502 = vpop.permute.xlu0 %1501
      %1505 = vset.pattern.permute.xlu0 0
      %1506 = vperm.xlu0 %1505, %v1462
      %v1507 = vpop.permute.xlu0 %1506
      %v1509 = vlaneseq
      %v1510 = vshrl.u32 %v1509, 7
      %v1511 = vsub.s32 0, %v1510
      %v1512 = vrot.slane %v1463, %v1511
      %v1513 = vmul.f32 %v1467, %v1512
      %v1514 = vmul.f32 %v1472, %v1512
      %v1515 = vmul.f32 %v1477, %v1512
      %v1516 = vmul.f32 %v1482, %v1512
      %v1517 = vmul.f32 %v1487, %v1512
      %v1518 = vmul.f32 %v1492, %v1512
      %v1519 = vmul.f32 %v1497, %v1512
      %v1520 = vmul.f32 %v1502, %v1512
      %v1521 = vmul.f32 %v1507, %v1512
      %v1522 = vadd.f32 %v1444, %v1513
      %v1523 = vadd.f32 %v1445, %v1514
      %v1524 = vadd.f32 %v1446, %v1515
      %v1525 = vadd.f32 %v1447, %v1516
      %v1526 = vadd.f32 %v1448, %v1517
      %v1527 = vadd.f32 %v1449, %v1518
      %v1528 = vadd.f32 %v1450, %v1519
      %v1529 = vadd.f32 %v1451, %v1520
      %v1530 = vadd.f32 %v1452, %v1521
      %v1531 = vld [vmem:[%s1 + $0x13] sm:$0x1]
      %1532 = vset.pattern.permute.xlu0 1
      %1533 = vperm.xlu0 %1532, %v1454
      %v1534 = vpop.permute.xlu0 %1533
      %1536 = vset.pattern.permute.xlu0 1
      %1537 = vperm.xlu0 %1536, %v1455
      %v1538 = vpop.permute.xlu0 %1537
      %1540 = vset.pattern.permute.xlu0 1
      %1541 = vperm.xlu0 %1540, %v1456
      %v1542 = vpop.permute.xlu0 %1541
      %1544 = vset.pattern.permute.xlu0 1
      %1545 = vperm.xlu0 %1544, %v1457
      %v1546 = vpop.permute.xlu0 %1545
      %1548 = vset.pattern.permute.xlu0 1
      %1549 = vperm.xlu0 %1548, %v1458
      %v1550 = vpop.permute.xlu0 %1549
      %1552 = vset.pattern.permute.xlu0 1
      %1553 = vperm.xlu0 %1552, %v1459
      %v1554 = vpop.permute.xlu0 %1553
      %1556 = vset.pattern.permute.xlu0 1
      %1557 = vperm.xlu0 %1556, %v1460
      %v1558 = vpop.permute.xlu0 %1557
      %1560 = vset.pattern.permute.xlu0 1
      %1561 = vperm.xlu0 %1560, %v1461
      %v1562 = vpop.permute.xlu0 %1561
      %1564 = vset.pattern.permute.xlu0 1
      %1565 = vperm.xlu0 %1564, %v1462
      %v1566 = vpop.permute.xlu0 %1565
      %v1568 = vlaneseq
      %v1569 = vshrl.u32 %v1568, 7
      %v1570 = vsub.s32 0, %v1569
      %v1571 = vrot.slane %v1531, %v1570
      %v1572 = vmul.f32 %v1534, %v1571
      %v1573 = vmul.f32 %v1538, %v1571
      %v1574 = vmul.f32 %v1542, %v1571
      %v1575 = vmul.f32 %v1546, %v1571
      %v1576 = vmul.f32 %v1550, %v1571
      %v1577 = vmul.f32 %v1554, %v1571
      %v1578 = vmul.f32 %v1558, %v1571
      %v1579 = vmul.f32 %v1562, %v1571
      %v1580 = vmul.f32 %v1566, %v1571
      %v1581 = vadd.f32 %v1522, %v1572
      %v1582 = vadd.f32 %v1523, %v1573
      %v1583 = vadd.f32 %v1524, %v1574
      %v1584 = vadd.f32 %v1525, %v1575
      %v1585 = vadd.f32 %v1526, %v1576
      %v1586 = vadd.f32 %v1527, %v1577
      %v1587 = vadd.f32 %v1528, %v1578
      %v1588 = vadd.f32 %v1529, %v1579
      %v1589 = vadd.f32 %v1530, %v1580
      %v1590 = vld [vmem:[%s1453 + $0x1] sm:$0x7]
      %v1591 = vld [vmem:[%s1453 + $0x9] sm:$0x7]
      %v1592 = vld [vmem:[%s1453 + $0x11] sm:$0x7]
      %v1593 = vld [vmem:[%s1453 + $0x41] sm:$0x7]
      %v1594 = vld [vmem:[%s1453 + $0x49] sm:$0x7]
      %v1595 = vld [vmem:[%s1453 + $0x51] sm:$0x7]
      %v1596 = vld [vmem:[%s1453 + $0x81] sm:$0x7]
      %v1597 = vld [vmem:[%s1453 + $0x89] sm:$0x7]
      %v1598 = vld [vmem:[%s1453 + $0x91] sm:$0x7]
      %v1599 = vld [vmem:[%s1 + $0x14] sm:$0x1]
      %1601 = vset.pattern.permute.xlu0 0
      %1602 = vperm.xlu0 %1601, %v1590
      %v1603 = vpop.permute.xlu0 %1602
      %1606 = vset.pattern.permute.xlu0 0
      %1607 = vperm.xlu0 %1606, %v1591
      %v1608 = vpop.permute.xlu0 %1607
      %1611 = vset.pattern.permute.xlu0 0
      %1612 = vperm.xlu0 %1611, %v1592
      %v1613 = vpop.permute.xlu0 %1612
      %1616 = vset.pattern.permute.xlu0 0
      %1617 = vperm.xlu0 %1616, %v1593
      %v1618 = vpop.permute.xlu0 %1617
      %1621 = vset.pattern.permute.xlu0 0
      %1622 = vperm.xlu0 %1621, %v1594
      %v1623 = vpop.permute.xlu0 %1622
      %1626 = vset.pattern.permute.xlu0 0
      %1627 = vperm.xlu0 %1626, %v1595
      %v1628 = vpop.permute.xlu0 %1627
      %1631 = vset.pattern.permute.xlu0 0
      %1632 = vperm.xlu0 %1631, %v1596
      %v1633 = vpop.permute.xlu0 %1632
      %1636 = vset.pattern.permute.xlu0 0
      %1637 = vperm.xlu0 %1636, %v1597
      %v1638 = vpop.permute.xlu0 %1637
      %1641 = vset.pattern.permute.xlu0 0
      %1642 = vperm.xlu0 %1641, %v1598
      %v1643 = vpop.permute.xlu0 %1642
      %v1645 = vlaneseq
      %v1646 = vshrl.u32 %v1645, 7
      %v1647 = vsub.s32 0, %v1646
      %v1648 = vrot.slane %v1599, %v1647
      %v1649 = vmul.f32 %v1603, %v1648
      %v1650 = vmul.f32 %v1608, %v1648
      %v1651 = vmul.f32 %v1613, %v1648
      %v1652 = vmul.f32 %v1618, %v1648
      %v1653 = vmul.f32 %v1623, %v1648
      %v1654 = vmul.f32 %v1628, %v1648
      %v1655 = vmul.f32 %v1633, %v1648
      %v1656 = vmul.f32 %v1638, %v1648
      %v1657 = vmul.f32 %v1643, %v1648
      %v1658 = vadd.f32 %v1581, %v1649
      %v1659 = vadd.f32 %v1582, %v1650
      %v1660 = vadd.f32 %v1583, %v1651
      %v1661 = vadd.f32 %v1584, %v1652
      %v1662 = vadd.f32 %v1585, %v1653
      %v1663 = vadd.f32 %v1586, %v1654
      %v1664 = vadd.f32 %v1587, %v1655
      %v1665 = vadd.f32 %v1588, %v1656
      %v1666 = vadd.f32 %v1589, %v1657
      %v1667 = vld [vmem:[%s1453 + $0x4] sm:$0x7]
      %v1668 = vld [vmem:[%s1453 + $0xc] sm:$0x7]
      %v1669 = vld [vmem:[%s1453 + $0x14] sm:$0x7]
      %v1670 = vld [vmem:[%s1453 + $0x44] sm:$0x7]
      %v1671 = vld [vmem:[%s1453 + $0x4c] sm:$0x7]
      %v1672 = vld [vmem:[%s1453 + $0x54] sm:$0x7]
      %v1673 = vld [vmem:[%s1453 + $0x84] sm:$0x7]
      %v1674 = vld [vmem:[%s1453 + $0x8c] sm:$0x7]
      %v1675 = vld [vmem:[%s1453 + $0x94] sm:$0x7]
      %v1676 = vld [vmem:[%s1 + $0x15] sm:$0x1]
      %1678 = vset.pattern.permute.xlu0 0
      %1679 = vperm.xlu0 %1678, %v1667
      %v1680 = vpop.permute.xlu0 %1679
      %1683 = vset.pattern.permute.xlu0 0
      %1684 = vperm.xlu0 %1683, %v1668
      %v1685 = vpop.permute.xlu0 %1684
      %1688 = vset.pattern.permute.xlu0 0
      %1689 = vperm.xlu0 %1688, %v1669
      %v1690 = vpop.permute.xlu0 %1689
      %1693 = vset.pattern.permute.xlu0 0
      %1694 = vperm.xlu0 %1693, %v1670
      %v1695 = vpop.permute.xlu0 %1694
      %1698 = vset.pattern.permute.xlu0 0
      %1699 = vperm.xlu0 %1698, %v1671
      %v1700 = vpop.permute.xlu0 %1699
      %1703 = vset.pattern.permute.xlu0 0
      %1704 = vperm.xlu0 %1703, %v1672
      %v1705 = vpop.permute.xlu0 %1704
      %1708 = vset.pattern.permute.xlu0 0
      %1709 = vperm.xlu0 %1708, %v1673
      %v1710 = vpop.permute.xlu0 %1709
      %1713 = vset.pattern.permute.xlu0 0
      %1714 = vperm.xlu0 %1713, %v1674
      %v1715 = vpop.permute.xlu0 %1714
      %1718 = vset.pattern.permute.xlu0 0
      %1719 = vperm.xlu0 %1718, %v1675
      %v1720 = vpop.permute.xlu0 %1719
      %v1722 = vlaneseq
      %v1723 = vshrl.u32 %v1722, 7
      %v1724 = vsub.s32 0, %v1723
      %v1725 = vrot.slane %v1676, %v1724
      %v1726 = vmul.f32 %v1680, %v1725
      %v1727 = vmul.f32 %v1685, %v1725
      %v1728 = vmul.f32 %v1690, %v1725
      %v1729 = vmul.f32 %v1695, %v1725
      %v1730 = vmul.f32 %v1700, %v1725
      %v1731 = vmul.f32 %v1705, %v1725
      %v1732 = vmul.f32 %v1710, %v1725
      %v1733 = vmul.f32 %v1715, %v1725
      %v1734 = vmul.f32 %v1720, %v1725
      %v1735 = vadd.f32 %v1658, %v1726
      %v1736 = vadd.f32 %v1659, %v1727
      %v1737 = vadd.f32 %v1660, %v1728
      %v1738 = vadd.f32 %v1661, %v1729
      %v1739 = vadd.f32 %v1662, %v1730
      %v1740 = vadd.f32 %v1663, %v1731
      %v1741 = vadd.f32 %v1664, %v1732
      %v1742 = vadd.f32 %v1665, %v1733
      %v1743 = vadd.f32 %v1666, %v1734
      %v1744 = vld [vmem:[%s1 + $0x16] sm:$0x1]
      %1745 = vset.pattern.permute.xlu0 1
      %1746 = vperm.xlu0 %1745, %v1667
      %v1747 = vpop.permute.xlu0 %1746
      %1749 = vset.pattern.permute.xlu0 1
      %1750 = vperm.xlu0 %1749, %v1668
      %v1751 = vpop.permute.xlu0 %1750
      %1753 = vset.pattern.permute.xlu0 1
      %1754 = vperm.xlu0 %1753, %v1669
      %v1755 = vpop.permute.xlu0 %1754
      %1757 = vset.pattern.permute.xlu0 1
      %1758 = vperm.xlu0 %1757, %v1670
      %v1759 = vpop.permute.xlu0 %1758
      %1761 = vset.pattern.permute.xlu0 1
      %1762 = vperm.xlu0 %1761, %v1671
      %v1763 = vpop.permute.xlu0 %1762
      %1765 = vset.pattern.permute.xlu0 1
      %1766 = vperm.xlu0 %1765, %v1672
      %v1767 = vpop.permute.xlu0 %1766
      %1769 = vset.pattern.permute.xlu0 1
      %1770 = vperm.xlu0 %1769, %v1673
      %v1771 = vpop.permute.xlu0 %1770
      %1773 = vset.pattern.permute.xlu0 1
      %1774 = vperm.xlu0 %1773, %v1674
      %v1775 = vpop.permute.xlu0 %1774
      %1777 = vset.pattern.permute.xlu0 1
      %1778 = vperm.xlu0 %1777, %v1675
      %v1779 = vpop.permute.xlu0 %1778
      %v1781 = vlaneseq
      %v1782 = vshrl.u32 %v1781, 7
      %v1783 = vsub.s32 0, %v1782
      %v1784 = vrot.slane %v1744, %v1783
      %v1785 = vmul.f32 %v1747, %v1784
      %v1786 = vmul.f32 %v1751, %v1784
      %v1787 = vmul.f32 %v1755, %v1784
      %v1788 = vmul.f32 %v1759, %v1784
      %v1789 = vmul.f32 %v1763, %v1784
      %v1790 = vmul.f32 %v1767, %v1784
      %v1791 = vmul.f32 %v1771, %v1784
      %v1792 = vmul.f32 %v1775, %v1784
      %v1793 = vmul.f32 %v1779, %v1784
      %v1794 = vadd.f32 %v1735, %v1785
      %v1795 = vadd.f32 %v1736, %v1786
      %v1796 = vadd.f32 %v1737, %v1787
      %v1797 = vadd.f32 %v1738, %v1788
      %v1798 = vadd.f32 %v1739, %v1789
      %v1799 = vadd.f32 %v1740, %v1790
      %v1800 = vadd.f32 %v1741, %v1791
      %v1801 = vadd.f32 %v1742, %v1792
      %v1802 = vadd.f32 %v1743, %v1793
      %v1803 = vld [vmem:[%s1453 + $0x5] sm:$0x7]
      %v1804 = vld [vmem:[%s1453 + $0xd] sm:$0x7]
      %v1805 = vld [vmem:[%s1453 + $0x15] sm:$0x7]
      %v1806 = vld [vmem:[%s1453 + $0x45] sm:$0x7]
      %v1807 = vld [vmem:[%s1453 + $0x4d] sm:$0x7]
      %v1808 = vld [vmem:[%s1453 + $0x55] sm:$0x7]
      %v1809 = vld [vmem:[%s1453 + $0x85] sm:$0x7]
      %v1810 = vld [vmem:[%s1453 + $0x8d] sm:$0x7]
      %v1811 = vld [vmem:[%s1453 + $0x95] sm:$0x7]
      %v1812 = vld [vmem:[%s1 + $0x17] sm:$0x1]
      %1814 = vset.pattern.permute.xlu0 0
      %1815 = vperm.xlu0 %1814, %v1803
      %v1816 = vpop.permute.xlu0 %1815
      %1819 = vset.pattern.permute.xlu0 0
      %1820 = vperm.xlu0 %1819, %v1804
      %v1821 = vpop.permute.xlu0 %1820
      %1824 = vset.pattern.permute.xlu0 0
      %1825 = vperm.xlu0 %1824, %v1805
      %v1826 = vpop.permute.xlu0 %1825
      %1829 = vset.pattern.permute.xlu0 0
      %1830 = vperm.xlu0 %1829, %v1806
      %v1831 = vpop.permute.xlu0 %1830
      %1834 = vset.pattern.permute.xlu0 0
      %1835 = vperm.xlu0 %1834, %v1807
      %v1836 = vpop.permute.xlu0 %1835
      %1839 = vset.pattern.permute.xlu0 0
      %1840 = vperm.xlu0 %1839, %v1808
      %v1841 = vpop.permute.xlu0 %1840
      %1844 = vset.pattern.permute.xlu0 0
      %1845 = vperm.xlu0 %1844, %v1809
      %v1846 = vpop.permute.xlu0 %1845
      %1849 = vset.pattern.permute.xlu0 0
      %1850 = vperm.xlu0 %1849, %v1810
      %v1851 = vpop.permute.xlu0 %1850
      %1854 = vset.pattern.permute.xlu0 0
      %1855 = vperm.xlu0 %1854, %v1811
      %v1856 = vpop.permute.xlu0 %1855
      %v1858 = vlaneseq
      %v1859 = vshrl.u32 %v1858, 7
      %v1860 = vsub.s32 0, %v1859
      %v1861 = vrot.slane %v1812, %v1860
      %v1862 = vmul.f32 %v1816, %v1861
      %v1863 = vmul.f32 %v1821, %v1861
      %v1864 = vmul.f32 %v1826, %v1861
      %v1865 = vmul.f32 %v1831, %v1861
      %v1866 = vmul.f32 %v1836, %v1861
      %v1867 = vmul.f32 %v1841, %v1861
      %v1868 = vmul.f32 %v1846, %v1861
      %v1869 = vmul.f32 %v1851, %v1861
      %v1870 = vmul.f32 %v1856, %v1861
      %v1871 = vadd.f32 %v1794, %v1862
      %v1872 = vadd.f32 %v1795, %v1863
      %v1873 = vadd.f32 %v1796, %v1864
      %v1874 = vadd.f32 %v1797, %v1865
      %v1875 = vadd.f32 %v1798, %v1866
      %v1876 = vadd.f32 %v1799, %v1867
      %v1877 = vadd.f32 %v1800, %v1868
      %v1878 = vadd.f32 %v1801, %v1869
      %v1879 = vadd.f32 %v1802, %v1870
      %s1880 = scalar_lea.vmem %s165, 72
      %v1881 = vld [vmem:[%s1880] sm:$0x7]
      %v1882 = vld [vmem:[%s1880 + $0x8] sm:$0x7]
      %v1883 = vld [vmem:[%s1880 + $0x10] sm:$0x7]
      %v1884 = vld [vmem:[%s1880 + $0x40] sm:$0x7]
      %v1885 = vld [vmem:[%s1880 + $0x48] sm:$0x7]
      %v1886 = vld [vmem:[%s1880 + $0x50] sm:$0x7]
      %v1887 = vld [vmem:[%s1880 + $0x80] sm:$0x7]
      %v1888 = vld [vmem:[%s1880 + $0x88] sm:$0x7]
      %v1889 = vld [vmem:[%s1880 + $0x90] sm:$0x7]
      %v1890 = vld [vmem:[%s1 + $0x18] sm:$0x1]
      %1892 = vset.pattern.permute.xlu0 0
      %1893 = vperm.xlu0 %1892, %v1881
      %v1894 = vpop.permute.xlu0 %1893
      %1897 = vset.pattern.permute.xlu0 0
      %1898 = vperm.xlu0 %1897, %v1882
      %v1899 = vpop.permute.xlu0 %1898
      %1902 = vset.pattern.permute.xlu0 0
      %1903 = vperm.xlu0 %1902, %v1883
      %v1904 = vpop.permute.xlu0 %1903
      %1907 = vset.pattern.permute.xlu0 0
      %1908 = vperm.xlu0 %1907, %v1884
      %v1909 = vpop.permute.xlu0 %1908
      %1912 = vset.pattern.permute.xlu0 0
      %1913 = vperm.xlu0 %1912, %v1885
      %v1914 = vpop.permute.xlu0 %1913
      %1917 = vset.pattern.permute.xlu0 0
      %1918 = vperm.xlu0 %1917, %v1886
      %v1919 = vpop.permute.xlu0 %1918
      %1922 = vset.pattern.permute.xlu0 0
      %1923 = vperm.xlu0 %1922, %v1887
      %v1924 = vpop.permute.xlu0 %1923
      %1927 = vset.pattern.permute.xlu0 0
      %1928 = vperm.xlu0 %1927, %v1888
      %v1929 = vpop.permute.xlu0 %1928
      %1932 = vset.pattern.permute.xlu0 0
      %1933 = vperm.xlu0 %1932, %v1889
      %v1934 = vpop.permute.xlu0 %1933
      %v1936 = vlaneseq
      %v1937 = vshrl.u32 %v1936, 7
      %v1938 = vsub.s32 0, %v1937
      %v1939 = vrot.slane %v1890, %v1938
      %v1940 = vmul.f32 %v1894, %v1939
      %v1941 = vmul.f32 %v1899, %v1939
      %v1942 = vmul.f32 %v1904, %v1939
      %v1943 = vmul.f32 %v1909, %v1939
      %v1944 = vmul.f32 %v1914, %v1939
      %v1945 = vmul.f32 %v1919, %v1939
      %v1946 = vmul.f32 %v1924, %v1939
      %v1947 = vmul.f32 %v1929, %v1939
      %v1948 = vmul.f32 %v1934, %v1939
      %v1949 = vadd.f32 %v1871, %v1940
      %v1950 = vadd.f32 %v1872, %v1941
      %v1951 = vadd.f32 %v1873, %v1942
      %v1952 = vadd.f32 %v1874, %v1943
      %v1953 = vadd.f32 %v1875, %v1944
      %v1954 = vadd.f32 %v1876, %v1945
      %v1955 = vadd.f32 %v1877, %v1946
      %v1956 = vadd.f32 %v1878, %v1947
      %v1957 = vadd.f32 %v1879, %v1948
      %v1958 = vld [vmem:[%s1 + $0x19] sm:$0x1]
      %1959 = vset.pattern.permute.xlu0 1
      %1960 = vperm.xlu0 %1959, %v1881
      %v1961 = vpop.permute.xlu0 %1960
      %1963 = vset.pattern.permute.xlu0 1
      %1964 = vperm.xlu0 %1963, %v1882
      %v1965 = vpop.permute.xlu0 %1964
      %1967 = vset.pattern.permute.xlu0 1
      %1968 = vperm.xlu0 %1967, %v1883
      %v1969 = vpop.permute.xlu0 %1968
      %1971 = vset.pattern.permute.xlu0 1
      %1972 = vperm.xlu0 %1971, %v1884
      %v1973 = vpop.permute.xlu0 %1972
      %1975 = vset.pattern.permute.xlu0 1
      %1976 = vperm.xlu0 %1975, %v1885
      %v1977 = vpop.permute.xlu0 %1976
      %1979 = vset.pattern.permute.xlu0 1
      %1980 = vperm.xlu0 %1979, %v1886
      %v1981 = vpop.permute.xlu0 %1980
      %1983 = vset.pattern.permute.xlu0 1
      %1984 = vperm.xlu0 %1983, %v1887
      %v1985 = vpop.permute.xlu0 %1984
      %1987 = vset.pattern.permute.xlu0 1
      %1988 = vperm.xlu0 %1987, %v1888
      %v1989 = vpop.permute.xlu0 %1988
      %1991 = vset.pattern.permute.xlu0 1
      %1992 = vperm.xlu0 %1991, %v1889
      %v1993 = vpop.permute.xlu0 %1992
      %v1995 = vlaneseq
      %v1996 = vshrl.u32 %v1995, 7
      %v1997 = vsub.s32 0, %v1996
      %v1998 = vrot.slane %v1958, %v1997
      %v1999 = vmul.f32 %v1961, %v1998
      %v2000 = vmul.f32 %v1965, %v1998
      %v2001 = vmul.f32 %v1969, %v1998
      %v2002 = vmul.f32 %v1973, %v1998
      %v2003 = vmul.f32 %v1977, %v1998
      %v2004 = vmul.f32 %v1981, %v1998
      %v2005 = vmul.f32 %v1985, %v1998
      %v2006 = vmul.f32 %v1989, %v1998
      %v2007 = vmul.f32 %v1993, %v1998
      %v2008 = vadd.f32 %v1949, %v1999
      %v2009 = vadd.f32 %v1950, %v2000
      %v2010 = vadd.f32 %v1951, %v2001
      %v2011 = vadd.f32 %v1952, %v2002
      %v2012 = vadd.f32 %v1953, %v2003
      %v2013 = vadd.f32 %v1954, %v2004
      %v2014 = vadd.f32 %v1955, %v2005
      %v2015 = vadd.f32 %v1956, %v2006
      %v2016 = vadd.f32 %v1957, %v2007
      %v2017 = vld [vmem:[%s1880 + $0x1] sm:$0x7]
      %v2018 = vld [vmem:[%s1880 + $0x9] sm:$0x7]
      %v2019 = vld [vmem:[%s1880 + $0x11] sm:$0x7]
      %v2020 = vld [vmem:[%s1880 + $0x41] sm:$0x7]
      %v2021 = vld [vmem:[%s1880 + $0x49] sm:$0x7]
      %v2022 = vld [vmem:[%s1880 + $0x51] sm:$0x7]
      %v2023 = vld [vmem:[%s1880 + $0x81] sm:$0x7]
      %v2024 = vld [vmem:[%s1880 + $0x89] sm:$0x7]
      %v2025 = vld [vmem:[%s1880 + $0x91] sm:$0x7]
      %v2026 = vld [vmem:[%s1 + $0x1a] sm:$0x1]
      %2028 = vset.pattern.permute.xlu0 0
      %2029 = vperm.xlu0 %2028, %v2017
      %v2030 = vpop.permute.xlu0 %2029
      %2033 = vset.pattern.permute.xlu0 0
      %2034 = vperm.xlu0 %2033, %v2018
      %v2035 = vpop.permute.xlu0 %2034
      %2038 = vset.pattern.permute.xlu0 0
      %2039 = vperm.xlu0 %2038, %v2019
      %v2040 = vpop.permute.xlu0 %2039
      %2043 = vset.pattern.permute.xlu0 0
      %2044 = vperm.xlu0 %2043, %v2020
      %v2045 = vpop.permute.xlu0 %2044
      %2048 = vset.pattern.permute.xlu0 0
      %2049 = vperm.xlu0 %2048, %v2021
      %v2050 = vpop.permute.xlu0 %2049
      %2053 = vset.pattern.permute.xlu0 0
      %2054 = vperm.xlu0 %2053, %v2022
      %v2055 = vpop.permute.xlu0 %2054
      %2058 = vset.pattern.permute.xlu0 0
      %2059 = vperm.xlu0 %2058, %v2023
      %v2060 = vpop.permute.xlu0 %2059
      %2063 = vset.pattern.permute.xlu0 0
      %2064 = vperm.xlu0 %2063, %v2024
      %v2065 = vpop.permute.xlu0 %2064
      %2068 = vset.pattern.permute.xlu0 0
      %2069 = vperm.xlu0 %2068, %v2025
      %v2070 = vpop.permute.xlu0 %2069
      %v2072 = vlaneseq
      %v2073 = vshrl.u32 %v2072, 7
      %v2074 = vsub.s32 0, %v2073
      %v2075 = vrot.slane %v2026, %v2074
      %v2076 = vmul.f32 %v2030, %v2075
      %v2077 = vmul.f32 %v2035, %v2075
      %v2078 = vmul.f32 %v2040, %v2075
      %v2079 = vmul.f32 %v2045, %v2075
      %v2080 = vmul.f32 %v2050, %v2075
      %v2081 = vmul.f32 %v2055, %v2075
      %v2082 = vmul.f32 %v2060, %v2075
      %v2083 = vmul.f32 %v2065, %v2075
      %v2084 = vmul.f32 %v2070, %v2075
      %v2085 = vadd.f32 %v2008, %v2076
      %v2086 = vadd.f32 %v2009, %v2077
      %v2087 = vadd.f32 %v2010, %v2078
      %v2088 = vadd.f32 %v2011, %v2079
      %v2089 = vadd.f32 %v2012, %v2080
      %v2090 = vadd.f32 %v2013, %v2081
      %v2091 = vadd.f32 %v2014, %v2082
      %v2092 = vadd.f32 %v2015, %v2083
      %v2093 = vadd.f32 %v2016, %v2084
      %v2095 = vlaneseq
      %v2096 = vshrl.u32 %v2095, 7
      %v2097 = vsub.s32 0, %v2096
      %v2098 = vrot.slane %v171, %v2097
      %v2100 = vadd.f32 %v2085, %v2098
      %v2101 = vadd.f32 %v2086, %v2098
      %v2102 = vadd.f32 %v2087, %v2098
      %v2103 = vadd.f32 %v2088, %v2098
      %v2104 = vadd.f32 %v2089, %v2098
      %v2105 = vadd.f32 %v2090, %v2098
      %v2106 = vadd.f32 %v2091, %v2098
      %v2107 = vadd.f32 %v2092, %v2098
      %v2108 = vadd.f32 %v2093, %v2098
      %v2109 = vmul.f32 %v2100, 0.01
      %v2110 = vmul.f32 %v2101, 0.01
      %v2111 = vmul.f32 %v2102, 0.01
      %v2112 = vmul.f32 %v2103, 0.01
      %v2113 = vmul.f32 %v2104, 0.01
      %v2114 = vmul.f32 %v2105, 0.01
      %v2115 = vmul.f32 %v2106, 0.01
      %v2116 = vmul.f32 %v2107, 0.01
      %v2117 = vmul.f32 %v2108, 0.01
      %v2118 = vmax.f32 %v2100, %v2109
      %v2119 = vmax.f32 %v2101, %v2110
      %v2120 = vmax.f32 %v2102, %v2111
      %v2121 = vmax.f32 %v2103, %v2112
      %v2122 = vmax.f32 %v2104, %v2113
      %v2123 = vmax.f32 %v2105, %v2114
      %v2124 = vmax.f32 %v2106, %v2115
      %v2125 = vmax.f32 %v2107, %v2116
      %v2126 = vmax.f32 %v2108, %v2117
      %v2127 = vpack.c.bf16 %v2118, %v2118
      %v2128 = vpack.c.bf16 %v2119, %v2119
      %v2129 = vpack.c.bf16 %v2120, %v2120
      %v2130 = vpack.c.bf16 %v2121, %v2121
      %v2131 = vpack.c.bf16 %v2122, %v2122
      %v2132 = vpack.c.bf16 %v2123, %v2123
      %v2133 = vpack.c.bf16 %v2124, %v2124
      %v2134 = vpack.c.bf16 %v2125, %v2125
      %v2135 = vpack.c.bf16 %v2126, %v2126
      %vm2136 = vcmask 1041408
      %vm2137 = vsmask.f32 1280
      %vm2138 = vmand %vm2136, %vm2137
      %v2139 = vld [vmem:[%s170] sm:$0x3]
      %v2140 = vsel %vm2138, %v2127, %v2139
      %2141 = vst [vmem:[%s170] sm:$0x3] %v2140
      %v2142 = vld [vmem:[%s170 + $0x2] sm:$0x3]
      %v2143 = vsel %vm2138, %v2128, %v2142
      %2144 = vst [vmem:[%s170 + $0x2] sm:$0x3] %v2143
      %v2145 = vld [vmem:[%s170 + $0x4] sm:$0x3]
      %v2146 = vsel %vm2138, %v2129, %v2145
      %2147 = vst [vmem:[%s170 + $0x4] sm:$0x3] %v2146
      %v2148 = vld [vmem:[%s170 + $0x6] sm:$0x3]
      %v2149 = vsel %vm2138, %v2130, %v2148
      %2150 = vst [vmem:[%s170 + $0x6] sm:$0x3] %v2149
      %v2151 = vld [vmem:[%s170 + $0x8] sm:$0x3]
      %v2152 = vsel %vm2138, %v2131, %v2151
      %2153 = vst [vmem:[%s170 + $0x8] sm:$0x3] %v2152
      %v2154 = vld [vmem:[%s170 + $0xa] sm:$0x3]
      %v2155 = vsel %vm2138, %v2132, %v2154
      %2156 = vst [vmem:[%s170 + $0xa] sm:$0x3] %v2155
      %v2157 = vld [vmem:[%s170 + $0xc] sm:$0x3]
      %v2158 = vsel %vm2138, %v2133, %v2157
      %2159 = vst [vmem:[%s170 + $0xc] sm:$0x3] %v2158
      %v2160 = vld [vmem:[%s170 + $0xe] sm:$0x3]
      %v2161 = vsel %vm2138, %v2134, %v2160
      %2162 = vst [vmem:[%s170 + $0xe] sm:$0x3] %v2161
      %v2163 = vld [vmem:[%s170 + $0x10] sm:$0x3]
      %v2164 = vsel %vm2138, %v2135, %v2163
      %2165 = vst [vmem:[%s170 + $0x10] sm:$0x3] %v2164
      %p2166 = scmp.lt.s32.totalorder %s14, 1
      %s2167 = scalar_select %p2166, %s14, 1
      %s2168 = smul.addr %s2167, 9
      %s2169 = smul.addr %s2168, 2
      %s2170 = scalar_lea.vmem %s3, %s2169
      // Predicated region
      $region33: #{wrapper_ordinal_net_forward.3} parent=31 // pred_check
        %p2171 = pneg %p100
      $region34: #{wrapper_ordinal_net_forward.3} parent=31 // pred_check_branch
        %2173 = sbr.rel (%p2171) target = $region36
      $region35: #{wrapper_ordinal_net_forward.3} parent=31 // pred_region
        _
      $region36: #{wrapper_ordinal_net_forward.3} parent=31 // pred_fallthru
        _
    $region32: #{wrapper_ordinal_net_forward.3} parent=5 // pred_fallthru
      _
    %p2174 = scmp.le.s32.totalorder 2, %s9
    // Predicated region
    $region37: #{wrapper_ordinal_net_forward.3} parent=5 // pred_check
      %p2175 = pneg %p2174
    $region38: #{wrapper_ordinal_net_forward.3} parent=5 // pred_check_branch
      %2177 = sbr.rel (%p2175) target = $region40
    $region39: #{wrapper_ordinal_net_forward.3} parent=5 // pred_region
      %s2178 = ssub.s32 %s9, 2
      // Predicated region
      $region41: #{wrapper_ordinal_net_forward.3} parent=39 // pred_check
        %p2179 = pneg %p106
      $region42: #{wrapper_ordinal_net_forward.3} parent=39 // pred_check_branch
        %2181 = sbr.rel (%p2179) target = $region44
      $region43: #{wrapper_ordinal_net_forward.3} parent=39 // pred_region
        %p2182 = scmp.lt.s32.totalorder %s15, 1
        %s2183 = scalar_select %p2182, %s15, 1
        %s2184 = smul.addr %s2183, 9
        %s2185 = smul.addr %s2184, 2
        %s2186 = scalar_lea.vmem %s3, %s2185
      $region44: #{wrapper_ordinal_net_forward.3} parent=39 // pred_fallthru
        _
    $region40: #{wrapper_ordinal_net_forward.3} parent=5 // pred_fallthru
      _
  $region6: #{wrapper_ordinal_net_forward.3} parent=0 // loop_footer
    %s13 = sadd.s32 1, %s9
  $region7: #{wrapper_ordinal_net_forward.3} parent=0 // loop_footer_branch
    %8 = sbr.rel target = $region3
  $region8: #{wrapper_ordinal_net_forward.3} parent=0 // loop_exit
    _

// kernel: wrapper_ordinal_net_forward.4
$region0: #{wrapper_ordinal_net_forward.4}
  #allocation0 [shape = 'u32[]', space=smem, size = 0x4, offset = 0x4, fixed_abs, tag = 'smem constant byte address 0x4 - core index']
  #allocation1 [shape = 'u32[144,128]{1,0:T(1,128)}', space=vmem, size = 0x12000, scoped, tag = 'internal scratch']
  %s0 = inlined_call_operand.vmem [shape: bf16[2,2,4,4,256], index: 0, kind: input, shape index: {}]
  %s1 = inlined_call_operand.hbm [shape: bf16[3456,128], index: 1, kind: input, shape index: {}]
  %s2 = inlined_call_operand.vmem [shape: f32[1,128], index: 2, kind: input, shape index: {}]
  %s3 = inlined_call_operand.vmem [shape: bf16[2,1,1,1,128], index: 3, kind: output, shape index: {}]
  %s4 = sld [smem:[#allocation0]]
  $region49: #{wrapper_ordinal_net_forward.4} parent=0
    _
  %s6 = ssub.s32 1, %s4
  %s7 = scalar_select 0, %s6, %s4
  $region1: #{wrapper_ordinal_net_forward.4} parent=0
    #allocation2 [shape = 'u8[884736]{0}', space=vmem, size = 0xd8000, scoped, tag = 'input window, operand 1, single buffered']
    #allocation3 [shape = 's32[2]{0}', space=sflag, size = 0x8, scoped, tag = 'scoped memory for wrapper_ordinal_net_forward.4']
    %8 = vsyncpa [#allocation3], 0
    loop: start=0, step=1, limit=4
    $region2: #{wrapper_ordinal_net_forward.4} parent=1 // loop_pre_header
      _
    $region3: #{wrapper_ordinal_net_forward.4} parent=1 // loop_header
      %s10 = sphi 0, %s14
      %p11 = scmp.ge.s32.totalorder %s10, 4
      %s20 = sphi 0, %s22
      %s23 = sphi 0, %s20
      %s24 = sphi 0, %s23
      %s40 = sphi 0, %s24
      %s44 = sphi 0, %s44
      %s46 = sphi 0, %s44
      %s47 = sphi 0, %s46
      %s61 = sphi 0, %s47
      %s65 = sphi 0, %s65
      %s67 = sphi 0, %s65
      %s68 = sphi 0, %s67
      %s82 = sphi 0, %s68
      %s88 = sphi 0, %s90
      %s91 = sphi 0, %s88
      %s92 = sphi 0, %s91
      %s108 = sphi 0, %s92
    $region4: #{wrapper_ordinal_net_forward.4} parent=1 // loop_header_branch
      %13 = sbr.rel (%p11) target = $region8
    $region5: #{wrapper_ordinal_net_forward.4} parent=1 // loop_body
      %s15 = ssub.s32 %s10, 1
      %s16 = ssub.s32 %s10, 2
      %s17 = sadd.s32 %s10, 1
      %s18 = ssub.s32 %s10, %s17
      %p19 = scmp.eq.s32.totalorder %s18, 0
      %s21 = sadd.s32 %s20, 1
      %s22 = scalar_select %p19, %s20, %s21
      %p25 = pneg %p19
      %p26 = scmp.eq.s32.totalorder %s10, 1
      %p27 = por %p25, %p26
      %p28 = scmp.ne.s32.totalorder %s20, %s23
      %p29 = scmp.eq.s32.totalorder %s10, 0
      %p30 = por %p28, %p29
      %p31 = scmp.ne.s32.totalorder %s20, %s23
      %p32 = scmp.eq.s32.totalorder %s15, 1
      %p33 = por %p31, %p32
      %p34 = scmp.ne.s32.totalorder %s23, %s24
      %p35 = scmp.eq.s32.totalorder %s15, 0
      %p36 = por %p34, %p35
      %p37 = scmp.ne.s32.totalorder %s23, %s24
      %p38 = scmp.eq.s32.totalorder %s16, 1
      %p39 = por %p37, %p38
      %p41 = scmp.ne.s32.totalorder %s24, %s40
      %p42 = scmp.eq.s32.totalorder %s16, 0
      %p43 = por %p41, %p42
      %s45 = sadd.s32 %s44, 1
      %p48 = scmp.eq.s32.totalorder %s10, 1
      %p49 = scmp.ne.s32.totalorder %s44, %s46
      %p50 = scmp.eq.s32.totalorder %s10, 0
      %p51 = por %p49, %p50
      %p52 = scmp.ne.s32.totalorder %s44, %s46
      %p53 = scmp.eq.s32.totalorder %s15, 1
      %p54 = por %p52, %p53
      %p55 = scmp.ne.s32.totalorder %s46, %s47
      %p56 = scmp.eq.s32.totalorder %s15, 0
      %p57 = por %p55, %p56
      %p58 = scmp.ne.s32.totalorder %s46, %s47
      %p59 = scmp.eq.s32.totalorder %s16, 1
      %p60 = por %p58, %p59
      %p62 = scmp.ne.s32.totalorder %s47, %s61
      %p63 = scmp.eq.s32.totalorder %s16, 0
      %p64 = por %p62, %p63
      %s66 = sadd.s32 %s65, 1
      %p69 = scmp.eq.s32.totalorder %s10, 1
      %p70 = scmp.ne.s32.totalorder %s65, %s67
      %p71 = scmp.eq.s32.totalorder %s10, 0
      %p72 = por %p70, %p71
      %p73 = scmp.ne.s32.totalorder %s65, %s67
      %p74 = scmp.eq.s32.totalorder %s15, 1
      %p75 = por %p73, %p74
      %p76 = scmp.ne.s32.totalorder %s67, %s68
      %p77 = scmp.eq.s32.totalorder %s15, 0
      %p78 = por %p76, %p77
      %p79 = scmp.ne.s32.totalorder %s67, %s68
      %p80 = scmp.eq.s32.totalorder %s16, 1
      %p81 = por %p79, %p80
      %p83 = scmp.ne.s32.totalorder %s68, %s82
      %p84 = scmp.eq.s32.totalorder %s16, 0
      %p85 = por %p83, %p84
      %s86 = ssub.s32 %s10, %s17
      %p87 = scmp.eq.s32.totalorder %s86, 0
      %s89 = sadd.s32 %s88, 1
      %s90 = scalar_select %p87, %s88, %s89
      %p93 = pneg %p87
      %p94 = scmp.eq.s32.totalorder %s10, 1
      %p95 = por %p93, %p94
      %p96 = scmp.ne.s32.totalorder %s88, %s91
      %p97 = scmp.eq.s32.totalorder %s10, 0
      %p98 = por %p96, %p97
      %p99 = scmp.ne.s32.totalorder %s88, %s91
      %p100 = scmp.eq.s32.totalorder %s15, 1
      %p101 = por %p99, %p100
      %p102 = scmp.ne.s32.totalorder %s91, %s92
      %p103 = scmp.eq.s32.totalorder %s15, 0
      %p104 = por %p102, %p103
      %p105 = scmp.ne.s32.totalorder %s91, %s92
      %p106 = scmp.eq.s32.totalorder %s16, 1
      %p107 = por %p105, %p106
      %p109 = scmp.ne.s32.totalorder %s92, %s108
      %p110 = scmp.eq.s32.totalorder %s16, 0
      %p111 = por %p109, %p110
      %p112 = scmp.le.s32.totalorder 1, %s10
      %p113 = scmp.lt.s32.totalorder %s10, 3
      %p114 = pnand %p112, %p113
      %p115 = pneg %p114
      // Predicated region
      $region9: #{wrapper_ordinal_net_forward.4} parent=5 // pred_check
        _
      $region10: #{wrapper_ordinal_net_forward.4} parent=5 // pred_check_branch
        %117 = sbr.rel (%p114) target = $region12
      $region11: #{wrapper_ordinal_net_forward.4} parent=5 // pred_region
        %s118 = ssub.s32 %s10, 1
        // Predicated region
        $region13: #{wrapper_ordinal_net_forward.4} parent=11 // pred_check
          %p119 = pneg %p57
        $region14: #{wrapper_ordinal_net_forward.4} parent=11 // pred_check_branch
          %121 = sbr.rel (%p119) target = $region16
        $region15: #{wrapper_ordinal_net_forward.4} parent=11 // pred_region
          %s123 = ssub.s32 27648, 27648
          %124 = vsyncadd [#allocation3], %s123
          %s125 = sshll.u32 [#allocation2], 4
          %s126 = int_to_ptr.vmem [resolvable:$true] %s125
          %131 = dma.hbm_to_vmem [thread:$0]  %s1, 27648, %s126, [#allocation3], 64, 64, 4
        $region16: #{wrapper_ordinal_net_forward.4} parent=11 // pred_fallthru
          _
        // Predicated region
        $region17: #{wrapper_ordinal_net_forward.4} parent=11 // pred_check
          %p132 = pneg %p78
        $region18: #{wrapper_ordinal_net_forward.4} parent=11 // pred_check_branch
          %134 = sbr.rel (%p132) target = $region20
        $region19: #{wrapper_ordinal_net_forward.4} parent=11 // pred_region
          _
        $region20: #{wrapper_ordinal_net_forward.4} parent=11 // pred_fallthru
          _
      $region12: #{wrapper_ordinal_net_forward.4} parent=5 // pred_fallthru
        _
      %p135 = scmp.lt.s32.totalorder %s10, 2
      // Predicated region
      $region21: #{wrapper_ordinal_net_forward.4} parent=5 // pred_check
        %p136 = pneg %p135
      $region22: #{wrapper_ordinal_net_forward.4} parent=5 // pred_check_branch
        %138 = sbr.rel (%p136) target = $region24
      $region23: #{wrapper_ordinal_net_forward.4} parent=5 // pred_region
        // Predicated region
        $region25: #{wrapper_ordinal_net_forward.4} parent=23 // pred_check
          %p139 = pneg %p30
        $region26: #{wrapper_ordinal_net_forward.4} parent=23 // pred_check_branch
          %141 = sbr.rel (%p139) target = $region28
        $region27: #{wrapper_ordinal_net_forward.4} parent=23 // pred_region
          %p142 = scmp.lt.s32.totalorder %s10, 1
          %s143 = scalar_select %p142, %s10, 1
          %s144 = smul.addr %s143, 16
          %s145 = smul.addr %s144, 2
          %s146 = scalar_lea.vmem %s0, %s145
        $region28: #{wrapper_ordinal_net_forward.4} parent=23 // pred_fallthru
          _
      $region24: #{wrapper_ordinal_net_forward.4} parent=5 // pred_fallthru
        _
      %p147 = scmp.le.s32.totalorder 1, %s10
      %p148 = scmp.lt.s32.totalorder %s10, 3
      %p149 = pnand %p147, %p148
      %p150 = pneg %p149
      // Predicated region
      $region29: #{wrapper_ordinal_net_forward.4} parent=5 // pred_check
        _
      $region30: #{wrapper_ordinal_net_forward.4} parent=5 // pred_check_branch
        %152 = sbr.rel (%p149) target = $region32
      $region31: #{wrapper_ordinal_net_forward.4} parent=5 // pred_region
        %s153 = ssub.s32 %s10, 1
        // Predicated region
        $region33: #{wrapper_ordinal_net_forward.4} parent=31 // pred_check
          %p154 = pneg %p57
        $region34: #{wrapper_ordinal_net_forward.4} parent=31 // pred_check_branch
          %156 = sbr.rel (%p154) target = $region36
        $region35: #{wrapper_ordinal_net_forward.4} parent=31 // pred_region
          %157 = dma.done [#allocation3], 27648
        $region36: #{wrapper_ordinal_net_forward.4} parent=31 // pred_fallthru
          _
        %p158 = scmp.lt.s32.totalorder %s15, 1
        %s159 = scalar_select %p158, %s15, 1
        %s160 = smul.addr %s159, 16
        %s161 = smul.addr %s160, 2
        %s162 = scalar_lea.vmem %s0, %s161
        %p163 = pneg %p36
        %p164 = pneg %p33
        %p165 = pneg %p57
        %p166 = pneg %p54
        %p167 = pneg %p78
        %p168 = pneg %p75
        %p169 = pneg %p104
        %p170 = pneg %p101
        %p171 = scmp.lt.s32.totalorder %s15, 1
        %s172 = scalar_select %p171, %s15, 1
        %s173 = scalar_lea.vmem %s3, %s172
        %p174 = scmp.lt.s32.totalorder %s15, 1
        %s175 = scalar_select %p174, %s15, 1
        %s176 = smul.addr %s175, 16
        %s177 = smul.addr %s176, 2
        %s178 = scalar_lea.vmem %s0, %s177
        %p179 = scmp.lt.s32.totalorder %s15, 1
        %s180 = scalar_select %p179, %s15, 1
        %s181 = scalar_lea.vmem %s3, %s180
        %v183 = vld [vmem:[%s2] sm:$0x1]
        %v184 = vld [vmem:[%s178] sm:$0x1]
        %v185 = vld [vmem:[#allocation2] sm:$0xf]
        %v186 = vld [vmem:[#allocation2 + $0x4] sm:$0xf]
        %v187 = vld [vmem:[#allocation2 + $0x8] sm:$0xf]
        %v188 = vld [vmem:[#allocation2 + $0xc] sm:$0xf]
        %v189 = vld [vmem:[#allocation2 + $0x10] sm:$0xf]
        %v190 = vld [vmem:[#allocation2 + $0x14] sm:$0xf]
        %v191 = vld [vmem:[#allocation2 + $0x18] sm:$0xf]
        %v192 = vld [vmem:[#allocation2 + $0x1c] sm:$0xf]
        %v193 = vld [vmem:[#allocation2 + $0x20] sm:$0xf]
        %v194 = vld [vmem:[#allocation2 + $0x24] sm:$0xf]
        %v195 = vld [vmem:[#allocation2 + $0x28] sm:$0xf]
        %v196 = vld [vmem:[#allocation2 + $0x2c] sm:$0xf]
        %v197 = vld [vmem:[#allocation2 + $0x30] sm:$0xf]
        %v198 = vld [vmem:[#allocation2 + $0x34] sm:$0xf]
        %v199 = vld [vmem:[#allocation2 + $0x38] sm:$0xf]
        %v200 = vld [vmem:[#allocation2 + $0x3c] sm:$0xf]
        %v201 = vld [vmem:[%s178 + $0x2] sm:$0x1]
        %v202 = vld [vmem:[#allocation2 + $0x40] sm:$0xf]
        %v203 = vld [vmem:[#allocation2 + $0x44] sm:$0xf]
        %v204 = vld [vmem:[#allocation2 + $0x48] sm:$0xf]
        %v205 = vld [vmem:[#allocation2 + $0x4c] sm:$0xf]
        %v206 = vld [vmem:[#allocation2 + $0x50] sm:$0xf]
        %v207 = vld [vmem:[#allocation2 + $0x54] sm:$0xf]
        %v208 = vld [vmem:[#allocation2 + $0x58] sm:$0xf]
        %v209 = vld [vmem:[#allocation2 + $0x5c] sm:$0xf]
        %v210 = vld [vmem:[#allocation2 + $0x60] sm:$0xf]
        %v211 = vld [vmem:[#allocation2 + $0x64] sm:$0xf]
        %v212 = vld [vmem:[#allocation2 + $0x68] sm:$0xf]
        %v213 = vld [vmem:[#allocation2 + $0x6c] sm:$0xf]
        %v214 = vld [vmem:[#allocation2 + $0x70] sm:$0xf]
        %v215 = vld [vmem:[#allocation2 + $0x74] sm:$0xf]
        %v216 = vld [vmem:[#allocation2 + $0x78] sm:$0xf]
        %v217 = vld [vmem:[#allocation2 + $0x7c] sm:$0xf]
        %v234 = vunpack.c.l.b16 %v202
        %v235 = vunpack.c.l.b16 %v203
        %v236 = vunpack.c.l.b16 %v204
        %v237 = vunpack.c.l.b16 %v205
        %v238 = vunpack.c.l.b16 %v206
        %v239 = vunpack.c.l.b16 %v207
        %v240 = vunpack.c.l.b16 %v208
        %v241 = vunpack.c.l.b16 %v209
        %v242 = vunpack.c.l.b16 %v210
        %v243 = vunpack.c.l.b16 %v211
        %v244 = vunpack.c.l.b16 %v212
        %v245 = vunpack.c.l.b16 %v213
        %v246 = vunpack.c.l.b16 %v214
        %v247 = vunpack.c.l.b16 %v215
        %v248 = vunpack.c.l.b16 %v216
        %v249 = vunpack.c.l.b16 %v217
        %v250 = vpack.c.b16 %v235, %v234
        %v251 = vpack.c.b16 %v237, %v236
        %v252 = vpack.c.b16 %v239, %v238
        %v253 = vpack.c.b16 %v241, %v240
        %v254 = vpack.c.b16 %v243, %v242
        %v255 = vpack.c.b16 %v245, %v244
        %v256 = vpack.c.b16 %v247, %v246
        %v257 = vpack.c.b16 %v249, %v248
        %266 = vmatprep.subr.bf16.mxu0 0
        %267 = vmatpush1.bf16.msra.mxu0 %v257
        %268 = vmatprep.subr.bf16.mxu0 0
        %269 = vmatpush1.bf16.msra.mxu0 %v256
        %270 = vmatprep.subr.bf16.mxu0 0
        %271 = vmatpush1.bf16.msra.mxu0 %v255
        %272 = vmatprep.subr.bf16.mxu0 0
        %273 = vmatpush1.bf16.msra.mxu0 %v254
        %274 = vmatprep.subr.bf16.mxu0 0
        %275 = vmatpush1.bf16.msra.mxu0 %v253
        %276 = vmatprep.subr.bf16.mxu0 0
        %277 = vmatpush1.bf16.msra.mxu0 %v252
        %278 = vmatprep.subr.bf16.mxu0 0
        %279 = vmatpush1.bf16.msra.mxu0 %v251
        %280 = vmatprep.subr.bf16.mxu0 0
        %281 = vmatpush1.bf16.msra.mxu0 %v250
        %282 = vmatprep.subr.bf16.mxu0 0
        %283 = vmatpush2.bf16.msra.mxu0 0
        %284 = vmatprep.subr.bf16.mxu0 0
        %285 = vmatpush2.bf16.msra.mxu0 0
        %286 = vmatprep.subr.bf16.mxu0 0
        %287 = vmatpush2.bf16.msra.mxu0 0
        %288 = vmatprep.subr.bf16.mxu0 0
        %289 = vmatpush2.bf16.msra.mxu0 0
        %290 = vmatprep.subr.bf16.mxu0 0
        %291 = vmatpush2.bf16.msra.mxu0 0
        %292 = vmatprep.subr.bf16.mxu0 0
        %293 = vmatpush2.bf16.msra.mxu0 0
        %294 = vmatprep.subr.bf16.mxu0 0
        %295 = vmatpush2.bf16.msra.mxu0 0
        %296 = vmatprep.subr.bf16.mxu0 0
        %297 = vmatpush2.bf16.msra.mxu0 0
        %298 = vmatprep.mubr.bf16.mxu0 0
        %299 = vmatmul.mubr.bf16.gmra.mxu0 %v201
        %v300 = vpop.f32.mrf.mxu0
        %v301 = vadd.f32 0.0, %v300
        %v302 = vpop.f32.mrf.mxu0
        %v303 = vpop.f32.mrf.mxu0
        %v304 = vpop.f32.mrf.mxu0
        %305 = vdwg.mxu0
        %v322 = vunpack.c.l.b16 %v185
        %v323 = vunpack.c.l.b16 %v186
        %v324 = vunpack.c.l.b16 %v187
        %v325 = vunpack.c.l.b16 %v188
        %v326 = vunpack.c.l.b16 %v189
        %v327 = vunpack.c.l.b16 %v190
        %v328 = vunpack.c.l.b16 %v191
        %v329 = vunpack.c.l.b16 %v192
        %v330 = vunpack.c.l.b16 %v193
        %v331 = vunpack.c.l.b16 %v194
        %v332 = vunpack.c.l.b16 %v195
        %v333 = vunpack.c.l.b16 %v196
        %v334 = vunpack.c.l.b16 %v197
        %v335 = vunpack.c.l.b16 %v198
        %v336 = vunpack.c.l.b16 %v199
        %v337 = vunpack.c.l.b16 %v200
        %v338 = vpack.c.b16 %v323, %v322
        %v339 = vpack.c.b16 %v325, %v324
        %v340 = vpack.c.b16 %v327, %v326
        %v341 = vpack.c.b16 %v329, %v328
        %v342 = vpack.c.b16 %v331, %v330
        %v343 = vpack.c.b16 %v333, %v332
        %v344 = vpack.c.b16 %v335, %v334
        %v345 = vpack.c.b16 %v337, %v336
        %354 = vmatprep.subr.bf16.mxu0 0
        %355 = vmatpush1.bf16.msra.mxu0 %v345
        %356 = vmatprep.subr.bf16.mxu0 0
        %357 = vmatpush1.bf16.msra.mxu0 %v344
        %358 = vmatprep.subr.bf16.mxu0 0
        %359 = vmatpush1.bf16.msra.mxu0 %v343
        %360 = vmatprep.subr.bf16.mxu0 0
        %361 = vmatpush1.bf16.msra.mxu0 %v342
        %362 = vmatprep.subr.bf16.mxu0 0
        %363 = vmatpush1.bf16.msra.mxu0 %v341
        %364 = vmatprep.subr.bf16.mxu0 0
        %365 = vmatpush1.bf16.msra.mxu0 %v340
        %366 = vmatprep.subr.bf16.mxu0 0
        %367 = vmatpush1.bf16.msra.mxu0 %v339
        %368 = vmatprep.subr.bf16.mxu0 0
        %369 = vmatpush1.bf16.msra.mxu0 %v338
        %370 = vmatprep.subr.bf16.mxu0 0
        %371 = vmatpush2.bf16.msra.mxu0 0
        %372 = vmatprep.subr.bf16.mxu0 0
        %373 = vmatpush2.bf16.msra.mxu0 0
        %374 = vmatprep.subr.bf16.mxu0 0
        %375 = vmatpush2.bf16.msra.mxu0 0
        %376 = vmatprep.subr.bf16.mxu0 0
        %377 = vmatpush2.bf16.msra.mxu0 0
        %378 = vmatprep.subr.bf16.mxu0 0
        %379 = vmatpush2.bf16.msra.mxu0 0
        %380 = vmatprep.subr.bf16.mxu0 0
        %381 = vmatpush2.bf16.msra.mxu0 0
        %382 = vmatprep.subr.bf16.mxu0 0
        %383 = vmatpush2.bf16.msra.mxu0 0
        %384 = vmatprep.subr.bf16.mxu0 0
        %385 = vmatpush2.bf16.msra.mxu0 0
        %386 = vmatprep.mubr.bf16.mxu0 0
        %387 = vmatmul.mubr.bf16.gmra.mxu0 %v184
        %v388 = vpop.f32.mrf.mxu0
        %v389 = vadd.f32 %v301, %v388
        %v390 = vpop.f32.mrf.mxu0
        %v391 = vpop.f32.mrf.mxu0
        %v392 = vpop.f32.mrf.mxu0
        %393 = vdwg.mxu0
        %v394 = vld [vmem:[#allocation2 + $0x80] sm:$0xf]
        %v395 = vld [vmem:[#allocation2 + $0x84] sm:$0xf]
        %v396 = vld [vmem:[#allocation2 + $0x88] sm:$0xf]
        %v397 = vld [vmem:[#allocation2 + $0x8c] sm:$0xf]
        %v398 = vld [vmem:[#allocation2 + $0x90] sm:$0xf]
        %v399 = vld [vmem:[#allocation2 + $0x94] sm:$0xf]
        %v400 = vld [vmem:[#allocation2 + $0x98] sm:$0xf]
        %v401 = vld [vmem:[#allocation2 + $0x9c] sm:$0xf]
        %v402 = vld [vmem:[#allocation2 + $0xa0] sm:$0xf]
        %v403 = vld [vmem:[#allocation2 + $0xa4] sm:$0xf]
        %v404 = vld [vmem:[#allocation2 + $0xa8] sm:$0xf]
        %v405 = vld [vmem:[#allocation2 + $0xac] sm:$0xf]
        %v406 = vld [vmem:[#allocation2 + $0xb0] sm:$0xf]
        %v407 = vld [vmem:[#allocation2 + $0xb4] sm:$0xf]
        %v408 = vld [vmem:[#allocation2 + $0xb8] sm:$0xf]
        %v409 = vld [vmem:[#allocation2 + $0xbc] sm:$0xf]
        %v412 = vunpack.c.l.s4 1983009808
        %v413 = vunpack.c.0.s8 %v412
        %v414 = vlaneseq
        %v415 = vshrl.u32 %v414, 7
        %v416 = vsub.s32 %v413, %v415
        %v417 = vrot.slane %v184, %v416
        %v419 = vshrl.u32 %v417, 16
        %v438 = vunpack.c.l.b16 %v394
        %v439 = vunpack.c.l.b16 %v395
        %v440 = vunpack.c.l.b16 %v396
        %v441 = vunpack.c.l.b16 %v397
        %v442 = vunpack.c.l.b16 %v398
        %v443 = vunpack.c.l.b16 %v399
        %v444 = vunpack.c.l.b16 %v400
        %v445 = vunpack.c.l.b16 %v401
        %v446 = vunpack.c.l.b16 %v402
        %v447 = vunpack.c.l.b16 %v403
        %v448 = vunpack.c.l.b16 %v404
        %v449 = vunpack.c.l.b16 %v405
        %v450 = vunpack.c.l.b16 %v406
        %v451 = vunpack.c.l.b16 %v407
        %v452 = vunpack.c.l.b16 %v408
        %v453 = vunpack.c.l.b16 %v409
        %v454 = vpack.c.b16 %v439, %v438
        %v455 = vpack.c.b16 %v441, %v440
        %v456 = vpack.c.b16 %v443, %v442
        %v457 = vpack.c.b16 %v445, %v444
        %v458 = vpack.c.b16 %v447, %v446
        %v459 = vpack.c.b16 %v449, %v448
        %v460 = vpack.c.b16 %v451, %v450
        %v461 = vpack.c.b16 %v453, %v452
        %470 = vmatprep.subr.bf16.mxu0 0
        %471 = vmatpush1.bf16.msra.mxu0 %v461
        %472 = vmatprep.subr.bf16.mxu0 0
        %473 = vmatpush1.bf16.msra.mxu0 %v460
        %474 = vmatprep.subr.bf16.mxu0 0
        %475 = vmatpush1.bf16.msra.mxu0 %v459
        %476 = vmatprep.subr.bf16.mxu0 0
        %477 = vmatpush1.bf16.msra.mxu0 %v458
        %478 = vmatprep.subr.bf16.mxu0 0
        %479 = vmatpush1.bf16.msra.mxu0 %v457
        %480 = vmatprep.subr.bf16.mxu0 0
        %481 = vmatpush1.bf16.msra.mxu0 %v456
        %482 = vmatprep.subr.bf16.mxu0 0
        %483 = vmatpush1.bf16.msra.mxu0 %v455
        %484 = vmatprep.subr.bf16.mxu0 0
        %485 = vmatpush1.bf16.msra.mxu0 %v454
        %486 = vmatprep.subr.bf16.mxu0 0
        %487 = vmatpush2.bf16.msra.mxu0 0
        %488 = vmatprep.subr.bf16.mxu0 0
        %489 = vmatpush2.bf16.msra.mxu0 0
        %490 = vmatprep.subr.bf16.mxu0 0
        %491 = vmatpush2.bf16.msra.mxu0 0
        %492 = vmatprep.subr.bf16.mxu0 0
        %493 = vmatpush2.bf16.msra.mxu0 0
        %494 = vmatprep.subr.bf16.mxu0 0
        %495 = vmatpush2.bf16.msra.mxu0 0
        %496 = vmatprep.subr.bf16.mxu0 0
        %497 = vmatpush2.bf16.msra.mxu0 0
        %498 = vmatprep.subr.bf16.mxu0 0
        %499 = vmatpush2.bf16.msra.mxu0 0
        %500 = vmatprep.subr.bf16.mxu0 0
        %501 = vmatpush2.bf16.msra.mxu0 0
        %502 = vmatprep.mubr.bf16.mxu0 0
        %503 = vmatmul.mubr.bf16.gmra.mxu0 %v419
        %v504 = vpop.f32.mrf.mxu0
        %v505 = vadd.f32 0.0, %v504
        %v506 = vpop.f32.mrf.mxu0
        %v507 = vpop.f32.mrf.mxu0
        %v508 = vpop.f32.mrf.mxu0
        %509 = vdwg.mxu0
        %v510 = vadd.f32 %v389, %v505
        %v511 = vld [vmem:[%s178] sm:$0x2]
        %v512 = vld [vmem:[#allocation2 + $0xc0] sm:$0xf]
        %v513 = vld [vmem:[#allocation2 + $0xc4] sm:$0xf]
        %v514 = vld [vmem:[#allocation2 + $0xc8] sm:$0xf]
        %v515 = vld [vmem:[#allocation2 + $0xcc] sm:$0xf]
        %v516 = vld [vmem:[#allocation2 + $0xd0] sm:$0xf]
        %v517 = vld [vmem:[#allocation2 + $0xd4] sm:$0xf]
        %v518 = vld [vmem:[#allocation2 + $0xd8] sm:$0xf]
        %v519 = vld [vmem:[#allocation2 + $0xdc] sm:$0xf]
        %v520 = vld [vmem:[#allocation2 + $0xe0] sm:$0xf]
        %v521 = vld [vmem:[#allocation2 + $0xe4] sm:$0xf]
        %v522 = vld [vmem:[#allocation2 + $0xe8] sm:$0xf]
        %v523 = vld [vmem:[#allocation2 + $0xec] sm:$0xf]
        %v524 = vld [vmem:[#allocation2 + $0xf0] sm:$0xf]
        %v525 = vld [vmem:[#allocation2 + $0xf4] sm:$0xf]
        %v526 = vld [vmem:[#allocation2 + $0xf8] sm:$0xf]
        %v527 = vld [vmem:[#allocation2 + $0xfc] sm:$0xf]
        %v530 = vunpack.c.l.s4 1983009808
        %v531 = vunpack.c.0.s8 %v530
        %v532 = vlaneseq
        %v533 = vshrl.u32 %v532, 7
        %v534 = vsub.s32 %v531, %v533
        %v535 = vrot.slane %v511, %v534
        %v536 = vrot.slane %v535, 1
        %v554 = vunpack.c.l.b16 %v512
        %v555 = vunpack.c.l.b16 %v513
        %v556 = vunpack.c.l.b16 %v514
        %v557 = vunpack.c.l.b16 %v515
        %v558 = vunpack.c.l.b16 %v516
        %v559 = vunpack.c.l.b16 %v517
        %v560 = vunpack.c.l.b16 %v518
        %v561 = vunpack.c.l.b16 %v519
        %v562 = vunpack.c.l.b16 %v520
        %v563 = vunpack.c.l.b16 %v521
        %v564 = vunpack.c.l.b16 %v522
        %v565 = vunpack.c.l.b16 %v523
        %v566 = vunpack.c.l.b16 %v524
        %v567 = vunpack.c.l.b16 %v525
        %v568 = vunpack.c.l.b16 %v526
        %v569 = vunpack.c.l.b16 %v527
        %v570 = vpack.c.b16 %v555, %v554
        %v571 = vpack.c.b16 %v557, %v556
        %v572 = vpack.c.b16 %v559, %v558
        %v573 = vpack.c.b16 %v561, %v560
        %v574 = vpack.c.b16 %v563, %v562
        %v575 = vpack.c.b16 %v565, %v564
        %v576 = vpack.c.b16 %v567, %v566
        %v577 = vpack.c.b16 %v569, %v568
        %586 = vmatprep.subr.bf16.mxu0 0
        %587 = vmatpush1.bf16.msra.mxu0 %v577
        %588 = vmatprep.subr.bf16.mxu0 0
        %589 = vmatpush1.bf16.msra.mxu0 %v576
        %590 = vmatprep.subr.bf16.mxu0 0
        %591 = vmatpush1.bf16.msra.mxu0 %v575
        %592 = vmatprep.subr.bf16.mxu0 0
        %593 = vmatpush1.bf16.msra.mxu0 %v574
        %594 = vmatprep.subr.bf16.mxu0 0
        %595 = vmatpush1.bf16.msra.mxu0 %v573
        %596 = vmatprep.subr.bf16.mxu0 0
        %597 = vmatpush1.bf16.msra.mxu0 %v572
        %598 = vmatprep.subr.bf16.mxu0 0
        %599 = vmatpush1.bf16.msra.mxu0 %v571
        %600 = vmatprep.subr.bf16.mxu0 0
        %601 = vmatpush1.bf16.msra.mxu0 %v570
        %602 = vmatprep.subr.bf16.mxu0 0
        %603 = vmatpush2.bf16.msra.mxu0 0
        %604 = vmatprep.subr.bf16.mxu0 0
        %605 = vmatpush2.bf16.msra.mxu0 0
        %606 = vmatprep.subr.bf16.mxu0 0
        %607 = vmatpush2.bf16.msra.mxu0 0
        %608 = vmatprep.subr.bf16.mxu0 0
        %609 = vmatpush2.bf16.msra.mxu0 0
        %610 = vmatprep.subr.bf16.mxu0 0
        %611 = vmatpush2.bf16.msra.mxu0 0
        %612 = vmatprep.subr.bf16.mxu0 0
        %613 = vmatpush2.bf16.msra.mxu0 0
        %614 = vmatprep.subr.bf16.mxu0 0
        %615 = vmatpush2.bf16.msra.mxu0 0
        %616 = vmatprep.subr.bf16.mxu0 0
        %617 = vmatpush2.bf16.msra.mxu0 0
        %618 = vmatprep.mubr.bf16.mxu0 0
        %619 = vmatmul.mubr.bf16.gmra.mxu0 %v536
        %v620 = vpop.f32.mrf.mxu0
        %v621 = vadd.f32 0.0, %v620
        %v622 = vpop.f32.mrf.mxu0
        %v623 = vpop.f32.mrf.mxu0
        %v624 = vpop.f32.mrf.mxu0
        %625 = vdwg.mxu0
        %v626 = vadd.f32 %v510, %v621
        %v627 = vld [vmem:[%s178 + $0x2] sm:$0x2]
        %v628 = vld [vmem:[#allocation2 + $0x100] sm:$0xf]
        %v629 = vld [vmem:[#allocation2 + $0x104] sm:$0xf]
        %v630 = vld [vmem:[#allocation2 + $0x108] sm:$0xf]
        %v631 = vld [vmem:[#allocation2 + $0x10c] sm:$0xf]
        %v632 = vld [vmem:[#allocation2 + $0x110] sm:$0xf]
        %v633 = vld [vmem:[#allocation2 + $0x114] sm:$0xf]
        %v634 = vld [vmem:[#allocation2 + $0x118] sm:$0xf]
        %v635 = vld [vmem:[#allocation2 + $0x11c] sm:$0xf]
        %v636 = vld [vmem:[#allocation2 + $0x120] sm:$0xf]
        %v637 = vld [vmem:[#allocation2 + $0x124] sm:$0xf]
        %v638 = vld [vmem:[#allocation2 + $0x128] sm:$0xf]
        %v639 = vld [vmem:[#allocation2 + $0x12c] sm:$0xf]
        %v640 = vld [vmem:[#allocation2 + $0x130] sm:$0xf]
        %v641 = vld [vmem:[#allocation2 + $0x134] sm:$0xf]
        %v642 = vld [vmem:[#allocation2 + $0x138] sm:$0xf]
        %v643 = vld [vmem:[#allocation2 + $0x13c] sm:$0xf]
        %v646 = vunpack.c.l.s4 1983009808
        %v647 = vunpack.c.0.s8 %v646
        %v648 = vlaneseq
        %v649 = vshrl.u32 %v648, 7
        %v650 = vsub.s32 %v647, %v649
        %v651 = vrot.slane %v627, %v650
        %v652 = vrot.slane %v651, 1
        %v670 = vunpack.c.l.b16 %v628
        %v671 = vunpack.c.l.b16 %v629
        %v672 = vunpack.c.l.b16 %v630
        %v673 = vunpack.c.l.b16 %v631
        %v674 = vunpack.c.l.b16 %v632
        %v675 = vunpack.c.l.b16 %v633
        %v676 = vunpack.c.l.b16 %v634
        %v677 = vunpack.c.l.b16 %v635
        %v678 = vunpack.c.l.b16 %v636
        %v679 = vunpack.c.l.b16 %v637
        %v680 = vunpack.c.l.b16 %v638
        %v681 = vunpack.c.l.b16 %v639
        %v682 = vunpack.c.l.b16 %v640
        %v683 = vunpack.c.l.b16 %v641
        %v684 = vunpack.c.l.b16 %v642
        %v685 = vunpack.c.l.b16 %v643
        %v686 = vpack.c.b16 %v671, %v670
        %v687 = vpack.c.b16 %v673, %v672
        %v688 = vpack.c.b16 %v675, %v674
        %v689 = vpack.c.b16 %v677, %v676
        %v690 = vpack.c.b16 %v679, %v678
        %v691 = vpack.c.b16 %v681, %v680
        %v692 = vpack.c.b16 %v683, %v682
        %v693 = vpack.c.b16 %v685, %v684
        %702 = vmatprep.subr.bf16.mxu0 0
        %703 = vmatpush1.bf16.msra.mxu0 %v693
        %704 = vmatprep.subr.bf16.mxu0 0
        %705 = vmatpush1.bf16.msra.mxu0 %v692
        %706 = vmatprep.subr.bf16.mxu0 0
        %707 = vmatpush1.bf16.msra.mxu0 %v691
        %708 = vmatprep.subr.bf16.mxu0 0
        %709 = vmatpush1.bf16.msra.mxu0 %v690
        %710 = vmatprep.subr.bf16.mxu0 0
        %711 = vmatpush1.bf16.msra.mxu0 %v689
        %712 = vmatprep.subr.bf16.mxu0 0
        %713 = vmatpush1.bf16.msra.mxu0 %v688
        %714 = vmatprep.subr.bf16.mxu0 0
        %715 = vmatpush1.bf16.msra.mxu0 %v687
        %716 = vmatprep.subr.bf16.mxu0 0
        %717 = vmatpush1.bf16.msra.mxu0 %v686
        %718 = vmatprep.subr.bf16.mxu0 0
        %719 = vmatpush2.bf16.msra.mxu0 0
        %720 = vmatprep.subr.bf16.mxu0 0
        %721 = vmatpush2.bf16.msra.mxu0 0
        %722 = vmatprep.subr.bf16.mxu0 0
        %723 = vmatpush2.bf16.msra.mxu0 0
        %724 = vmatprep.subr.bf16.mxu0 0
        %725 = vmatpush2.bf16.msra.mxu0 0
        %726 = vmatprep.subr.bf16.mxu0 0
        %727 = vmatpush2.bf16.msra.mxu0 0
        %728 = vmatprep.subr.bf16.mxu0 0
        %729 = vmatpush2.bf16.msra.mxu0 0
        %730 = vmatprep.subr.bf16.mxu0 0
        %731 = vmatpush2.bf16.msra.mxu0 0
        %732 = vmatprep.subr.bf16.mxu0 0
        %733 = vmatpush2.bf16.msra.mxu0 0
        %734 = vmatprep.mubr.bf16.mxu0 0
        %735 = vmatmul.mubr.bf16.gmra.mxu0 %v652
        %v736 = vpop.f32.mrf.mxu0
        %v737 = vadd.f32 0.0, %v736
        %v738 = vpop.f32.mrf.mxu0
        %v739 = vpop.f32.mrf.mxu0
        %v740 = vpop.f32.mrf.mxu0
        %741 = vdwg.mxu0
        %v742 = vadd.f32 %v626, %v737
        %v743 = vld [vmem:[%s178] sm:$0x2]
        %v744 = vld [vmem:[#allocation2 + $0x140] sm:$0xf]
        %v745 = vld [vmem:[#allocation2 + $0x144] sm:$0xf]
        %v746 = vld [vmem:[#allocation2 + $0x148] sm:$0xf]
        %v747 = vld [vmem:[#allocation2 + $0x14c] sm:$0xf]
        %v748 = vld [vmem:[#allocation2 + $0x150] sm:$0xf]
        %v749 = vld [vmem:[#allocation2 + $0x154] sm:$0xf]
        %v750 = vld [vmem:[#allocation2 + $0x158] sm:$0xf]
        %v751 = vld [vmem:[#allocation2 + $0x15c] sm:$0xf]
        %v752 = vld [vmem:[#allocation2 + $0x160] sm:$0xf]
        %v753 = vld [vmem:[#allocation2 + $0x164] sm:$0xf]
        %v754 = vld [vmem:[#allocation2 + $0x168] sm:$0xf]
        %v755 = vld [vmem:[#allocation2 + $0x16c] sm:$0xf]
        %v756 = vld [vmem:[#allocation2 + $0x170] sm:$0xf]
        %v757 = vld [vmem:[#allocation2 + $0x174] sm:$0xf]
        %v758 = vld [vmem:[#allocation2 + $0x178] sm:$0xf]
        %v759 = vld [vmem:[#allocation2 + $0x17c] sm:$0xf]
        %v762 = vunpack.c.l.s4 1983009808
        %v763 = vunpack.c.0.s8 %v762
        %v764 = vlaneseq
        %v765 = vshrl.u32 %v764, 7
        %v766 = vsub.s32 %v763, %v765
        %v767 = vrot.slane %v743, %v766
        %v769 = vshrl.u32 %v767, 16
        %v771 = vrot.slane %v769, 1
        %v789 = vunpack.c.l.b16 %v744
        %v790 = vunpack.c.l.b16 %v745
        %v791 = vunpack.c.l.b16 %v746
        %v792 = vunpack.c.l.b16 %v747
        %v793 = vunpack.c.l.b16 %v748
        %v794 = vunpack.c.l.b16 %v749
        %v795 = vunpack.c.l.b16 %v750
        %v796 = vunpack.c.l.b16 %v751
        %v797 = vunpack.c.l.b16 %v752
        %v798 = vunpack.c.l.b16 %v753
        %v799 = vunpack.c.l.b16 %v754
        %v800 = vunpack.c.l.b16 %v755
        %v801 = vunpack.c.l.b16 %v756
        %v802 = vunpack.c.l.b16 %v757
        %v803 = vunpack.c.l.b16 %v758
        %v804 = vunpack.c.l.b16 %v759
        %v805 = vpack.c.b16 %v790, %v789
        %v806 = vpack.c.b16 %v792, %v791
        %v807 = vpack.c.b16 %v794, %v793
        %v808 = vpack.c.b16 %v796, %v795
        %v809 = vpack.c.b16 %v798, %v797
        %v810 = vpack.c.b16 %v800, %v799
        %v811 = vpack.c.b16 %v802, %v801
        %v812 = vpack.c.b16 %v804, %v803
        %821 = vmatprep.subr.bf16.mxu0 0
        %822 = vmatpush1.bf16.msra.mxu0 %v812
        %823 = vmatprep.subr.bf16.mxu0 0
        %824 = vmatpush1.bf16.msra.mxu0 %v811
        %825 = vmatprep.subr.bf16.mxu0 0
        %826 = vmatpush1.bf16.msra.mxu0 %v810
        %827 = vmatprep.subr.bf16.mxu0 0
        %828 = vmatpush1.bf16.msra.mxu0 %v809
        %829 = vmatprep.subr.bf16.mxu0 0
        %830 = vmatpush1.bf16.msra.mxu0 %v808
        %831 = vmatprep.subr.bf16.mxu0 0
        %832 = vmatpush1.bf16.msra.mxu0 %v807
        %833 = vmatprep.subr.bf16.mxu0 0
        %834 = vmatpush1.bf16.msra.mxu0 %v806
        %835 = vmatprep.subr.bf16.mxu0 0
        %836 = vmatpush1.bf16.msra.mxu0 %v805
        %837 = vmatprep.subr.bf16.mxu0 0
        %838 = vmatpush2.bf16.msra.mxu0 0
        %839 = vmatprep.subr.bf16.mxu0 0
        %840 = vmatpush2.bf16.msra.mxu0 0
        %841 = vmatprep.subr.bf16.mxu0 0
        %842 = vmatpush2.bf16.msra.mxu0 0
        %843 = vmatprep.subr.bf16.mxu0 0
        %844 = vmatpush2.bf16.msra.mxu0 0
        %845 = vmatprep.subr.bf16.mxu0 0
        %846 = vmatpush2.bf16.msra.mxu0 0
        %847 = vmatprep.subr.bf16.mxu0 0
        %848 = vmatpush2.bf16.msra.mxu0 0
        %849 = vmatprep.subr.bf16.mxu0 0
        %850 = vmatpush2.bf16.msra.mxu0 0
        %851 = vmatprep.subr.bf16.mxu0 0
        %852 = vmatpush2.bf16.msra.mxu0 0
        %853 = vmatprep.mubr.bf16.mxu0 0
        %854 = vmatmul.mubr.bf16.gmra.mxu0 %v771
        %v855 = vpop.f32.mrf.mxu0
        %v856 = vadd.f32 0.0, %v855
        %v857 = vpop.f32.mrf.mxu0
        %v858 = vpop.f32.mrf.mxu0
        %v859 = vpop.f32.mrf.mxu0
        %860 = vdwg.mxu0
        %v861 = vadd.f32 %v742, %v856
        %s862 = scalar_lea.vmem %s178, 4
        %v863 = vld [vmem:[%s862] sm:$0x1]
        %v864 = vld [vmem:[#allocation2 + $0x180] sm:$0xf]
        %v865 = vld [vmem:[#allocation2 + $0x184] sm:$0xf]
        %v866 = vld [vmem:[#allocation2 + $0x188] sm:$0xf]
        %v867 = vld [vmem:[#allocation2 + $0x18c] sm:$0xf]
        %v868 = vld [vmem:[#allocation2 + $0x190] sm:$0xf]
        %v869 = vld [vmem:[#allocation2 + $0x194] sm:$0xf]
        %v870 = vld [vmem:[#allocation2 + $0x198] sm:$0xf]
        %v871 = vld [vmem:[#allocation2 + $0x19c] sm:$0xf]
        %v872 = vld [vmem:[#allocation2 + $0x1a0] sm:$0xf]
        %v873 = vld [vmem:[#allocation2 + $0x1a4] sm:$0xf]
        %v874 = vld [vmem:[#allocation2 + $0x1a8] sm:$0xf]
        %v875 = vld [vmem:[#allocation2 + $0x1ac] sm:$0xf]
        %v876 = vld [vmem:[#allocation2 + $0x1b0] sm:$0xf]
        %v877 = vld [vmem:[#allocation2 + $0x1b4] sm:$0xf]
        %v878 = vld [vmem:[#allocation2 + $0x1b8] sm:$0xf]
        %v879 = vld [vmem:[#allocation2 + $0x1bc] sm:$0xf]
        %v896 = vunpack.c.l.b16 %v864
        %v897 = vunpack.c.l.b16 %v865
        %v898 = vunpack.c.l.b16 %v866
        %v899 = vunpack.c.l.b16 %v867
        %v900 = vunpack.c.l.b16 %v868
        %v901 = vunpack.c.l.b16 %v869
        %v902 = vunpack.c.l.b16 %v870
        %v903 = vunpack.c.l.b16 %v871
        %v904 = vunpack.c.l.b16 %v872
        %v905 = vunpack.c.l.b16 %v873
        %v906 = vunpack.c.l.b16 %v874
        %v907 = vunpack.c.l.b16 %v875
        %v908 = vunpack.c.l.b16 %v876
        %v909 = vunpack.c.l.b16 %v877
        %v910 = vunpack.c.l.b16 %v878
        %v911 = vunpack.c.l.b16 %v879
        %v912 = vpack.c.b16 %v897, %v896
        %v913 = vpack.c.b16 %v899, %v898
        %v914 = vpack.c.b16 %v901, %v900
        %v915 = vpack.c.b16 %v903, %v902
        %v916 = vpack.c.b16 %v905, %v904
        %v917 = vpack.c.b16 %v907, %v906
        %v918 = vpack.c.b16 %v909, %v908
        %v919 = vpack.c.b16 %v911, %v910
        %928 = vmatprep.subr.bf16.mxu0 0
        %929 = vmatpush1.bf16.msra.mxu0 %v919
        %930 = vmatprep.subr.bf16.mxu0 0
        %931 = vmatpush1.bf16.msra.mxu0 %v918
        %932 = vmatprep.subr.bf16.mxu0 0
        %933 = vmatpush1.bf16.msra.mxu0 %v917
        %934 = vmatprep.subr.bf16.mxu0 0
        %935 = vmatpush1.bf16.msra.mxu0 %v916
        %936 = vmatprep.subr.bf16.mxu0 0
        %937 = vmatpush1.bf16.msra.mxu0 %v915
        %938 = vmatprep.subr.bf16.mxu0 0
        %939 = vmatpush1.bf16.msra.mxu0 %v914
        %940 = vmatprep.subr.bf16.mxu0 0
        %941 = vmatpush1.bf16.msra.mxu0 %v913
        %942 = vmatprep.subr.bf16.mxu0 0
        %943 = vmatpush1.bf16.msra.mxu0 %v912
        %944 = vmatprep.subr.bf16.mxu0 0
        %945 = vmatpush2.bf16.msra.mxu0 0
        %946 = vmatprep.subr.bf16.mxu0 0
        %947 = vmatpush2.bf16.msra.mxu0 0
        %948 = vmatprep.subr.bf16.mxu0 0
        %949 = vmatpush2.bf16.msra.mxu0 0
        %950 = vmatprep.subr.bf16.mxu0 0
        %951 = vmatpush2.bf16.msra.mxu0 0
        %952 = vmatprep.subr.bf16.mxu0 0
        %953 = vmatpush2.bf16.msra.mxu0 0
        %954 = vmatprep.subr.bf16.mxu0 0
        %955 = vmatpush2.bf16.msra.mxu0 0
        %956 = vmatprep.subr.bf16.mxu0 0
        %957 = vmatpush2.bf16.msra.mxu0 0
        %958 = vmatprep.subr.bf16.mxu0 0
        %959 = vmatpush2.bf16.msra.mxu0 0
        %960 = vmatprep.mubr.bf16.mxu0 0
        %961 = vmatmul.mubr.bf16.gmra.mxu0 %v863
        %v962 = vpop.f32.mrf.mxu0
        %v963 = vadd.f32 0.0, %v962
        %v964 = vpop.f32.mrf.mxu0
        %v965 = vpop.f32.mrf.mxu0
        %v966 = vpop.f32.mrf.mxu0
        %967 = vdwg.mxu0
        %v968 = vadd.f32 %v861, %v963
        %v969 = vld [vmem:[%s862 + $0x2] sm:$0x1]
        %v970 = vld [vmem:[#allocation2 + $0x1c0] sm:$0xf]
        %v971 = vld [vmem:[#allocation2 + $0x1c4] sm:$0xf]
        %v972 = vld [vmem:[#allocation2 + $0x1c8] sm:$0xf]
        %v973 = vld [vmem:[#allocation2 + $0x1cc] sm:$0xf]
        %v974 = vld [vmem:[#allocation2 + $0x1d0] sm:$0xf]
        %v975 = vld [vmem:[#allocation2 + $0x1d4] sm:$0xf]
        %v976 = vld [vmem:[#allocation2 + $0x1d8] sm:$0xf]
        %v977 = vld [vmem:[#allocation2 + $0x1dc] sm:$0xf]
        %v978 = vld [vmem:[#allocation2 + $0x1e0] sm:$0xf]
        %v979 = vld [vmem:[#allocation2 + $0x1e4] sm:$0xf]
        %v980 = vld [vmem:[#allocation2 + $0x1e8] sm:$0xf]
        %v981 = vld [vmem:[#allocation2 + $0x1ec] sm:$0xf]
        %v982 = vld [vmem:[#allocation2 + $0x1f0] sm:$0xf]
        %v983 = vld [vmem:[#allocation2 + $0x1f4] sm:$0xf]
        %v984 = vld [vmem:[#allocation2 + $0x1f8] sm:$0xf]
        %v985 = vld [vmem:[#allocation2 + $0x1fc] sm:$0xf]
        %v1002 = vunpack.c.l.b16 %v970
        %v1003 = vunpack.c.l.b16 %v971
        %v1004 = vunpack.c.l.b16 %v972
        %v1005 = vunpack.c.l.b16 %v973
        %v1006 = vunpack.c.l.b16 %v974
        %v1007 = vunpack.c.l.b16 %v975
        %v1008 = vunpack.c.l.b16 %v976
        %v1009 = vunpack.c.l.b16 %v977
        %v1010 = vunpack.c.l.b16 %v978
        %v1011 = vunpack.c.l.b16 %v979
        %v1012 = vunpack.c.l.b16 %v980
        %v1013 = vunpack.c.l.b16 %v981
        %v1014 = vunpack.c.l.b16 %v982
        %v1015 = vunpack.c.l.b16 %v983
        %v1016 = vunpack.c.l.b16 %v984
        %v1017 = vunpack.c.l.b16 %v985
        %v1018 = vpack.c.b16 %v1003, %v1002
        %v1019 = vpack.c.b16 %v1005, %v1004
        %v1020 = vpack.c.b16 %v1007, %v1006
        %v1021 = vpack.c.b16 %v1009, %v1008
        %v1022 = vpack.c.b16 %v1011, %v1010
        %v1023 = vpack.c.b16 %v1013, %v1012
        %v1024 = vpack.c.b16 %v1015, %v1014
        %v1025 = vpack.c.b16 %v1017, %v1016
        %1034 = vmatprep.subr.bf16.mxu0 0
        %1035 = vmatpush1.bf16.msra.mxu0 %v1025
        %1036 = vmatprep.subr.bf16.mxu0 0
        %1037 = vmatpush1.bf16.msra.mxu0 %v1024
        %1038 = vmatprep.subr.bf16.mxu0 0
        %1039 = vmatpush1.bf16.msra.mxu0 %v1023
        %1040 = vmatprep.subr.bf16.mxu0 0
        %1041 = vmatpush1.bf16.msra.mxu0 %v1022
        %1042 = vmatprep.subr.bf16.mxu0 0
        %1043 = vmatpush1.bf16.msra.mxu0 %v1021
        %1044 = vmatprep.subr.bf16.mxu0 0
        %1045 = vmatpush1.bf16.msra.mxu0 %v1020
        %1046 = vmatprep.subr.bf16.mxu0 0
        %1047 = vmatpush1.bf16.msra.mxu0 %v1019
        %1048 = vmatprep.subr.bf16.mxu0 0
        %1049 = vmatpush1.bf16.msra.mxu0 %v1018
        %1050 = vmatprep.subr.bf16.mxu0 0
        %1051 = vmatpush2.bf16.msra.mxu0 0
        %1052 = vmatprep.subr.bf16.mxu0 0
        %1053 = vmatpush2.bf16.msra.mxu0 0
        %1054 = vmatprep.subr.bf16.mxu0 0
        %1055 = vmatpush2.bf16.msra.mxu0 0
        %1056 = vmatprep.subr.bf16.mxu0 0
        %1057 = vmatpush2.bf16.msra.mxu0 0
        %1058 = vmatprep.subr.bf16.mxu0 0
        %1059 = vmatpush2.bf16.msra.mxu0 0
        %1060 = vmatprep.subr.bf16.mxu0 0
        %1061 = vmatpush2.bf16.msra.mxu0 0
        %1062 = vmatprep.subr.bf16.mxu0 0
        %1063 = vmatpush2.bf16.msra.mxu0 0
        %1064 = vmatprep.subr.bf16.mxu0 0
        %1065 = vmatpush2.bf16.msra.mxu0 0
        %1066 = vmatprep.mubr.bf16.mxu0 0
        %1067 = vmatmul.mubr.bf16.gmra.mxu0 %v969
        %v1068 = vpop.f32.mrf.mxu0
        %v1069 = vadd.f32 0.0, %v1068
        %v1070 = vpop.f32.mrf.mxu0
        %v1071 = vpop.f32.mrf.mxu0
        %v1072 = vpop.f32.mrf.mxu0
        %1073 = vdwg.mxu0
        %v1074 = vadd.f32 %v968, %v1069
        %v1075 = vld [vmem:[#allocation2 + $0x200] sm:$0xf]
        %v1076 = vld [vmem:[#allocation2 + $0x204] sm:$0xf]
        %v1077 = vld [vmem:[#allocation2 + $0x208] sm:$0xf]
        %v1078 = vld [vmem:[#allocation2 + $0x20c] sm:$0xf]
        %v1079 = vld [vmem:[#allocation2 + $0x210] sm:$0xf]
        %v1080 = vld [vmem:[#allocation2 + $0x214] sm:$0xf]
        %v1081 = vld [vmem:[#allocation2 + $0x218] sm:$0xf]
        %v1082 = vld [vmem:[#allocation2 + $0x21c] sm:$0xf]
        %v1083 = vld [vmem:[#allocation2 + $0x220] sm:$0xf]
        %v1084 = vld [vmem:[#allocation2 + $0x224] sm:$0xf]
        %v1085 = vld [vmem:[#allocation2 + $0x228] sm:$0xf]
        %v1086 = vld [vmem:[#allocation2 + $0x22c] sm:$0xf]
        %v1087 = vld [vmem:[#allocation2 + $0x230] sm:$0xf]
        %v1088 = vld [vmem:[#allocation2 + $0x234] sm:$0xf]
        %v1089 = vld [vmem:[#allocation2 + $0x238] sm:$0xf]
        %v1090 = vld [vmem:[#allocation2 + $0x23c] sm:$0xf]
        %v1093 = vunpack.c.l.s4 1983009808
        %v1094 = vunpack.c.0.s8 %v1093
        %v1095 = vlaneseq
        %v1096 = vshrl.u32 %v1095, 7
        %v1097 = vsub.s32 %v1094, %v1096
        %v1098 = vrot.slane %v863, %v1097
        %v1100 = vshrl.u32 %v1098, 16
        %v1119 = vunpack.c.l.b16 %v1075
        %v1120 = vunpack.c.l.b16 %v1076
        %v1121 = vunpack.c.l.b16 %v1077
        %v1122 = vunpack.c.l.b16 %v1078
        %v1123 = vunpack.c.l.b16 %v1079
        %v1124 = vunpack.c.l.b16 %v1080
        %v1125 = vunpack.c.l.b16 %v1081
        %v1126 = vunpack.c.l.b16 %v1082
        %v1127 = vunpack.c.l.b16 %v1083
        %v1128 = vunpack.c.l.b16 %v1084
        %v1129 = vunpack.c.l.b16 %v1085
        %v1130 = vunpack.c.l.b16 %v1086
        %v1131 = vunpack.c.l.b16 %v1087
        %v1132 = vunpack.c.l.b16 %v1088
        %v1133 = vunpack.c.l.b16 %v1089
        %v1134 = vunpack.c.l.b16 %v1090
        %v1135 = vpack.c.b16 %v1120, %v1119
        %v1136 = vpack.c.b16 %v1122, %v1121
        %v1137 = vpack.c.b16 %v1124, %v1123
        %v1138 = vpack.c.b16 %v1126, %v1125
        %v1139 = vpack.c.b16 %v1128, %v1127
        %v1140 = vpack.c.b16 %v1130, %v1129
        %v1141 = vpack.c.b16 %v1132, %v1131
        %v1142 = vpack.c.b16 %v1134, %v1133
        %1151 = vmatprep.subr.bf16.mxu0 0
        %1152 = vmatpush1.bf16.msra.mxu0 %v1142
        %1153 = vmatprep.subr.bf16.mxu0 0
        %1154 = vmatpush1.bf16.msra.mxu0 %v1141
        %1155 = vmatprep.subr.bf16.mxu0 0
        %1156 = vmatpush1.bf16.msra.mxu0 %v1140
        %1157 = vmatprep.subr.bf16.mxu0 0
        %1158 = vmatpush1.bf16.msra.mxu0 %v1139
        %1159 = vmatprep.subr.bf16.mxu0 0
        %1160 = vmatpush1.bf16.msra.mxu0 %v1138
        %1161 = vmatprep.subr.bf16.mxu0 0
        %1162 = vmatpush1.bf16.msra.mxu0 %v1137
        %1163 = vmatprep.subr.bf16.mxu0 0
        %1164 = vmatpush1.bf16.msra.mxu0 %v1136
        %1165 = vmatprep.subr.bf16.mxu0 0
        %1166 = vmatpush1.bf16.msra.mxu0 %v1135
        %1167 = vmatprep.subr.bf16.mxu0 0
        %1168 = vmatpush2.bf16.msra.mxu0 0
        %1169 = vmatprep.subr.bf16.mxu0 0
        %1170 = vmatpush2.bf16.msra.mxu0 0
        %1171 = vmatprep.subr.bf16.mxu0 0
        %1172 = vmatpush2.bf16.msra.mxu0 0
        %1173 = vmatprep.subr.bf16.mxu0 0
        %1174 = vmatpush2.bf16.msra.mxu0 0
        %1175 = vmatprep.subr.bf16.mxu0 0
        %1176 = vmatpush2.bf16.msra.mxu0 0
        %1177 = vmatprep.subr.bf16.mxu0 0
        %1178 = vmatpush2.bf16.msra.mxu0 0
        %1179 = vmatprep.subr.bf16.mxu0 0
        %1180 = vmatpush2.bf16.msra.mxu0 0
        %1181 = vmatprep.subr.bf16.mxu0 0
        %1182 = vmatpush2.bf16.msra.mxu0 0
        %1183 = vmatprep.mubr.bf16.mxu0 0
        %1184 = vmatmul.mubr.bf16.gmra.mxu0 %v1100
        %v1185 = vpop.f32.mrf.mxu0
        %v1186 = vadd.f32 0.0, %v1185
        %v1187 = vpop.f32.mrf.mxu0
        %v1188 = vpop.f32.mrf.mxu0
        %v1189 = vpop.f32.mrf.mxu0
        %1190 = vdwg.mxu0
        %v1191 = vadd.f32 %v1074, %v1186
        %s1192 = scalar_lea.vmem %s178, 8
        %v1193 = vld [vmem:[%s1192] sm:$0x1]
        %v1194 = vld [vmem:[#allocation2 + $0x240] sm:$0xf]
        %v1195 = vld [vmem:[#allocation2 + $0x244] sm:$0xf]
        %v1196 = vld [vmem:[#allocation2 + $0x248] sm:$0xf]
        %v1197 = vld [vmem:[#allocation2 + $0x24c] sm:$0xf]
        %v1198 = vld [vmem:[#allocation2 + $0x250] sm:$0xf]
        %v1199 = vld [vmem:[#allocation2 + $0x254] sm:$0xf]
        %v1200 = vld [vmem:[#allocation2 + $0x258] sm:$0xf]
        %v1201 = vld [vmem:[#allocation2 + $0x25c] sm:$0xf]
        %v1202 = vld [vmem:[#allocation2 + $0x260] sm:$0xf]
        %v1203 = vld [vmem:[#allocation2 + $0x264] sm:$0xf]
        %v1204 = vld [vmem:[#allocation2 + $0x268] sm:$0xf]
        %v1205 = vld [vmem:[#allocation2 + $0x26c] sm:$0xf]
        %v1206 = vld [vmem:[#allocation2 + $0x270] sm:$0xf]
        %v1207 = vld [vmem:[#allocation2 + $0x274] sm:$0xf]
        %v1208 = vld [vmem:[#allocation2 + $0x278] sm:$0xf]
        %v1209 = vld [vmem:[#allocation2 + $0x27c] sm:$0xf]
        %v1226 = vunpack.c.l.b16 %v1194
        %v1227 = vunpack.c.l.b16 %v1195
        %v1228 = vunpack.c.l.b16 %v1196
        %v1229 = vunpack.c.l.b16 %v1197
        %v1230 = vunpack.c.l.b16 %v1198
        %v1231 = vunpack.c.l.b16 %v1199
        %v1232 = vunpack.c.l.b16 %v1200
        %v1233 = vunpack.c.l.b16 %v1201
        %v1234 = vunpack.c.l.b16 %v1202
        %v1235 = vunpack.c.l.b16 %v1203
        %v1236 = vunpack.c.l.b16 %v1204
        %v1237 = vunpack.c.l.b16 %v1205
        %v1238 = vunpack.c.l.b16 %v1206
        %v1239 = vunpack.c.l.b16 %v1207
        %v1240 = vunpack.c.l.b16 %v1208
        %v1241 = vunpack.c.l.b16 %v1209
        %v1242 = vpack.c.b16 %v1227, %v1226
        %v1243 = vpack.c.b16 %v1229, %v1228
        %v1244 = vpack.c.b16 %v1231, %v1230
        %v1245 = vpack.c.b16 %v1233, %v1232
        %v1246 = vpack.c.b16 %v1235, %v1234
        %v1247 = vpack.c.b16 %v1237, %v1236
        %v1248 = vpack.c.b16 %v1239, %v1238
        %v1249 = vpack.c.b16 %v1241, %v1240
        %1258 = vmatprep.subr.bf16.mxu0 0
        %1259 = vmatpush1.bf16.msra.mxu0 %v1249
        %1260 = vmatprep.subr.bf16.mxu0 0
        %1261 = vmatpush1.bf16.msra.mxu0 %v1248
        %1262 = vmatprep.subr.bf16.mxu0 0
        %1263 = vmatpush1.bf16.msra.mxu0 %v1247
        %1264 = vmatprep.subr.bf16.mxu0 0
        %1265 = vmatpush1.bf16.msra.mxu0 %v1246
        %1266 = vmatprep.subr.bf16.mxu0 0
        %1267 = vmatpush1.bf16.msra.mxu0 %v1245
        %1268 = vmatprep.subr.bf16.mxu0 0
        %1269 = vmatpush1.bf16.msra.mxu0 %v1244
        %1270 = vmatprep.subr.bf16.mxu0 0
        %1271 = vmatpush1.bf16.msra.mxu0 %v1243
        %1272 = vmatprep.subr.bf16.mxu0 0
        %1273 = vmatpush1.bf16.msra.mxu0 %v1242
        %1274 = vmatprep.subr.bf16.mxu0 0
        %1275 = vmatpush2.bf16.msra.mxu0 0
        %1276 = vmatprep.subr.bf16.mxu0 0
        %1277 = vmatpush2.bf16.msra.mxu0 0
        %1278 = vmatprep.subr.bf16.mxu0 0
        %1279 = vmatpush2.bf16.msra.mxu0 0
        %1280 = vmatprep.subr.bf16.mxu0 0
        %1281 = vmatpush2.bf16.msra.mxu0 0
        %1282 = vmatprep.subr.bf16.mxu0 0
        %1283 = vmatpush2.bf16.msra.mxu0 0
        %1284 = vmatprep.subr.bf16.mxu0 0
        %1285 = vmatpush2.bf16.msra.mxu0 0
        %1286 = vmatprep.subr.bf16.mxu0 0
        %1287 = vmatpush2.bf16.msra.mxu0 0
        %1288 = vmatprep.subr.bf16.mxu0 0
        %1289 = vmatpush2.bf16.msra.mxu0 0
        %1290 = vmatprep.mubr.bf16.mxu0 0
        %1291 = vmatmul.mubr.bf16.gmra.mxu0 %v1193
        %v1292 = vpop.f32.mrf.mxu0
        %v1293 = vadd.f32 0.0, %v1292
        %v1294 = vpop.f32.mrf.mxu0
        %v1295 = vpop.f32.mrf.mxu0
        %v1296 = vpop.f32.mrf.mxu0
        %1297 = vdwg.mxu0
        %v1298 = vadd.f32 %v1191, %v1293
        %v1299 = vld [vmem:[%s1192 + $0x2] sm:$0x1]
        %v1300 = vld [vmem:[#allocation2 + $0x280] sm:$0xf]
        %v1301 = vld [vmem:[#allocation2 + $0x284] sm:$0xf]
        %v1302 = vld [vmem:[#allocation2 + $0x288] sm:$0xf]
        %v1303 = vld [vmem:[#allocation2 + $0x28c] sm:$0xf]
        %v1304 = vld [vmem:[#allocation2 + $0x290] sm:$0xf]
        %v1305 = vld [vmem:[#allocation2 + $0x294] sm:$0xf]
        %v1306 = vld [vmem:[#allocation2 + $0x298] sm:$0xf]
        %v1307 = vld [vmem:[#allocation2 + $0x29c] sm:$0xf]
        %v1308 = vld [vmem:[#allocation2 + $0x2a0] sm:$0xf]
        %v1309 = vld [vmem:[#allocation2 + $0x2a4] sm:$0xf]
        %v1310 = vld [vmem:[#allocation2 + $0x2a8] sm:$0xf]
        %v1311 = vld [vmem:[#allocation2 + $0x2ac] sm:$0xf]
        %v1312 = vld [vmem:[#allocation2 + $0x2b0] sm:$0xf]
        %v1313 = vld [vmem:[#allocation2 + $0x2b4] sm:$0xf]
        %v1314 = vld [vmem:[#allocation2 + $0x2b8] sm:$0xf]
        %v1315 = vld [vmem:[#allocation2 + $0x2bc] sm:$0xf]
        %v1332 = vunpack.c.l.b16 %v1300
        %v1333 = vunpack.c.l.b16 %v1301
        %v1334 = vunpack.c.l.b16 %v1302
        %v1335 = vunpack.c.l.b16 %v1303
        %v1336 = vunpack.c.l.b16 %v1304
        %v1337 = vunpack.c.l.b16 %v1305
        %v1338 = vunpack.c.l.b16 %v1306
        %v1339 = vunpack.c.l.b16 %v1307
        %v1340 = vunpack.c.l.b16 %v1308
        %v1341 = vunpack.c.l.b16 %v1309
        %v1342 = vunpack.c.l.b16 %v1310
        %v1343 = vunpack.c.l.b16 %v1311
        %v1344 = vunpack.c.l.b16 %v1312
        %v1345 = vunpack.c.l.b16 %v1313
        %v1346 = vunpack.c.l.b16 %v1314
        %v1347 = vunpack.c.l.b16 %v1315
        %v1348 = vpack.c.b16 %v1333, %v1332
        %v1349 = vpack.c.b16 %v1335, %v1334
        %v1350 = vpack.c.b16 %v1337, %v1336
        %v1351 = vpack.c.b16 %v1339, %v1338
        %v1352 = vpack.c.b16 %v1341, %v1340
        %v1353 = vpack.c.b16 %v1343, %v1342
        %v1354 = vpack.c.b16 %v1345, %v1344
        %v1355 = vpack.c.b16 %v1347, %v1346
        %1364 = vmatprep.subr.bf16.mxu0 0
        %1365 = vmatpush1.bf16.msra.mxu0 %v1355
        %1366 = vmatprep.subr.bf16.mxu0 0
        %1367 = vmatpush1.bf16.msra.mxu0 %v1354
        %1368 = vmatprep.subr.bf16.mxu0 0
        %1369 = vmatpush1.bf16.msra.mxu0 %v1353
        %1370 = vmatprep.subr.bf16.mxu0 0
        %1371 = vmatpush1.bf16.msra.mxu0 %v1352
        %1372 = vmatprep.subr.bf16.mxu0 0
        %1373 = vmatpush1.bf16.msra.mxu0 %v1351
        %1374 = vmatprep.subr.bf16.mxu0 0
        %1375 = vmatpush1.bf16.msra.mxu0 %v1350
        %1376 = vmatprep.subr.bf16.mxu0 0
        %1377 = vmatpush1.bf16.msra.mxu0 %v1349
        %1378 = vmatprep.subr.bf16.mxu0 0
        %1379 = vmatpush1.bf16.msra.mxu0 %v1348
        %1380 = vmatprep.subr.bf16.mxu0 0
        %1381 = vmatpush2.bf16.msra.mxu0 0
        %1382 = vmatprep.subr.bf16.mxu0 0
        %1383 = vmatpush2.bf16.msra.mxu0 0
        %1384 = vmatprep.subr.bf16.mxu0 0
        %1385 = vmatpush2.bf16.msra.mxu0 0
        %1386 = vmatprep.subr.bf16.mxu0 0
        %1387 = vmatpush2.bf16.msra.mxu0 0
        %1388 = vmatprep.subr.bf16.mxu0 0
        %1389 = vmatpush2.bf16.msra.mxu0 0
        %1390 = vmatprep.subr.bf16.mxu0 0
        %1391 = vmatpush2.bf16.msra.mxu0 0
        %1392 = vmatprep.subr.bf16.mxu0 0
        %1393 = vmatpush2.bf16.msra.mxu0 0
        %1394 = vmatprep.subr.bf16.mxu0 0
        %1395 = vmatpush2.bf16.msra.mxu0 0
        %1396 = vmatprep.mubr.bf16.mxu0 0
        %1397 = vmatmul.mubr.bf16.gmra.mxu0 %v1299
        %v1398 = vpop.f32.mrf.mxu0
        %v1399 = vadd.f32 0.0, %v1398
        %v1400 = vpop.f32.mrf.mxu0
        %v1401 = vpop.f32.mrf.mxu0
        %v1402 = vpop.f32.mrf.mxu0
        %1403 = vdwg.mxu0
        %v1404 = vadd.f32 %v1298, %v1399
        %v1405 = vld [vmem:[#allocation2 + $0x2c0] sm:$0xf]
        %v1406 = vld [vmem:[#allocation2 + $0x2c4] sm:$0xf]
        %v1407 = vld [vmem:[#allocation2 + $0x2c8] sm:$0xf]
        %v1408 = vld [vmem:[#allocation2 + $0x2cc] sm:$0xf]
        %v1409 = vld [vmem:[#allocation2 + $0x2d0] sm:$0xf]
        %v1410 = vld [vmem:[#allocation2 + $0x2d4] sm:$0xf]
        %v1411 = vld [vmem:[#allocation2 + $0x2d8] sm:$0xf]
        %v1412 = vld [vmem:[#allocation2 + $0x2dc] sm:$0xf]
        %v1413 = vld [vmem:[#allocation2 + $0x2e0] sm:$0xf]
        %v1414 = vld [vmem:[#allocation2 + $0x2e4] sm:$0xf]
        %v1415 = vld [vmem:[#allocation2 + $0x2e8] sm:$0xf]
        %v1416 = vld [vmem:[#allocation2 + $0x2ec] sm:$0xf]
        %v1417 = vld [vmem:[#allocation2 + $0x2f0] sm:$0xf]
        %v1418 = vld [vmem:[#allocation2 + $0x2f4] sm:$0xf]
        %v1419 = vld [vmem:[#allocation2 + $0x2f8] sm:$0xf]
        %v1420 = vld [vmem:[#allocation2 + $0x2fc] sm:$0xf]
        %v1423 = vunpack.c.l.s4 1983009808
        %v1424 = vunpack.c.0.s8 %v1423
        %v1425 = vlaneseq
        %v1426 = vshrl.u32 %v1425, 7
        %v1427 = vsub.s32 %v1424, %v1426
        %v1428 = vrot.slane %v1193, %v1427
        %v1430 = vshrl.u32 %v1428, 16
        %v1449 = vunpack.c.l.b16 %v1405
        %v1450 = vunpack.c.l.b16 %v1406
        %v1451 = vunpack.c.l.b16 %v1407
        %v1452 = vunpack.c.l.b16 %v1408
        %v1453 = vunpack.c.l.b16 %v1409
        %v1454 = vunpack.c.l.b16 %v1410
        %v1455 = vunpack.c.l.b16 %v1411
        %v1456 = vunpack.c.l.b16 %v1412
        %v1457 = vunpack.c.l.b16 %v1413
        %v1458 = vunpack.c.l.b16 %v1414
        %v1459 = vunpack.c.l.b16 %v1415
        %v1460 = vunpack.c.l.b16 %v1416
        %v1461 = vunpack.c.l.b16 %v1417
        %v1462 = vunpack.c.l.b16 %v1418
        %v1463 = vunpack.c.l.b16 %v1419
        %v1464 = vunpack.c.l.b16 %v1420
        %v1465 = vpack.c.b16 %v1450, %v1449
        %v1466 = vpack.c.b16 %v1452, %v1451
        %v1467 = vpack.c.b16 %v1454, %v1453
        %v1468 = vpack.c.b16 %v1456, %v1455
        %v1469 = vpack.c.b16 %v1458, %v1457
        %v1470 = vpack.c.b16 %v1460, %v1459
        %v1471 = vpack.c.b16 %v1462, %v1461
        %v1472 = vpack.c.b16 %v1464, %v1463
        %1481 = vmatprep.subr.bf16.mxu0 0
        %1482 = vmatpush1.bf16.msra.mxu0 %v1472
        %1483 = vmatprep.subr.bf16.mxu0 0
        %1484 = vmatpush1.bf16.msra.mxu0 %v1471
        %1485 = vmatprep.subr.bf16.mxu0 0
        %1486 = vmatpush1.bf16.msra.mxu0 %v1470
        %1487 = vmatprep.subr.bf16.mxu0 0
        %1488 = vmatpush1.bf16.msra.mxu0 %v1469
        %1489 = vmatprep.subr.bf16.mxu0 0
        %1490 = vmatpush1.bf16.msra.mxu0 %v1468
        %1491 = vmatprep.subr.bf16.mxu0 0
        %1492 = vmatpush1.bf16.msra.mxu0 %v1467
        %1493 = vmatprep.subr.bf16.mxu0 0
        %1494 = vmatpush1.bf16.msra.mxu0 %v1466
        %1495 = vmatprep.subr.bf16.mxu0 0
        %1496 = vmatpush1.bf16.msra.mxu0 %v1465
        %1497 = vmatprep.subr.bf16.mxu0 0
        %1498 = vmatpush2.bf16.msra.mxu0 0
        %1499 = vmatprep.subr.bf16.mxu0 0
        %1500 = vmatpush2.bf16.msra.mxu0 0
        %1501 = vmatprep.subr.bf16.mxu0 0
        %1502 = vmatpush2.bf16.msra.mxu0 0
        %1503 = vmatprep.subr.bf16.mxu0 0
        %1504 = vmatpush2.bf16.msra.mxu0 0
        %1505 = vmatprep.subr.bf16.mxu0 0
        %1506 = vmatpush2.bf16.msra.mxu0 0
        %1507 = vmatprep.subr.bf16.mxu0 0
        %1508 = vmatpush2.bf16.msra.mxu0 0
        %1509 = vmatprep.subr.bf16.mxu0 0
        %1510 = vmatpush2.bf16.msra.mxu0 0
        %1511 = vmatprep.subr.bf16.mxu0 0
        %1512 = vmatpush2.bf16.msra.mxu0 0
        %1513 = vmatprep.mubr.bf16.mxu0 0
        %1514 = vmatmul.mubr.bf16.gmra.mxu0 %v1430
        %v1515 = vpop.f32.mrf.mxu0
        %v1516 = vadd.f32 0.0, %v1515
        %v1517 = vpop.f32.mrf.mxu0
        %v1518 = vpop.f32.mrf.mxu0
        %v1519 = vpop.f32.mrf.mxu0
        %1520 = vdwg.mxu0
        %v1521 = vadd.f32 %v1404, %v1516
        %v1522 = vld [vmem:[%s1192] sm:$0x2]
        %v1523 = vld [vmem:[#allocation2 + $0x300] sm:$0xf]
        %v1524 = vld [vmem:[#allocation2 + $0x304] sm:$0xf]
        %v1525 = vld [vmem:[#allocation2 + $0x308] sm:$0xf]
        %v1526 = vld [vmem:[#allocation2 + $0x30c] sm:$0xf]
        %v1527 = vld [vmem:[#allocation2 + $0x310] sm:$0xf]
        %v1528 = vld [vmem:[#allocation2 + $0x314] sm:$0xf]
        %v1529 = vld [vmem:[#allocation2 + $0x318] sm:$0xf]
        %v1530 = vld [vmem:[#allocation2 + $0x31c] sm:$0xf]
        %v1531 = vld [vmem:[#allocation2 + $0x320] sm:$0xf]
        %v1532 = vld [vmem:[#allocation2 + $0x324] sm:$0xf]
        %v1533 = vld [vmem:[#allocation2 + $0x328] sm:$0xf]
        %v1534 = vld [vmem:[#allocation2 + $0x32c] sm:$0xf]
        %v1535 = vld [vmem:[#allocation2 + $0x330] sm:$0xf]
        %v1536 = vld [vmem:[#allocation2 + $0x334] sm:$0xf]
        %v1537 = vld [vmem:[#allocation2 + $0x338] sm:$0xf]
        %v1538 = vld [vmem:[#allocation2 + $0x33c] sm:$0xf]
        %v1541 = vunpack.c.l.s4 1983009808
        %v1542 = vunpack.c.0.s8 %v1541
        %v1543 = vlaneseq
        %v1544 = vshrl.u32 %v1543, 7
        %v1545 = vsub.s32 %v1542, %v1544
        %v1546 = vrot.slane %v1522, %v1545
        %v1547 = vrot.slane %v1546, 1
        %v1565 = vunpack.c.l.b16 %v1523
        %v1566 = vunpack.c.l.b16 %v1524
        %v1567 = vunpack.c.l.b16 %v1525
        %v1568 = vunpack.c.l.b16 %v1526
        %v1569 = vunpack.c.l.b16 %v1527
        %v1570 = vunpack.c.l.b16 %v1528
        %v1571 = vunpack.c.l.b16 %v1529
        %v1572 = vunpack.c.l.b16 %v1530
        %v1573 = vunpack.c.l.b16 %v1531
        %v1574 = vunpack.c.l.b16 %v1532
        %v1575 = vunpack.c.l.b16 %v1533
        %v1576 = vunpack.c.l.b16 %v1534
        %v1577 = vunpack.c.l.b16 %v1535
        %v1578 = vunpack.c.l.b16 %v1536
        %v1579 = vunpack.c.l.b16 %v1537
        %v1580 = vunpack.c.l.b16 %v1538
        %v1581 = vpack.c.b16 %v1566, %v1565
        %v1582 = vpack.c.b16 %v1568, %v1567
        %v1583 = vpack.c.b16 %v1570, %v1569
        %v1584 = vpack.c.b16 %v1572, %v1571
        %v1585 = vpack.c.b16 %v1574, %v1573
        %v1586 = vpack.c.b16 %v1576, %v1575
        %v1587 = vpack.c.b16 %v1578, %v1577
        %v1588 = vpack.c.b16 %v1580, %v1579
        %1597 = vmatprep.subr.bf16.mxu0 0
        %1598 = vmatpush1.bf16.msra.mxu0 %v1588
        %1599 = vmatprep.subr.bf16.mxu0 0
        %1600 = vmatpush1.bf16.msra.mxu0 %v1587
        %1601 = vmatprep.subr.bf16.mxu0 0
        %1602 = vmatpush1.bf16.msra.mxu0 %v1586
        %1603 = vmatprep.subr.bf16.mxu0 0
        %1604 = vmatpush1.bf16.msra.mxu0 %v1585
        %1605 = vmatprep.subr.bf16.mxu0 0
        %1606 = vmatpush1.bf16.msra.mxu0 %v1584
        %1607 = vmatprep.subr.bf16.mxu0 0
        %1608 = vmatpush1.bf16.msra.mxu0 %v1583
        %1609 = vmatprep.subr.bf16.mxu0 0
        %1610 = vmatpush1.bf16.msra.mxu0 %v1582
        %1611 = vmatprep.subr.bf16.mxu0 0
        %1612 = vmatpush1.bf16.msra.mxu0 %v1581
        %1613 = vmatprep.subr.bf16.mxu0 0
        %1614 = vmatpush2.bf16.msra.mxu0 0
        %1615 = vmatprep.subr.bf16.mxu0 0
        %1616 = vmatpush2.bf16.msra.mxu0 0
        %1617 = vmatprep.subr.bf16.mxu0 0
        %1618 = vmatpush2.bf16.msra.mxu0 0
        %1619 = vmatprep.subr.bf16.mxu0 0
        %1620 = vmatpush2.bf16.msra.mxu0 0
        %1621 = vmatprep.subr.bf16.mxu0 0
        %1622 = vmatpush2.bf16.msra.mxu0 0
        %1623 = vmatprep.subr.bf16.mxu0 0
        %1624 = vmatpush2.bf16.msra.mxu0 0
        %1625 = vmatprep.subr.bf16.mxu0 0
        %1626 = vmatpush2.bf16.msra.mxu0 0
        %1627 = vmatprep.subr.bf16.mxu0 0
        %1628 = vmatpush2.bf16.msra.mxu0 0
        %1629 = vmatprep.mubr.bf16.mxu0 0
        %1630 = vmatmul.mubr.bf16.gmra.mxu0 %v1547
        %v1631 = vpop.f32.mrf.mxu0
        %v1632 = vadd.f32 0.0, %v1631
        %v1633 = vpop.f32.mrf.mxu0
        %v1634 = vpop.f32.mrf.mxu0
        %v1635 = vpop.f32.mrf.mxu0
        %1636 = vdwg.mxu0
        %v1637 = vadd.f32 %v1521, %v1632
        %v1638 = vld [vmem:[%s1192 + $0x2] sm:$0x2]
        %v1639 = vld [vmem:[#allocation2 + $0x340] sm:$0xf]
        %v1640 = vld [vmem:[#allocation2 + $0x344] sm:$0xf]
        %v1641 = vld [vmem:[#allocation2 + $0x348] sm:$0xf]
        %v1642 = vld [vmem:[#allocation2 + $0x34c] sm:$0xf]
        %v1643 = vld [vmem:[#allocation2 + $0x350] sm:$0xf]
        %v1644 = vld [vmem:[#allocation2 + $0x354] sm:$0xf]
        %v1645 = vld [vmem:[#allocation2 + $0x358] sm:$0xf]
        %v1646 = vld [vmem:[#allocation2 + $0x35c] sm:$0xf]
        %v1647 = vld [vmem:[#allocation2 + $0x360] sm:$0xf]
        %v1648 = vld [vmem:[#allocation2 + $0x364] sm:$0xf]
        %v1649 = vld [vmem:[#allocation2 + $0x368] sm:$0xf]
        %v1650 = vld [vmem:[#allocation2 + $0x36c] sm:$0xf]
        %v1651 = vld [vmem:[#allocation2 + $0x370] sm:$0xf]
        %v1652 = vld [vmem:[#allocation2 + $0x374] sm:$0xf]
        %v1653 = vld [vmem:[#allocation2 + $0x378] sm:$0xf]
        %v1654 = vld [vmem:[#allocation2 + $0x37c] sm:$0xf]
        %v1657 = vunpack.c.l.s4 1983009808
        %v1658 = vunpack.c.0.s8 %v1657
        %v1659 = vlaneseq
        %v1660 = vshrl.u32 %v1659, 7
        %v1661 = vsub.s32 %v1658, %v1660
        %v1662 = vrot.slane %v1638, %v1661
        %v1663 = vrot.slane %v1662, 1
        %v1681 = vunpack.c.l.b16 %v1639
        %v1682 = vunpack.c.l.b16 %v1640
        %v1683 = vunpack.c.l.b16 %v1641
        %v1684 = vunpack.c.l.b16 %v1642
        %v1685 = vunpack.c.l.b16 %v1643
        %v1686 = vunpack.c.l.b16 %v1644
        %v1687 = vunpack.c.l.b16 %v1645
        %v1688 = vunpack.c.l.b16 %v1646
        %v1689 = vunpack.c.l.b16 %v1647
        %v1690 = vunpack.c.l.b16 %v1648
        %v1691 = vunpack.c.l.b16 %v1649
        %v1692 = vunpack.c.l.b16 %v1650
        %v1693 = vunpack.c.l.b16 %v1651
        %v1694 = vunpack.c.l.b16 %v1652
        %v1695 = vunpack.c.l.b16 %v1653
        %v1696 = vunpack.c.l.b16 %v1654
        %v1697 = vpack.c.b16 %v1682, %v1681
        %v1698 = vpack.c.b16 %v1684, %v1683
        %v1699 = vpack.c.b16 %v1686, %v1685
        %v1700 = vpack.c.b16 %v1688, %v1687
        %v1701 = vpack.c.b16 %v1690, %v1689
        %v1702 = vpack.c.b16 %v1692, %v1691
        %v1703 = vpack.c.b16 %v1694, %v1693
        %v1704 = vpack.c.b16 %v1696, %v1695
        %1713 = vmatprep.subr.bf16.mxu0 0
        %1714 = vmatpush1.bf16.msra.mxu0 %v1704
        %1715 = vmatprep.subr.bf16.mxu0 0
        %1716 = vmatpush1.bf16.msra.mxu0 %v1703
        %1717 = vmatprep.subr.bf16.mxu0 0
        %1718 = vmatpush1.bf16.msra.mxu0 %v1702
        %1719 = vmatprep.subr.bf16.mxu0 0
        %1720 = vmatpush1.bf16.msra.mxu0 %v1701
        %1721 = vmatprep.subr.bf16.mxu0 0
        %1722 = vmatpush1.bf16.msra.mxu0 %v1700
        %1723 = vmatprep.subr.bf16.mxu0 0
        %1724 = vmatpush1.bf16.msra.mxu0 %v1699
        %1725 = vmatprep.subr.bf16.mxu0 0
        %1726 = vmatpush1.bf16.msra.mxu0 %v1698
        %1727 = vmatprep.subr.bf16.mxu0 0
        %1728 = vmatpush1.bf16.msra.mxu0 %v1697
        %1729 = vmatprep.subr.bf16.mxu0 0
        %1730 = vmatpush2.bf16.msra.mxu0 0
        %1731 = vmatprep.subr.bf16.mxu0 0
        %1732 = vmatpush2.bf16.msra.mxu0 0
        %1733 = vmatprep.subr.bf16.mxu0 0
        %1734 = vmatpush2.bf16.msra.mxu0 0
        %1735 = vmatprep.subr.bf16.mxu0 0
        %1736 = vmatpush2.bf16.msra.mxu0 0
        %1737 = vmatprep.subr.bf16.mxu0 0
        %1738 = vmatpush2.bf16.msra.mxu0 0
        %1739 = vmatprep.subr.bf16.mxu0 0
        %1740 = vmatpush2.bf16.msra.mxu0 0
        %1741 = vmatprep.subr.bf16.mxu0 0
        %1742 = vmatpush2.bf16.msra.mxu0 0
        %1743 = vmatprep.subr.bf16.mxu0 0
        %1744 = vmatpush2.bf16.msra.mxu0 0
        %1745 = vmatprep.mubr.bf16.mxu0 0
        %1746 = vmatmul.mubr.bf16.gmra.mxu0 %v1663
        %v1747 = vpop.f32.mrf.mxu0
        %v1748 = vadd.f32 0.0, %v1747
        %v1749 = vpop.f32.mrf.mxu0
        %v1750 = vpop.f32.mrf.mxu0
        %v1751 = vpop.f32.mrf.mxu0
        %1752 = vdwg.mxu0
        %v1753 = vadd.f32 %v1637, %v1748
        %v1754 = vld [vmem:[%s1192] sm:$0x2]
        %v1755 = vld [vmem:[#allocation2 + $0x380] sm:$0xf]
        %v1756 = vld [vmem:[#allocation2 + $0x384] sm:$0xf]
        %v1757 = vld [vmem:[#allocation2 + $0x388] sm:$0xf]
        %v1758 = vld [vmem:[#allocation2 + $0x38c] sm:$0xf]
        %v1759 = vld [vmem:[#allocation2 + $0x390] sm:$0xf]
        %v1760 = vld [vmem:[#allocation2 + $0x394] sm:$0xf]
        %v1761 = vld [vmem:[#allocation2 + $0x398] sm:$0xf]
        %v1762 = vld [vmem:[#allocation2 + $0x39c] sm:$0xf]
        %v1763 = vld [vmem:[#allocation2 + $0x3a0] sm:$0xf]
        %v1764 = vld [vmem:[#allocation2 + $0x3a4] sm:$0xf]
        %v1765 = vld [vmem:[#allocation2 + $0x3a8] sm:$0xf]
        %v1766 = vld [vmem:[#allocation2 + $0x3ac] sm:$0xf]
        %v1767 = vld [vmem:[#allocation2 + $0x3b0] sm:$0xf]
        %v1768 = vld [vmem:[#allocation2 + $0x3b4] sm:$0xf]
        %v1769 = vld [vmem:[#allocation2 + $0x3b8] sm:$0xf]
        %v1770 = vld [vmem:[#allocation2 + $0x3bc] sm:$0xf]
        %v1773 = vunpack.c.l.s4 1983009808
        %v1774 = vunpack.c.0.s8 %v1773
        %v1775 = vlaneseq
        %v1776 = vshrl.u32 %v1775, 7
        %v1777 = vsub.s32 %v1774, %v1776
        %v1778 = vrot.slane %v1754, %v1777
        %v1780 = vshrl.u32 %v1778, 16
        %v1782 = vrot.slane %v1780, 1
        %v1800 = vunpack.c.l.b16 %v1755
        %v1801 = vunpack.c.l.b16 %v1756
        %v1802 = vunpack.c.l.b16 %v1757
        %v1803 = vunpack.c.l.b16 %v1758
        %v1804 = vunpack.c.l.b16 %v1759
        %v1805 = vunpack.c.l.b16 %v1760
        %v1806 = vunpack.c.l.b16 %v1761
        %v1807 = vunpack.c.l.b16 %v1762
        %v1808 = vunpack.c.l.b16 %v1763
        %v1809 = vunpack.c.l.b16 %v1764
        %v1810 = vunpack.c.l.b16 %v1765
        %v1811 = vunpack.c.l.b16 %v1766
        %v1812 = vunpack.c.l.b16 %v1767
        %v1813 = vunpack.c.l.b16 %v1768
        %v1814 = vunpack.c.l.b16 %v1769
        %v1815 = vunpack.c.l.b16 %v1770
        %v1816 = vpack.c.b16 %v1801, %v1800
        %v1817 = vpack.c.b16 %v1803, %v1802
        %v1818 = vpack.c.b16 %v1805, %v1804
        %v1819 = vpack.c.b16 %v1807, %v1806
        %v1820 = vpack.c.b16 %v1809, %v1808
        %v1821 = vpack.c.b16 %v1811, %v1810
        %v1822 = vpack.c.b16 %v1813, %v1812
        %v1823 = vpack.c.b16 %v1815, %v1814
        %1832 = vmatprep.subr.bf16.mxu0 0
        %1833 = vmatpush1.bf16.msra.mxu0 %v1823
        %1834 = vmatprep.subr.bf16.mxu0 0
        %1835 = vmatpush1.bf16.msra.mxu0 %v1822
        %1836 = vmatprep.subr.bf16.mxu0 0
        %1837 = vmatpush1.bf16.msra.mxu0 %v1821
        %1838 = vmatprep.subr.bf16.mxu0 0
        %1839 = vmatpush1.bf16.msra.mxu0 %v1820
        %1840 = vmatprep.subr.bf16.mxu0 0
        %1841 = vmatpush1.bf16.msra.mxu0 %v1819
        %1842 = vmatprep.subr.bf16.mxu0 0
        %1843 = vmatpush1.bf16.msra.mxu0 %v1818
        %1844 = vmatprep.subr.bf16.mxu0 0
        %1845 = vmatpush1.bf16.msra.mxu0 %v1817
        %1846 = vmatprep.subr.bf16.mxu0 0
        %1847 = vmatpush1.bf16.msra.mxu0 %v1816
        %1848 = vmatprep.subr.bf16.mxu0 0
        %1849 = vmatpush2.bf16.msra.mxu0 0
        %1850 = vmatprep.subr.bf16.mxu0 0
        %1851 = vmatpush2.bf16.msra.mxu0 0
        %1852 = vmatprep.subr.bf16.mxu0 0
        %1853 = vmatpush2.bf16.msra.mxu0 0
        %1854 = vmatprep.subr.bf16.mxu0 0
        %1855 = vmatpush2.bf16.msra.mxu0 0
        %1856 = vmatprep.subr.bf16.mxu0 0
        %1857 = vmatpush2.bf16.msra.mxu0 0
        %1858 = vmatprep.subr.bf16.mxu0 0
        %1859 = vmatpush2.bf16.msra.mxu0 0
        %1860 = vmatprep.subr.bf16.mxu0 0
        %1861 = vmatpush2.bf16.msra.mxu0 0
        %1862 = vmatprep.subr.bf16.mxu0 0
        %1863 = vmatpush2.bf16.msra.mxu0 0
        %1864 = vmatprep.mubr.bf16.mxu0 0
        %1865 = vmatmul.mubr.bf16.gmra.mxu0 %v1782
        %v1866 = vpop.f32.mrf.mxu0
        %v1867 = vadd.f32 0.0, %v1866
        %v1868 = vpop.f32.mrf.mxu0
        %v1869 = vpop.f32.mrf.mxu0
        %v1870 = vpop.f32.mrf.mxu0
        %1871 = vdwg.mxu0
        %v1872 = vadd.f32 %v1753, %v1867
        %s1873 = scalar_lea.vmem %s178, 12
        %v1874 = vld [vmem:[%s1873] sm:$0x1]
        %v1875 = vld [vmem:[#allocation2 + $0x3c0] sm:$0xf]
        %v1876 = vld [vmem:[#allocation2 + $0x3c4] sm:$0xf]
        %v1877 = vld [vmem:[#allocation2 + $0x3c8] sm:$0xf]
        %v1878 = vld [vmem:[#allocation2 + $0x3cc] sm:$0xf]
        %v1879 = vld [vmem:[#allocation2 + $0x3d0] sm:$0xf]
        %v1880 = vld [vmem:[#allocation2 + $0x3d4] sm:$0xf]
        %v1881 = vld [vmem:[#allocation2 + $0x3d8] sm:$0xf]
        %v1882 = vld [vmem:[#allocation2 + $0x3dc] sm:$0xf]
        %v1883 = vld [vmem:[#allocation2 + $0x3e0] sm:$0xf]
        %v1884 = vld [vmem:[#allocation2 + $0x3e4] sm:$0xf]
        %v1885 = vld [vmem:[#allocation2 + $0x3e8] sm:$0xf]
        %v1886 = vld [vmem:[#allocation2 + $0x3ec] sm:$0xf]
        %v1887 = vld [vmem:[#allocation2 + $0x3f0] sm:$0xf]
        %v1888 = vld [vmem:[#allocation2 + $0x3f4] sm:$0xf]
        %v1889 = vld [vmem:[#allocation2 + $0x3f8] sm:$0xf]
        %v1890 = vld [vmem:[#allocation2 + $0x3fc] sm:$0xf]
        %v1907 = vunpack.c.l.b16 %v1875
        %v1908 = vunpack.c.l.b16 %v1876
        %v1909 = vunpack.c.l.b16 %v1877
        %v1910 = vunpack.c.l.b16 %v1878
        %v1911 = vunpack.c.l.b16 %v1879
        %v1912 = vunpack.c.l.b16 %v1880
        %v1913 = vunpack.c.l.b16 %v1881
        %v1914 = vunpack.c.l.b16 %v1882
        %v1915 = vunpack.c.l.b16 %v1883
        %v1916 = vunpack.c.l.b16 %v1884
        %v1917 = vunpack.c.l.b16 %v1885
        %v1918 = vunpack.c.l.b16 %v1886
        %v1919 = vunpack.c.l.b16 %v1887
        %v1920 = vunpack.c.l.b16 %v1888
        %v1921 = vunpack.c.l.b16 %v1889
        %v1922 = vunpack.c.l.b16 %v1890
        %v1923 = vpack.c.b16 %v1908, %v1907
        %v1924 = vpack.c.b16 %v1910, %v1909
        %v1925 = vpack.c.b16 %v1912, %v1911
        %v1926 = vpack.c.b16 %v1914, %v1913
        %v1927 = vpack.c.b16 %v1916, %v1915
        %v1928 = vpack.c.b16 %v1918, %v1917
        %v1929 = vpack.c.b16 %v1920, %v1919
        %v1930 = vpack.c.b16 %v1922, %v1921
        %1939 = vmatprep.subr.bf16.mxu0 0
        %1940 = vmatpush1.bf16.msra.mxu0 %v1930
        %1941 = vmatprep.subr.bf16.mxu0 0
        %1942 = vmatpush1.bf16.msra.mxu0 %v1929
        %1943 = vmatprep.subr.bf16.mxu0 0
        %1944 = vmatpush1.bf16.msra.mxu0 %v1928
        %1945 = vmatprep.subr.bf16.mxu0 0
        %1946 = vmatpush1.bf16.msra.mxu0 %v1927
        %1947 = vmatprep.subr.bf16.mxu0 0
        %1948 = vmatpush1.bf16.msra.mxu0 %v1926
        %1949 = vmatprep.subr.bf16.mxu0 0
        %1950 = vmatpush1.bf16.msra.mxu0 %v1925
        %1951 = vmatprep.subr.bf16.mxu0 0
        %1952 = vmatpush1.bf16.msra.mxu0 %v1924
        %1953 = vmatprep.subr.bf16.mxu0 0
        %1954 = vmatpush1.bf16.msra.mxu0 %v1923
        %1955 = vmatprep.subr.bf16.mxu0 0
        %1956 = vmatpush2.bf16.msra.mxu0 0
        %1957 = vmatprep.subr.bf16.mxu0 0
        %1958 = vmatpush2.bf16.msra.mxu0 0
        %1959 = vmatprep.subr.bf16.mxu0 0
        %1960 = vmatpush2.bf16.msra.mxu0 0
        %1961 = vmatprep.subr.bf16.mxu0 0
        %1962 = vmatpush2.bf16.msra.mxu0 0
        %1963 = vmatprep.subr.bf16.mxu0 0
        %1964 = vmatpush2.bf16.msra.mxu0 0
        %1965 = vmatprep.subr.bf16.mxu0 0
        %1966 = vmatpush2.bf16.msra.mxu0 0
        %1967 = vmatprep.subr.bf16.mxu0 0
        %1968 = vmatpush2.bf16.msra.mxu0 0
        %1969 = vmatprep.subr.bf16.mxu0 0
        %1970 = vmatpush2.bf16.msra.mxu0 0
        %1971 = vmatprep.mubr.bf16.mxu0 0
        %1972 = vmatmul.mubr.bf16.gmra.mxu0 %v1874
        %v1973 = vpop.f32.mrf.mxu0
        %v1974 = vadd.f32 0.0, %v1973
        %v1975 = vpop.f32.mrf.mxu0
        %v1976 = vpop.f32.mrf.mxu0
        %v1977 = vpop.f32.mrf.mxu0
        %1978 = vdwg.mxu0
        %v1979 = vadd.f32 %v1872, %v1974
        %v1980 = vld [vmem:[%s1873 + $0x2] sm:$0x1]
        %v1981 = vld [vmem:[#allocation2 + $0x400] sm:$0xf]
        %v1982 = vld [vmem:[#allocation2 + $0x404] sm:$0xf]
        %v1983 = vld [vmem:[#allocation2 + $0x408] sm:$0xf]
        %v1984 = vld [vmem:[#allocation2 + $0x40c] sm:$0xf]
        %v1985 = vld [vmem:[#allocation2 + $0x410] sm:$0xf]
        %v1986 = vld [vmem:[#allocation2 + $0x414] sm:$0xf]
        %v1987 = vld [vmem:[#allocation2 + $0x418] sm:$0xf]
        %v1988 = vld [vmem:[#allocation2 + $0x41c] sm:$0xf]
        %v1989 = vld [vmem:[#allocation2 + $0x420] sm:$0xf]
        %v1990 = vld [vmem:[#allocation2 + $0x424] sm:$0xf]
        %v1991 = vld [vmem:[#allocation2 + $0x428] sm:$0xf]
        %v1992 = vld [vmem:[#allocation2 + $0x42c] sm:$0xf]
        %v1993 = vld [vmem:[#allocation2 + $0x430] sm:$0xf]
        %v1994 = vld [vmem:[#allocation2 + $0x434] sm:$0xf]
        %v1995 = vld [vmem:[#allocation2 + $0x438] sm:$0xf]
        %v1996 = vld [vmem:[#allocation2 + $0x43c] sm:$0xf]
        %v2013 = vunpack.c.l.b16 %v1981
        %v2014 = vunpack.c.l.b16 %v1982
        %v2015 = vunpack.c.l.b16 %v1983
        %v2016 = vunpack.c.l.b16 %v1984
        %v2017 = vunpack.c.l.b16 %v1985
        %v2018 = vunpack.c.l.b16 %v1986
        %v2019 = vunpack.c.l.b16 %v1987
        %v2020 = vunpack.c.l.b16 %v1988
        %v2021 = vunpack.c.l.b16 %v1989
        %v2022 = vunpack.c.l.b16 %v1990
        %v2023 = vunpack.c.l.b16 %v1991
        %v2024 = vunpack.c.l.b16 %v1992
        %v2025 = vunpack.c.l.b16 %v1993
        %v2026 = vunpack.c.l.b16 %v1994
        %v2027 = vunpack.c.l.b16 %v1995
        %v2028 = vunpack.c.l.b16 %v1996
        %v2029 = vpack.c.b16 %v2014, %v2013
        %v2030 = vpack.c.b16 %v2016, %v2015
        %v2031 = vpack.c.b16 %v2018, %v2017
        %v2032 = vpack.c.b16 %v2020, %v2019
        %v2033 = vpack.c.b16 %v2022, %v2021
        %v2034 = vpack.c.b16 %v2024, %v2023
        %v2035 = vpack.c.b16 %v2026, %v2025
        %v2036 = vpack.c.b16 %v2028, %v2027
        %2045 = vmatprep.subr.bf16.mxu0 0
        %2046 = vmatpush1.bf16.msra.mxu0 %v2036
        %2047 = vmatprep.subr.bf16.mxu0 0
        %2048 = vmatpush1.bf16.msra.mxu0 %v2035
        %2049 = vmatprep.subr.bf16.mxu0 0
        %2050 = vmatpush1.bf16.msra.mxu0 %v2034
        %2051 = vmatprep.subr.bf16.mxu0 0
        %2052 = vmatpush1.bf16.msra.mxu0 %v2033
        %2053 = vmatprep.subr.bf16.mxu0 0
        %2054 = vmatpush1.bf16.msra.mxu0 %v2032
        %2055 = vmatprep.subr.bf16.mxu0 0
        %2056 = vmatpush1.bf16.msra.mxu0 %v2031
        %2057 = vmatprep.subr.bf16.mxu0 0
        %2058 = vmatpush1.bf16.msra.mxu0 %v2030
        %2059 = vmatprep.subr.bf16.mxu0 0
        %2060 = vmatpush1.bf16.msra.mxu0 %v2029
        %2061 = vmatprep.subr.bf16.mxu0 0
        %2062 = vmatpush2.bf16.msra.mxu0 0
        %2063 = vmatprep.subr.bf16.mxu0 0
        %2064 = vmatpush2.bf16.msra.mxu0 0
        %2065 = vmatprep.subr.bf16.mxu0 0
        %2066 = vmatpush2.bf16.msra.mxu0 0
        %2067 = vmatprep.subr.bf16.mxu0 0
        %2068 = vmatpush2.bf16.msra.mxu0 0
        %2069 = vmatprep.subr.bf16.mxu0 0
        %2070 = vmatpush2.bf16.msra.mxu0 0
        %2071 = vmatprep.subr.bf16.mxu0 0
        %2072 = vmatpush2.bf16.msra.mxu0 0
        %2073 = vmatprep.subr.bf16.mxu0 0
        %2074 = vmatpush2.bf16.msra.mxu0 0
        %2075 = vmatprep.subr.bf16.mxu0 0
        %2076 = vmatpush2.bf16.msra.mxu0 0
        %2077 = vmatprep.mubr.bf16.mxu0 0
        %2078 = vmatmul.mubr.bf16.gmra.mxu0 %v1980
        %v2079 = vpop.f32.mrf.mxu0
        %v2080 = vadd.f32 0.0, %v2079
        %v2081 = vpop.f32.mrf.mxu0
        %v2082 = vpop.f32.mrf.mxu0
        %v2083 = vpop.f32.mrf.mxu0
        %2084 = vdwg.mxu0
        %v2085 = vadd.f32 %v1979, %v2080
        %v2086 = vld [vmem:[#allocation2 + $0x440] sm:$0xf]
        %v2087 = vld [vmem:[#allocation2 + $0x444] sm:$0xf]
        %v2088 = vld [vmem:[#allocation2 + $0x448] sm:$0xf]
        %v2089 = vld [vmem:[#allocation2 + $0x44c] sm:$0xf]
        %v2090 = vld [vmem:[#allocation2 + $0x450] sm:$0xf]
        %v2091 = vld [vmem:[#allocation2 + $0x454] sm:$0xf]
        %v2092 = vld [vmem:[#allocation2 + $0x458] sm:$0xf]
        %v2093 = vld [vmem:[#allocation2 + $0x45c] sm:$0xf]
        %v2094 = vld [vmem:[#allocation2 + $0x460] sm:$0xf]
        %v2095 = vld [vmem:[#allocation2 + $0x464] sm:$0xf]
        %v2096 = vld [vmem:[#allocation2 + $0x468] sm:$0xf]
        %v2097 = vld [vmem:[#allocation2 + $0x46c] sm:$0xf]
        %v2098 = vld [vmem:[#allocation2 + $0x470] sm:$0xf]
        %v2099 = vld [vmem:[#allocation2 + $0x474] sm:$0xf]
        %v2100 = vld [vmem:[#allocation2 + $0x478] sm:$0xf]
        %v2101 = vld [vmem:[#allocation2 + $0x47c] sm:$0xf]
        %v2104 = vunpack.c.l.s4 1983009808
        %v2105 = vunpack.c.0.s8 %v2104
        %v2106 = vlaneseq
        %v2107 = vshrl.u32 %v2106, 7
        %v2108 = vsub.s32 %v2105, %v2107
        %v2109 = vrot.slane %v1874, %v2108
        %v2111 = vshrl.u32 %v2109, 16
        %v2130 = vunpack.c.l.b16 %v2086
        %v2131 = vunpack.c.l.b16 %v2087
        %v2132 = vunpack.c.l.b16 %v2088
        %v2133 = vunpack.c.l.b16 %v2089
        %v2134 = vunpack.c.l.b16 %v2090
        %v2135 = vunpack.c.l.b16 %v2091
        %v2136 = vunpack.c.l.b16 %v2092
        %v2137 = vunpack.c.l.b16 %v2093
        %v2138 = vunpack.c.l.b16 %v2094
        %v2139 = vunpack.c.l.b16 %v2095
        %v2140 = vunpack.c.l.b16 %v2096
        %v2141 = vunpack.c.l.b16 %v2097
        %v2142 = vunpack.c.l.b16 %v2098
        %v2143 = vunpack.c.l.b16 %v2099
        %v2144 = vunpack.c.l.b16 %v2100
        %v2145 = vunpack.c.l.b16 %v2101
        %v2146 = vpack.c.b16 %v2131, %v2130
        %v2147 = vpack.c.b16 %v2133, %v2132
        %v2148 = vpack.c.b16 %v2135, %v2134
        %v2149 = vpack.c.b16 %v2137, %v2136
        %v2150 = vpack.c.b16 %v2139, %v2138
        %v2151 = vpack.c.b16 %v2141, %v2140
        %v2152 = vpack.c.b16 %v2143, %v2142
        %v2153 = vpack.c.b16 %v2145, %v2144
        %2162 = vmatprep.subr.bf16.mxu0 0
        %2163 = vmatpush1.bf16.msra.mxu0 %v2153
        %2164 = vmatprep.subr.bf16.mxu0 0
        %2165 = vmatpush1.bf16.msra.mxu0 %v2152
        %2166 = vmatprep.subr.bf16.mxu0 0
        %2167 = vmatpush1.bf16.msra.mxu0 %v2151
        %2168 = vmatprep.subr.bf16.mxu0 0
        %2169 = vmatpush1.bf16.msra.mxu0 %v2150
        %2170 = vmatprep.subr.bf16.mxu0 0
        %2171 = vmatpush1.bf16.msra.mxu0 %v2149
        %2172 = vmatprep.subr.bf16.mxu0 0
        %2173 = vmatpush1.bf16.msra.mxu0 %v2148
        %2174 = vmatprep.subr.bf16.mxu0 0
        %2175 = vmatpush1.bf16.msra.mxu0 %v2147
        %2176 = vmatprep.subr.bf16.mxu0 0
        %2177 = vmatpush1.bf16.msra.mxu0 %v2146
        %2178 = vmatprep.subr.bf16.mxu0 0
        %2179 = vmatpush2.bf16.msra.mxu0 0
        %2180 = vmatprep.subr.bf16.mxu0 0
        %2181 = vmatpush2.bf16.msra.mxu0 0
        %2182 = vmatprep.subr.bf16.mxu0 0
        %2183 = vmatpush2.bf16.msra.mxu0 0
        %2184 = vmatprep.subr.bf16.mxu0 0
        %2185 = vmatpush2.bf16.msra.mxu0 0
        %2186 = vmatprep.subr.bf16.mxu0 0
        %2187 = vmatpush2.bf16.msra.mxu0 0
        %2188 = vmatprep.subr.bf16.mxu0 0
        %2189 = vmatpush2.bf16.msra.mxu0 0
        %2190 = vmatprep.subr.bf16.mxu0 0
        %2191 = vmatpush2.bf16.msra.mxu0 0
        %2192 = vmatprep.subr.bf16.mxu0 0
        %2193 = vmatpush2.bf16.msra.mxu0 0
        %2194 = vmatprep.mubr.bf16.mxu0 0
        %2195 = vmatmul.mubr.bf16.gmra.mxu0 %v2111
        %v2196 = vpop.f32.mrf.mxu0
        %v2197 = vadd.f32 0.0, %v2196
        %v2198 = vpop.f32.mrf.mxu0
        %v2199 = vpop.f32.mrf.mxu0
        %v2200 = vpop.f32.mrf.mxu0
        %2201 = vdwg.mxu0
        %v2202 = vadd.f32 %v2085, %v2197
        %s2203 = scalar_lea.vmem %s178, 16
        %v2204 = vld [vmem:[%s2203] sm:$0x1]
        %v2205 = vld [vmem:[#allocation2 + $0x480] sm:$0xf]
        %v2206 = vld [vmem:[#allocation2 + $0x484] sm:$0xf]
        %v2207 = vld [vmem:[#allocation2 + $0x488] sm:$0xf]
        %v2208 = vld [vmem:[#allocation2 + $0x48c] sm:$0xf]
        %v2209 = vld [vmem:[#allocation2 + $0x490] sm:$0xf]
        %v2210 = vld [vmem:[#allocation2 + $0x494] sm:$0xf]
        %v2211 = vld [vmem:[#allocation2 + $0x498] sm:$0xf]
        %v2212 = vld [vmem:[#allocation2 + $0x49c] sm:$0xf]
        %v2213 = vld [vmem:[#allocation2 + $0x4a0] sm:$0xf]
        %v2214 = vld [vmem:[#allocation2 + $0x4a4] sm:$0xf]
        %v2215 = vld [vmem:[#allocation2 + $0x4a8] sm:$0xf]
        %v2216 = vld [vmem:[#allocation2 + $0x4ac] sm:$0xf]
        %v2217 = vld [vmem:[#allocation2 + $0x4b0] sm:$0xf]
        %v2218 = vld [vmem:[#allocation2 + $0x4b4] sm:$0xf]
        %v2219 = vld [vmem:[#allocation2 + $0x4b8] sm:$0xf]
        %v2220 = vld [vmem:[#allocation2 + $0x4bc] sm:$0xf]
        %v2237 = vunpack.c.l.b16 %v2205
        %v2238 = vunpack.c.l.b16 %v2206
        %v2239 = vunpack.c.l.b16 %v2207
        %v2240 = vunpack.c.l.b16 %v2208
        %v2241 = vunpack.c.l.b16 %v2209
        %v2242 = vunpack.c.l.b16 %v2210
        %v2243 = vunpack.c.l.b16 %v2211
        %v2244 = vunpack.c.l.b16 %v2212
        %v2245 = vunpack.c.l.b16 %v2213
        %v2246 = vunpack.c.l.b16 %v2214
        %v2247 = vunpack.c.l.b16 %v2215
        %v2248 = vunpack.c.l.b16 %v2216
        %v2249 = vunpack.c.l.b16 %v2217
        %v2250 = vunpack.c.l.b16 %v2218
        %v2251 = vunpack.c.l.b16 %v2219
        %v2252 = vunpack.c.l.b16 %v2220
        %v2253 = vpack.c.b16 %v2238, %v2237
        %v2254 = vpack.c.b16 %v2240, %v2239
        %v2255 = vpack.c.b16 %v2242, %v2241
        %v2256 = vpack.c.b16 %v2244, %v2243
        %v2257 = vpack.c.b16 %v2246, %v2245
        %v2258 = vpack.c.b16 %v2248, %v2247
        %v2259 = vpack.c.b16 %v2250, %v2249
        %v2260 = vpack.c.b16 %v2252, %v2251
        %2269 = vmatprep.subr.bf16.mxu0 0
        %2270 = vmatpush1.bf16.msra.mxu0 %v2260
        %2271 = vmatprep.subr.bf16.mxu0 0
        %2272 = vmatpush1.bf16.msra.mxu0 %v2259
        %2273 = vmatprep.subr.bf16.mxu0 0
        %2274 = vmatpush1.bf16.msra.mxu0 %v2258
        %2275 = vmatprep.subr.bf16.mxu0 0
        %2276 = vmatpush1.bf16.msra.mxu0 %v2257
        %2277 = vmatprep.subr.bf16.mxu0 0
        %2278 = vmatpush1.bf16.msra.mxu0 %v2256
        %2279 = vmatprep.subr.bf16.mxu0 0
        %2280 = vmatpush1.bf16.msra.mxu0 %v2255
        %2281 = vmatprep.subr.bf16.mxu0 0
        %2282 = vmatpush1.bf16.msra.mxu0 %v2254
        %2283 = vmatprep.subr.bf16.mxu0 0
        %2284 = vmatpush1.bf16.msra.mxu0 %v2253
        %2285 = vmatprep.subr.bf16.mxu0 0
        %2286 = vmatpush2.bf16.msra.mxu0 0
        %2287 = vmatprep.subr.bf16.mxu0 0
        %2288 = vmatpush2.bf16.msra.mxu0 0
        %2289 = vmatprep.subr.bf16.mxu0 0
        %2290 = vmatpush2.bf16.msra.mxu0 0
        %2291 = vmatprep.subr.bf16.mxu0 0
        %2292 = vmatpush2.bf16.msra.mxu0 0
        %2293 = vmatprep.subr.bf16.mxu0 0
        %2294 = vmatpush2.bf16.msra.mxu0 0
        %2295 = vmatprep.subr.bf16.mxu0 0
        %2296 = vmatpush2.bf16.msra.mxu0 0
        %2297 = vmatprep.subr.bf16.mxu0 0
        %2298 = vmatpush2.bf16.msra.mxu0 0
        %2299 = vmatprep.subr.bf16.mxu0 0
        %2300 = vmatpush2.bf16.msra.mxu0 0
        %2301 = vmatprep.mubr.bf16.mxu0 0
        %2302 = vmatmul.mubr.bf16.gmra.mxu0 %v2204
        %v2303 = vpop.f32.mrf.mxu0
        %v2304 = vadd.f32 0.0, %v2303
        %v2305 = vpop.f32.mrf.mxu0
        %v2306 = vpop.f32.mrf.mxu0
        %v2307 = vpop.f32.mrf.mxu0
        %2308 = vdwg.mxu0
        %v2309 = vadd.f32 %v2202, %v2304
        %v2310 = vld [vmem:[%s2203 + $0x2] sm:$0x1]
        %v2311 = vld [vmem:[#allocation2 + $0x4c0] sm:$0xf]
        %v2312 = vld [vmem:[#allocation2 + $0x4c4] sm:$0xf]
        %v2313 = vld [vmem:[#allocation2 + $0x4c8] sm:$0xf]
        %v2314 = vld [vmem:[#allocation2 + $0x4cc] sm:$0xf]
        %v2315 = vld [vmem:[#allocation2 + $0x4d0] sm:$0xf]
        %v2316 = vld [vmem:[#allocation2 + $0x4d4] sm:$0xf]
        %v2317 = vld [vmem:[#allocation2 + $0x4d8] sm:$0xf]
        %v2318 = vld [vmem:[#allocation2 + $0x4dc] sm:$0xf]
        %v2319 = vld [vmem:[#allocation2 + $0x4e0] sm:$0xf]
        %v2320 = vld [vmem:[#allocation2 + $0x4e4] sm:$0xf]
        %v2321 = vld [vmem:[#allocation2 + $0x4e8] sm:$0xf]
        %v2322 = vld [vmem:[#allocation2 + $0x4ec] sm:$0xf]
        %v2323 = vld [vmem:[#allocation2 + $0x4f0] sm:$0xf]
        %v2324 = vld [vmem:[#allocation2 + $0x4f4] sm:$0xf]
        %v2325 = vld [vmem:[#allocation2 + $0x4f8] sm:$0xf]
        %v2326 = vld [vmem:[#allocation2 + $0x4fc] sm:$0xf]
        %v2343 = vunpack.c.l.b16 %v2311
        %v2344 = vunpack.c.l.b16 %v2312
        %v2345 = vunpack.c.l.b16 %v2313
        %v2346 = vunpack.c.l.b16 %v2314
        %v2347 = vunpack.c.l.b16 %v2315
        %v2348 = vunpack.c.l.b16 %v2316
        %v2349 = vunpack.c.l.b16 %v2317
        %v2350 = vunpack.c.l.b16 %v2318
        %v2351 = vunpack.c.l.b16 %v2319
        %v2352 = vunpack.c.l.b16 %v2320
        %v2353 = vunpack.c.l.b16 %v2321
        %v2354 = vunpack.c.l.b16 %v2322
        %v2355 = vunpack.c.l.b16 %v2323
        %v2356 = vunpack.c.l.b16 %v2324
        %v2357 = vunpack.c.l.b16 %v2325
        %v2358 = vunpack.c.l.b16 %v2326
        %v2359 = vpack.c.b16 %v2344, %v2343
        %v2360 = vpack.c.b16 %v2346, %v2345
        %v2361 = vpack.c.b16 %v2348, %v2347
        %v2362 = vpack.c.b16 %v2350, %v2349
        %v2363 = vpack.c.b16 %v2352, %v2351
        %v2364 = vpack.c.b16 %v2354, %v2353
        %v2365 = vpack.c.b16 %v2356, %v2355
        %v2366 = vpack.c.b16 %v2358, %v2357
        %2375 = vmatprep.subr.bf16.mxu0 0
        %2376 = vmatpush1.bf16.msra.mxu0 %v2366
        %2377 = vmatprep.subr.bf16.mxu0 0
        %2378 = vmatpush1.bf16.msra.mxu0 %v2365
        %2379 = vmatprep.subr.bf16.mxu0 0
        %2380 = vmatpush1.bf16.msra.mxu0 %v2364
        %2381 = vmatprep.subr.bf16.mxu0 0
        %2382 = vmatpush1.bf16.msra.mxu0 %v2363
        %2383 = vmatprep.subr.bf16.mxu0 0
        %2384 = vmatpush1.bf16.msra.mxu0 %v2362
        %2385 = vmatprep.subr.bf16.mxu0 0
        %2386 = vmatpush1.bf16.msra.mxu0 %v2361
        %2387 = vmatprep.subr.bf16.mxu0 0
        %2388 = vmatpush1.bf16.msra.mxu0 %v2360
        %2389 = vmatprep.subr.bf16.mxu0 0
        %2390 = vmatpush1.bf16.msra.mxu0 %v2359
        %2391 = vmatprep.subr.bf16.mxu0 0
        %2392 = vmatpush2.bf16.msra.mxu0 0
        %2393 = vmatprep.subr.bf16.mxu0 0
        %2394 = vmatpush2.bf16.msra.mxu0 0
        %2395 = vmatprep.subr.bf16.mxu0 0
        %2396 = vmatpush2.bf16.msra.mxu0 0
        %2397 = vmatprep.subr.bf16.mxu0 0
        %2398 = vmatpush2.bf16.msra.mxu0 0
        %2399 = vmatprep.subr.bf16.mxu0 0
        %2400 = vmatpush2.bf16.msra.mxu0 0
        %2401 = vmatprep.subr.bf16.mxu0 0
        %2402 = vmatpush2.bf16.msra.mxu0 0
        %2403 = vmatprep.subr.bf16.mxu0 0
        %2404 = vmatpush2.bf16.msra.mxu0 0
        %2405 = vmatprep.subr.bf16.mxu0 0
        %2406 = vmatpush2.bf16.msra.mxu0 0
        %2407 = vmatprep.mubr.bf16.mxu0 0
        %2408 = vmatmul.mubr.bf16.gmra.mxu0 %v2310
        %v2409 = vpop.f32.mrf.mxu0
        %v2410 = vadd.f32 0.0, %v2409
        %v2411 = vpop.f32.mrf.mxu0
        %v2412 = vpop.f32.mrf.mxu0
        %v2413 = vpop.f32.mrf.mxu0
        %2414 = vdwg.mxu0
        %v2415 = vadd.f32 %v2309, %v2410
        %v2416 = vld [vmem:[#allocation2 + $0x500] sm:$0xf]
        %v2417 = vld [vmem:[#allocation2 + $0x504] sm:$0xf]
        %v2418 = vld [vmem:[#allocation2 + $0x508] sm:$0xf]
        %v2419 = vld [vmem:[#allocation2 + $0x50c] sm:$0xf]
        %v2420 = vld [vmem:[#allocation2 + $0x510] sm:$0xf]
        %v2421 = vld [vmem:[#allocation2 + $0x514] sm:$0xf]
        %v2422 = vld [vmem:[#allocation2 + $0x518] sm:$0xf]
        %v2423 = vld [vmem:[#allocation2 + $0x51c] sm:$0xf]
        %v2424 = vld [vmem:[#allocation2 + $0x520] sm:$0xf]
        %v2425 = vld [vmem:[#allocation2 + $0x524] sm:$0xf]
        %v2426 = vld [vmem:[#allocation2 + $0x528] sm:$0xf]
        %v2427 = vld [vmem:[#allocation2 + $0x52c] sm:$0xf]
        %v2428 = vld [vmem:[#allocation2 + $0x530] sm:$0xf]
        %v2429 = vld [vmem:[#allocation2 + $0x534] sm:$0xf]
        %v2430 = vld [vmem:[#allocation2 + $0x538] sm:$0xf]
        %v2431 = vld [vmem:[#allocation2 + $0x53c] sm:$0xf]
        %v2434 = vunpack.c.l.s4 1983009808
        %v2435 = vunpack.c.0.s8 %v2434
        %v2436 = vlaneseq
        %v2437 = vshrl.u32 %v2436, 7
        %v2438 = vsub.s32 %v2435, %v2437
        %v2439 = vrot.slane %v2204, %v2438
        %v2441 = vshrl.u32 %v2439, 16
        %v2460 = vunpack.c.l.b16 %v2416
        %v2461 = vunpack.c.l.b16 %v2417
        %v2462 = vunpack.c.l.b16 %v2418
        %v2463 = vunpack.c.l.b16 %v2419
        %v2464 = vunpack.c.l.b16 %v2420
        %v2465 = vunpack.c.l.b16 %v2421
        %v2466 = vunpack.c.l.b16 %v2422
        %v2467 = vunpack.c.l.b16 %v2423
        %v2468 = vunpack.c.l.b16 %v2424
        %v2469 = vunpack.c.l.b16 %v2425
        %v2470 = vunpack.c.l.b16 %v2426
        %v2471 = vunpack.c.l.b16 %v2427
        %v2472 = vunpack.c.l.b16 %v2428
        %v2473 = vunpack.c.l.b16 %v2429
        %v2474 = vunpack.c.l.b16 %v2430
        %v2475 = vunpack.c.l.b16 %v2431
        %v2476 = vpack.c.b16 %v2461, %v2460
        %v2477 = vpack.c.b16 %v2463, %v2462
        %v2478 = vpack.c.b16 %v2465, %v2464
        %v2479 = vpack.c.b16 %v2467, %v2466
        %v2480 = vpack.c.b16 %v2469, %v2468
        %v2481 = vpack.c.b16 %v2471, %v2470
        %v2482 = vpack.c.b16 %v2473, %v2472
        %v2483 = vpack.c.b16 %v2475, %v2474
        %2492 = vmatprep.subr.bf16.mxu0 0
        %2493 = vmatpush1.bf16.msra.mxu0 %v2483
        %2494 = vmatprep.subr.bf16.mxu0 0
        %2495 = vmatpush1.bf16.msra.mxu0 %v2482
        %2496 = vmatprep.subr.bf16.mxu0 0
        %2497 = vmatpush1.bf16.msra.mxu0 %v2481
        %2498 = vmatprep.subr.bf16.mxu0 0
        %2499 = vmatpush1.bf16.msra.mxu0 %v2480
        %2500 = vmatprep.subr.bf16.mxu0 0
        %2501 = vmatpush1.bf16.msra.mxu0 %v2479
        %2502 = vmatprep.subr.bf16.mxu0 0
        %2503 = vmatpush1.bf16.msra.mxu0 %v2478
        %2504 = vmatprep.subr.bf16.mxu0 0
        %2505 = vmatpush1.bf16.msra.mxu0 %v2477
        %2506 = vmatprep.subr.bf16.mxu0 0
        %2507 = vmatpush1.bf16.msra.mxu0 %v2476
        %2508 = vmatprep.subr.bf16.mxu0 0
        %2509 = vmatpush2.bf16.msra.mxu0 0
        %2510 = vmatprep.subr.bf16.mxu0 0
        %2511 = vmatpush2.bf16.msra.mxu0 0
        %2512 = vmatprep.subr.bf16.mxu0 0
        %2513 = vmatpush2.bf16.msra.mxu0 0
        %2514 = vmatprep.subr.bf16.mxu0 0
        %2515 = vmatpush2.bf16.msra.mxu0 0
        %2516 = vmatprep.subr.bf16.mxu0 0
        %2517 = vmatpush2.bf16.msra.mxu0 0
        %2518 = vmatprep.subr.bf16.mxu0 0
        %2519 = vmatpush2.bf16.msra.mxu0 0
        %2520 = vmatprep.subr.bf16.mxu0 0
        %2521 = vmatpush2.bf16.msra.mxu0 0
        %2522 = vmatprep.subr.bf16.mxu0 0
        %2523 = vmatpush2.bf16.msra.mxu0 0
        %2524 = vmatprep.mubr.bf16.mxu0 0
        %2525 = vmatmul.mubr.bf16.gmra.mxu0 %v2441
        %v2526 = vpop.f32.mrf.mxu0
        %v2527 = vadd.f32 0.0, %v2526
        %v2528 = vpop.f32.mrf.mxu0
        %v2529 = vpop.f32.mrf.mxu0
        %v2530 = vpop.f32.mrf.mxu0
        %2531 = vdwg.mxu0
        %v2532 = vadd.f32 %v2415, %v2527
        %v2533 = vld [vmem:[%s2203] sm:$0x2]
        %v2534 = vld [vmem:[#allocation2 + $0x540] sm:$0xf]
        %v2535 = vld [vmem:[#allocation2 + $0x544] sm:$0xf]
        %v2536 = vld [vmem:[#allocation2 + $0x548] sm:$0xf]
        %v2537 = vld [vmem:[#allocation2 + $0x54c] sm:$0xf]
        %v2538 = vld [vmem:[#allocation2 + $0x550] sm:$0xf]
        %v2539 = vld [vmem:[#allocation2 + $0x554] sm:$0xf]
        %v2540 = vld [vmem:[#allocation2 + $0x558] sm:$0xf]
        %v2541 = vld [vmem:[#allocation2 + $0x55c] sm:$0xf]
        %v2542 = vld [vmem:[#allocation2 + $0x560] sm:$0xf]
        %v2543 = vld [vmem:[#allocation2 + $0x564] sm:$0xf]
        %v2544 = vld [vmem:[#allocation2 + $0x568] sm:$0xf]
        %v2545 = vld [vmem:[#allocation2 + $0x56c] sm:$0xf]
        %v2546 = vld [vmem:[#allocation2 + $0x570] sm:$0xf]
        %v2547 = vld [vmem:[#allocation2 + $0x574] sm:$0xf]
        %v2548 = vld [vmem:[#allocation2 + $0x578] sm:$0xf]
        %v2549 = vld [vmem:[#allocation2 + $0x57c] sm:$0xf]
        %v2552 = vunpack.c.l.s4 1983009808
        %v2553 = vunpack.c.0.s8 %v2552
        %v2554 = vlaneseq
        %v2555 = vshrl.u32 %v2554, 7
        %v2556 = vsub.s32 %v2553, %v2555
        %v2557 = vrot.slane %v2533, %v2556
        %v2558 = vrot.slane %v2557, 1
        %v2576 = vunpack.c.l.b16 %v2534
        %v2577 = vunpack.c.l.b16 %v2535
        %v2578 = vunpack.c.l.b16 %v2536
        %v2579 = vunpack.c.l.b16 %v2537
        %v2580 = vunpack.c.l.b16 %v2538
        %v2581 = vunpack.c.l.b16 %v2539
        %v2582 = vunpack.c.l.b16 %v2540
        %v2583 = vunpack.c.l.b16 %v2541
        %v2584 = vunpack.c.l.b16 %v2542
        %v2585 = vunpack.c.l.b16 %v2543
        %v2586 = vunpack.c.l.b16 %v2544
        %v2587 = vunpack.c.l.b16 %v2545
        %v2588 = vunpack.c.l.b16 %v2546
        %v2589 = vunpack.c.l.b16 %v2547
        %v2590 = vunpack.c.l.b16 %v2548
        %v2591 = vunpack.c.l.b16 %v2549
        %v2592 = vpack.c.b16 %v2577, %v2576
        %v2593 = vpack.c.b16 %v2579, %v2578
        %v2594 = vpack.c.b16 %v2581, %v2580
        %v2595 = vpack.c.b16 %v2583, %v2582
        %v2596 = vpack.c.b16 %v2585, %v2584
        %v2597 = vpack.c.b16 %v2587, %v2586
        %v2598 = vpack.c.b16 %v2589, %v2588
        %v2599 = vpack.c.b16 %v2591, %v2590
        %2608 = vmatprep.subr.bf16.mxu0 0
        %2609 = vmatpush1.bf16.msra.mxu0 %v2599
        %2610 = vmatprep.subr.bf16.mxu0 0
        %2611 = vmatpush1.bf16.msra.mxu0 %v2598
        %2612 = vmatprep.subr.bf16.mxu0 0
        %2613 = vmatpush1.bf16.msra.mxu0 %v2597
        %2614 = vmatprep.subr.bf16.mxu0 0
        %2615 = vmatpush1.bf16.msra.mxu0 %v2596
        %2616 = vmatprep.subr.bf16.mxu0 0
        %2617 = vmatpush1.bf16.msra.mxu0 %v2595
        %2618 = vmatprep.subr.bf16.mxu0 0
        %2619 = vmatpush1.bf16.msra.mxu0 %v2594
        %2620 = vmatprep.subr.bf16.mxu0 0
        %2621 = vmatpush1.bf16.msra.mxu0 %v2593
        %2622 = vmatprep.subr.bf16.mxu0 0
        %2623 = vmatpush1.bf16.msra.mxu0 %v2592
        %2624 = vmatprep.subr.bf16.mxu0 0
        %2625 = vmatpush2.bf16.msra.mxu0 0
        %2626 = vmatprep.subr.bf16.mxu0 0
        %2627 = vmatpush2.bf16.msra.mxu0 0
        %2628 = vmatprep.subr.bf16.mxu0 0
        %2629 = vmatpush2.bf16.msra.mxu0 0
        %2630 = vmatprep.subr.bf16.mxu0 0
        %2631 = vmatpush2.bf16.msra.mxu0 0
        %2632 = vmatprep.subr.bf16.mxu0 0
        %2633 = vmatpush2.bf16.msra.mxu0 0
        %2634 = vmatprep.subr.bf16.mxu0 0
        %2635 = vmatpush2.bf16.msra.mxu0 0
        %2636 = vmatprep.subr.bf16.mxu0 0
        %2637 = vmatpush2.bf16.msra.mxu0 0
        %2638 = vmatprep.subr.bf16.mxu0 0
        %2639 = vmatpush2.bf16.msra.mxu0 0
        %2640 = vmatprep.mubr.bf16.mxu0 0
        %2641 = vmatmul.mubr.bf16.gmra.mxu0 %v2558
        %v2642 = vpop.f32.mrf.mxu0
        %v2643 = vadd.f32 0.0, %v2642
        %v2644 = vpop.f32.mrf.mxu0
        %v2645 = vpop.f32.mrf.mxu0
        %v2646 = vpop.f32.mrf.mxu0
        %2647 = vdwg.mxu0
        %v2648 = vadd.f32 %v2532, %v2643
        %v2649 = vld [vmem:[%s2203 + $0x2] sm:$0x2]
        %v2650 = vld [vmem:[#allocation2 + $0x580] sm:$0xf]
        %v2651 = vld [vmem:[#allocation2 + $0x584] sm:$0xf]
        %v2652 = vld [vmem:[#allocation2 + $0x588] sm:$0xf]
        %v2653 = vld [vmem:[#allocation2 + $0x58c] sm:$0xf]
        %v2654 = vld [vmem:[#allocation2 + $0x590] sm:$0xf]
        %v2655 = vld [vmem:[#allocation2 + $0x594] sm:$0xf]
        %v2656 = vld [vmem:[#allocation2 + $0x598] sm:$0xf]
        %v2657 = vld [vmem:[#allocation2 + $0x59c] sm:$0xf]
        %v2658 = vld [vmem:[#allocation2 + $0x5a0] sm:$0xf]
        %v2659 = vld [vmem:[#allocation2 + $0x5a4] sm:$0xf]
        %v2660 = vld [vmem:[#allocation2 + $0x5a8] sm:$0xf]
        %v2661 = vld [vmem:[#allocation2 + $0x5ac] sm:$0xf]
        %v2662 = vld [vmem:[#allocation2 + $0x5b0] sm:$0xf]
        %v2663 = vld [vmem:[#allocation2 + $0x5b4] sm:$0xf]
        %v2664 = vld [vmem:[#allocation2 + $0x5b8] sm:$0xf]
        %v2665 = vld [vmem:[#allocation2 + $0x5bc] sm:$0xf]
        %v2668 = vunpack.c.l.s4 1983009808
        %v2669 = vunpack.c.0.s8 %v2668
        %v2670 = vlaneseq
        %v2671 = vshrl.u32 %v2670, 7
        %v2672 = vsub.s32 %v2669, %v2671
        %v2673 = vrot.slane %v2649, %v2672
        %v2674 = vrot.slane %v2673, 1
        %v2692 = vunpack.c.l.b16 %v2650
        %v2693 = vunpack.c.l.b16 %v2651
        %v2694 = vunpack.c.l.b16 %v2652
        %v2695 = vunpack.c.l.b16 %v2653
        %v2696 = vunpack.c.l.b16 %v2654
        %v2697 = vunpack.c.l.b16 %v2655
        %v2698 = vunpack.c.l.b16 %v2656
        %v2699 = vunpack.c.l.b16 %v2657
        %v2700 = vunpack.c.l.b16 %v2658
        %v2701 = vunpack.c.l.b16 %v2659
        %v2702 = vunpack.c.l.b16 %v2660
        %v2703 = vunpack.c.l.b16 %v2661
        %v2704 = vunpack.c.l.b16 %v2662
        %v2705 = vunpack.c.l.b16 %v2663
        %v2706 = vunpack.c.l.b16 %v2664
        %v2707 = vunpack.c.l.b16 %v2665
        %v2708 = vpack.c.b16 %v2693, %v2692
        %v2709 = vpack.c.b16 %v2695, %v2694
        %v2710 = vpack.c.b16 %v2697, %v2696
        %v2711 = vpack.c.b16 %v2699, %v2698
        %v2712 = vpack.c.b16 %v2701, %v2700
        %v2713 = vpack.c.b16 %v2703, %v2702
        %v2714 = vpack.c.b16 %v2705, %v2704
        %v2715 = vpack.c.b16 %v2707, %v2706
        %2724 = vmatprep.subr.bf16.mxu0 0
        %2725 = vmatpush1.bf16.msra.mxu0 %v2715
        %2726 = vmatprep.subr.bf16.mxu0 0
        %2727 = vmatpush1.bf16.msra.mxu0 %v2714
        %2728 = vmatprep.subr.bf16.mxu0 0
        %2729 = vmatpush1.bf16.msra.mxu0 %v2713
        %2730 = vmatprep.subr.bf16.mxu0 0
        %2731 = vmatpush1.bf16.msra.mxu0 %v2712
        %2732 = vmatprep.subr.bf16.mxu0 0
        %2733 = vmatpush1.bf16.msra.mxu0 %v2711
        %2734 = vmatprep.subr.bf16.mxu0 0
        %2735 = vmatpush1.bf16.msra.mxu0 %v2710
        %2736 = vmatprep.subr.bf16.mxu0 0
        %2737 = vmatpush1.bf16.msra.mxu0 %v2709
        %2738 = vmatprep.subr.bf16.mxu0 0
        %2739 = vmatpush1.bf16.msra.mxu0 %v2708
        %2740 = vmatprep.subr.bf16.mxu0 0
        %2741 = vmatpush2.bf16.msra.mxu0 0
        %2742 = vmatprep.subr.bf16.mxu0 0
        %2743 = vmatpush2.bf16.msra.mxu0 0
        %2744 = vmatprep.subr.bf16.mxu0 0
        %2745 = vmatpush2.bf16.msra.mxu0 0
        %2746 = vmatprep.subr.bf16.mxu0 0
        %2747 = vmatpush2.bf16.msra.mxu0 0
        %2748 = vmatprep.subr.bf16.mxu0 0
        %2749 = vmatpush2.bf16.msra.mxu0 0
        %2750 = vmatprep.subr.bf16.mxu0 0
        %2751 = vmatpush2.bf16.msra.mxu0 0
        %2752 = vmatprep.subr.bf16.mxu0 0
        %2753 = vmatpush2.bf16.msra.mxu0 0
        %2754 = vmatprep.subr.bf16.mxu0 0
        %2755 = vmatpush2.bf16.msra.mxu0 0
        %2756 = vmatprep.mubr.bf16.mxu0 0
        %2757 = vmatmul.mubr.bf16.gmra.mxu0 %v2674
        %v2758 = vpop.f32.mrf.mxu0
        %v2759 = vadd.f32 0.0, %v2758
        %v2760 = vpop.f32.mrf.mxu0
        %v2761 = vpop.f32.mrf.mxu0
        %v2762 = vpop.f32.mrf.mxu0
        %2763 = vdwg.mxu0
        %v2764 = vadd.f32 %v2648, %v2759
        %v2765 = vld [vmem:[%s2203] sm:$0x2]
        %v2766 = vld [vmem:[#allocation2 + $0x5c0] sm:$0xf]
        %v2767 = vld [vmem:[#allocation2 + $0x5c4] sm:$0xf]
        %v2768 = vld [vmem:[#allocation2 + $0x5c8] sm:$0xf]
        %v2769 = vld [vmem:[#allocation2 + $0x5cc] sm:$0xf]
        %v2770 = vld [vmem:[#allocation2 + $0x5d0] sm:$0xf]
        %v2771 = vld [vmem:[#allocation2 + $0x5d4] sm:$0xf]
        %v2772 = vld [vmem:[#allocation2 + $0x5d8] sm:$0xf]
        %v2773 = vld [vmem:[#allocation2 + $0x5dc] sm:$0xf]
        %v2774 = vld [vmem:[#allocation2 + $0x5e0] sm:$0xf]
        %v2775 = vld [vmem:[#allocation2 + $0x5e4] sm:$0xf]
        %v2776 = vld [vmem:[#allocation2 + $0x5e8] sm:$0xf]
        %v2777 = vld [vmem:[#allocation2 + $0x5ec] sm:$0xf]
        %v2778 = vld [vmem:[#allocation2 + $0x5f0] sm:$0xf]
        %v2779 = vld [vmem:[#allocation2 + $0x5f4] sm:$0xf]
        %v2780 = vld [vmem:[#allocation2 + $0x5f8] sm:$0xf]
        %v2781 = vld [vmem:[#allocation2 + $0x5fc] sm:$0xf]
        %v2784 = vunpack.c.l.s4 1983009808
        %v2785 = vunpack.c.0.s8 %v2784
        %v2786 = vlaneseq
        %v2787 = vshrl.u32 %v2786, 7
        %v2788 = vsub.s32 %v2785, %v2787
        %v2789 = vrot.slane %v2765, %v2788
        %v2791 = vshrl.u32 %v2789, 16
        %v2793 = vrot.slane %v2791, 1
        %v2811 = vunpack.c.l.b16 %v2766
        %v2812 = vunpack.c.l.b16 %v2767
        %v2813 = vunpack.c.l.b16 %v2768
        %v2814 = vunpack.c.l.b16 %v2769
        %v2815 = vunpack.c.l.b16 %v2770
        %v2816 = vunpack.c.l.b16 %v2771
        %v2817 = vunpack.c.l.b16 %v2772
        %v2818 = vunpack.c.l.b16 %v2773
        %v2819 = vunpack.c.l.b16 %v2774
        %v2820 = vunpack.c.l.b16 %v2775
        %v2821 = vunpack.c.l.b16 %v2776
        %v2822 = vunpack.c.l.b16 %v2777
        %v2823 = vunpack.c.l.b16 %v2778
        %v2824 = vunpack.c.l.b16 %v2779
        %v2825 = vunpack.c.l.b16 %v2780
        %v2826 = vunpack.c.l.b16 %v2781
        %v2827 = vpack.c.b16 %v2812, %v2811
        %v2828 = vpack.c.b16 %v2814, %v2813
        %v2829 = vpack.c.b16 %v2816, %v2815
        %v2830 = vpack.c.b16 %v2818, %v2817
        %v2831 = vpack.c.b16 %v2820, %v2819
        %v2832 = vpack.c.b16 %v2822, %v2821
        %v2833 = vpack.c.b16 %v2824, %v2823
        %v2834 = vpack.c.b16 %v2826, %v2825
        %2843 = vmatprep.subr.bf16.mxu0 0
        %2844 = vmatpush1.bf16.msra.mxu0 %v2834
        %2845 = vmatprep.subr.bf16.mxu0 0
        %2846 = vmatpush1.bf16.msra.mxu0 %v2833
        %2847 = vmatprep.subr.bf16.mxu0 0
        %2848 = vmatpush1.bf16.msra.mxu0 %v2832
        %2849 = vmatprep.subr.bf16.mxu0 0
        %2850 = vmatpush1.bf16.msra.mxu0 %v2831
        %2851 = vmatprep.subr.bf16.mxu0 0
        %2852 = vmatpush1.bf16.msra.mxu0 %v2830
        %2853 = vmatprep.subr.bf16.mxu0 0
        %2854 = vmatpush1.bf16.msra.mxu0 %v2829
        %2855 = vmatprep.subr.bf16.mxu0 0
        %2856 = vmatpush1.bf16.msra.mxu0 %v2828
        %2857 = vmatprep.subr.bf16.mxu0 0
        %2858 = vmatpush1.bf16.msra.mxu0 %v2827
        %2859 = vmatprep.subr.bf16.mxu0 0
        %2860 = vmatpush2.bf16.msra.mxu0 0
        %2861 = vmatprep.subr.bf16.mxu0 0
        %2862 = vmatpush2.bf16.msra.mxu0 0
        %2863 = vmatprep.subr.bf16.mxu0 0
        %2864 = vmatpush2.bf16.msra.mxu0 0
        %2865 = vmatprep.subr.bf16.mxu0 0
        %2866 = vmatpush2.bf16.msra.mxu0 0
        %2867 = vmatprep.subr.bf16.mxu0 0
        %2868 = vmatpush2.bf16.msra.mxu0 0
        %2869 = vmatprep.subr.bf16.mxu0 0
        %2870 = vmatpush2.bf16.msra.mxu0 0
        %2871 = vmatprep.subr.bf16.mxu0 0
        %2872 = vmatpush2.bf16.msra.mxu0 0
        %2873 = vmatprep.subr.bf16.mxu0 0
        %2874 = vmatpush2.bf16.msra.mxu0 0
        %2875 = vmatprep.mubr.bf16.mxu0 0
        %2876 = vmatmul.mubr.bf16.gmra.mxu0 %v2793
        %v2877 = vpop.f32.mrf.mxu0
        %v2878 = vadd.f32 0.0, %v2877
        %v2879 = vpop.f32.mrf.mxu0
        %v2880 = vpop.f32.mrf.mxu0
        %v2881 = vpop.f32.mrf.mxu0
        %2882 = vdwg.mxu0
        %v2883 = vadd.f32 %v2764, %v2878
        %s2884 = scalar_lea.vmem %s178, 20
        %v2885 = vld [vmem:[%s2884] sm:$0x1]
        %v2886 = vld [vmem:[#allocation2 + $0x600] sm:$0xf]
        %v2887 = vld [vmem:[#allocation2 + $0x604] sm:$0xf]
        %v2888 = vld [vmem:[#allocation2 + $0x608] sm:$0xf]
        %v2889 = vld [vmem:[#allocation2 + $0x60c] sm:$0xf]
        %v2890 = vld [vmem:[#allocation2 + $0x610] sm:$0xf]
        %v2891 = vld [vmem:[#allocation2 + $0x614] sm:$0xf]
        %v2892 = vld [vmem:[#allocation2 + $0x618] sm:$0xf]
        %v2893 = vld [vmem:[#allocation2 + $0x61c] sm:$0xf]
        %v2894 = vld [vmem:[#allocation2 + $0x620] sm:$0xf]
        %v2895 = vld [vmem:[#allocation2 + $0x624] sm:$0xf]
        %v2896 = vld [vmem:[#allocation2 + $0x628] sm:$0xf]
        %v2897 = vld [vmem:[#allocation2 + $0x62c] sm:$0xf]
        %v2898 = vld [vmem:[#allocation2 + $0x630] sm:$0xf]
        %v2899 = vld [vmem:[#allocation2 + $0x634] sm:$0xf]
        %v2900 = vld [vmem:[#allocation2 + $0x638] sm:$0xf]
        %v2901 = vld [vmem:[#allocation2 + $0x63c] sm:$0xf]
        %v2918 = vunpack.c.l.b16 %v2886
        %v2919 = vunpack.c.l.b16 %v2887
        %v2920 = vunpack.c.l.b16 %v2888
        %v2921 = vunpack.c.l.b16 %v2889
        %v2922 = vunpack.c.l.b16 %v2890
        %v2923 = vunpack.c.l.b16 %v2891
        %v2924 = vunpack.c.l.b16 %v2892
        %v2925 = vunpack.c.l.b16 %v2893
        %v2926 = vunpack.c.l.b16 %v2894
        %v2927 = vunpack.c.l.b16 %v2895
        %v2928 = vunpack.c.l.b16 %v2896
        %v2929 = vunpack.c.l.b16 %v2897
        %v2930 = vunpack.c.l.b16 %v2898
        %v2931 = vunpack.c.l.b16 %v2899
        %v2932 = vunpack.c.l.b16 %v2900
        %v2933 = vunpack.c.l.b16 %v2901
        %v2934 = vpack.c.b16 %v2919, %v2918
        %v2935 = vpack.c.b16 %v2921, %v2920
        %v2936 = vpack.c.b16 %v2923, %v2922
        %v2937 = vpack.c.b16 %v2925, %v2924
        %v2938 = vpack.c.b16 %v2927, %v2926
        %v2939 = vpack.c.b16 %v2929, %v2928
        %v2940 = vpack.c.b16 %v2931, %v2930
        %v2941 = vpack.c.b16 %v2933, %v2932
        %2950 = vmatprep.subr.bf16.mxu0 0
        %2951 = vmatpush1.bf16.msra.mxu0 %v2941
        %2952 = vmatprep.subr.bf16.mxu0 0
        %2953 = vmatpush1.bf16.msra.mxu0 %v2940
        %2954 = vmatprep.subr.bf16.mxu0 0
        %2955 = vmatpush1.bf16.msra.mxu0 %v2939
        %2956 = vmatprep.subr.bf16.mxu0 0
        %2957 = vmatpush1.bf16.msra.mxu0 %v2938
        %2958 = vmatprep.subr.bf16.mxu0 0
        %2959 = vmatpush1.bf16.msra.mxu0 %v2937
        %2960 = vmatprep.subr.bf16.mxu0 0
        %2961 = vmatpush1.bf16.msra.mxu0 %v2936
        %2962 = vmatprep.subr.bf16.mxu0 0
        %2963 = vmatpush1.bf16.msra.mxu0 %v2935
        %2964 = vmatprep.subr.bf16.mxu0 0
        %2965 = vmatpush1.bf16.msra.mxu0 %v2934
        %2966 = vmatprep.subr.bf16.mxu0 0
        %2967 = vmatpush2.bf16.msra.mxu0 0
        %2968 = vmatprep.subr.bf16.mxu0 0
        %2969 = vmatpush2.bf16.msra.mxu0 0
        %2970 = vmatprep.subr.bf16.mxu0 0
        %2971 = vmatpush2.bf16.msra.mxu0 0
        %2972 = vmatprep.subr.bf16.mxu0 0
        %2973 = vmatpush2.bf16.msra.mxu0 0
        %2974 = vmatprep.subr.bf16.mxu0 0
        %2975 = vmatpush2.bf16.msra.mxu0 0
        %2976 = vmatprep.subr.bf16.mxu0 0
        %2977 = vmatpush2.bf16.msra.mxu0 0
        %2978 = vmatprep.subr.bf16.mxu0 0
        %2979 = vmatpush2.bf16.msra.mxu0 0
        %2980 = vmatprep.subr.bf16.mxu0 0
        %2981 = vmatpush2.bf16.msra.mxu0 0
        %2982 = vmatprep.mubr.bf16.mxu0 0
        %2983 = vmatmul.mubr.bf16.gmra.mxu0 %v2885
        %v2984 = vpop.f32.mrf.mxu0
        %v2985 = vadd.f32 0.0, %v2984
        %v2986 = vpop.f32.mrf.mxu0
        %v2987 = vpop.f32.mrf.mxu0
        %v2988 = vpop.f32.mrf.mxu0
        %2989 = vdwg.mxu0
        %v2990 = vadd.f32 %v2883, %v2985
        %v2991 = vld [vmem:[%s2884 + $0x2] sm:$0x1]
        %v2992 = vld [vmem:[#allocation2 + $0x640] sm:$0xf]
        %v2993 = vld [vmem:[#allocation2 + $0x644] sm:$0xf]
        %v2994 = vld [vmem:[#allocation2 + $0x648] sm:$0xf]
        %v2995 = vld [vmem:[#allocation2 + $0x64c] sm:$0xf]
        %v2996 = vld [vmem:[#allocation2 + $0x650] sm:$0xf]
        %v2997 = vld [vmem:[#allocation2 + $0x654] sm:$0xf]
        %v2998 = vld [vmem:[#allocation2 + $0x658] sm:$0xf]
        %v2999 = vld [vmem:[#allocation2 + $0x65c] sm:$0xf]
        %v3000 = vld [vmem:[#allocation2 + $0x660] sm:$0xf]
        %v3001 = vld [vmem:[#allocation2 + $0x664] sm:$0xf]
        %v3002 = vld [vmem:[#allocation2 + $0x668] sm:$0xf]
        %v3003 = vld [vmem:[#allocation2 + $0x66c] sm:$0xf]
        %v3004 = vld [vmem:[#allocation2 + $0x670] sm:$0xf]
        %v3005 = vld [vmem:[#allocation2 + $0x674] sm:$0xf]
        %v3006 = vld [vmem:[#allocation2 + $0x678] sm:$0xf]
        %v3007 = vld [vmem:[#allocation2 + $0x67c] sm:$0xf]
        %v3024 = vunpack.c.l.b16 %v2992
        %v3025 = vunpack.c.l.b16 %v2993
        %v3026 = vunpack.c.l.b16 %v2994
        %v3027 = vunpack.c.l.b16 %v2995
        %v3028 = vunpack.c.l.b16 %v2996
        %v3029 = vunpack.c.l.b16 %v2997
        %v3030 = vunpack.c.l.b16 %v2998
        %v3031 = vunpack.c.l.b16 %v2999
        %v3032 = vunpack.c.l.b16 %v3000
        %v3033 = vunpack.c.l.b16 %v3001
        %v3034 = vunpack.c.l.b16 %v3002
        %v3035 = vunpack.c.l.b16 %v3003
        %v3036 = vunpack.c.l.b16 %v3004
        %v3037 = vunpack.c.l.b16 %v3005
        %v3038 = vunpack.c.l.b16 %v3006
        %v3039 = vunpack.c.l.b16 %v3007
        %v3040 = vpack.c.b16 %v3025, %v3024
        %v3041 = vpack.c.b16 %v3027, %v3026
        %v3042 = vpack.c.b16 %v3029, %v3028
        %v3043 = vpack.c.b16 %v3031, %v3030
        %v3044 = vpack.c.b16 %v3033, %v3032
        %v3045 = vpack.c.b16 %v3035, %v3034
        %v3046 = vpack.c.b16 %v3037, %v3036
        %v3047 = vpack.c.b16 %v3039, %v3038
        %3056 = vmatprep.subr.bf16.mxu0 0
        %3057 = vmatpush1.bf16.msra.mxu0 %v3047
        %3058 = vmatprep.subr.bf16.mxu0 0
        %3059 = vmatpush1.bf16.msra.mxu0 %v3046
        %3060 = vmatprep.subr.bf16.mxu0 0
        %3061 = vmatpush1.bf16.msra.mxu0 %v3045
        %3062 = vmatprep.subr.bf16.mxu0 0
        %3063 = vmatpush1.bf16.msra.mxu0 %v3044
        %3064 = vmatprep.subr.bf16.mxu0 0
        %3065 = vmatpush1.bf16.msra.mxu0 %v3043
        %3066 = vmatprep.subr.bf16.mxu0 0
        %3067 = vmatpush1.bf16.msra.mxu0 %v3042
        %3068 = vmatprep.subr.bf16.mxu0 0
        %3069 = vmatpush1.bf16.msra.mxu0 %v3041
        %3070 = vmatprep.subr.bf16.mxu0 0
        %3071 = vmatpush1.bf16.msra.mxu0 %v3040
        %3072 = vmatprep.subr.bf16.mxu0 0
        %3073 = vmatpush2.bf16.msra.mxu0 0
        %3074 = vmatprep.subr.bf16.mxu0 0
        %3075 = vmatpush2.bf16.msra.mxu0 0
        %3076 = vmatprep.subr.bf16.mxu0 0
        %3077 = vmatpush2.bf16.msra.mxu0 0
        %3078 = vmatprep.subr.bf16.mxu0 0
        %3079 = vmatpush2.bf16.msra.mxu0 0
        %3080 = vmatprep.subr.bf16.mxu0 0
        %3081 = vmatpush2.bf16.msra.mxu0 0
        %3082 = vmatprep.subr.bf16.mxu0 0
        %3083 = vmatpush2.bf16.msra.mxu0 0
        %3084 = vmatprep.subr.bf16.mxu0 0
        %3085 = vmatpush2.bf16.msra.mxu0 0
        %3086 = vmatprep.subr.bf16.mxu0 0
        %3087 = vmatpush2.bf16.msra.mxu0 0
        %3088 = vmatprep.mubr.bf16.mxu0 0
        %3089 = vmatmul.mubr.bf16.gmra.mxu0 %v2991
        %v3090 = vpop.f32.mrf.mxu0
        %v3091 = vadd.f32 0.0, %v3090
        %v3092 = vpop.f32.mrf.mxu0
        %v3093 = vpop.f32.mrf.mxu0
        %v3094 = vpop.f32.mrf.mxu0
        %3095 = vdwg.mxu0
        %v3096 = vadd.f32 %v2990, %v3091
        %v3097 = vld [vmem:[#allocation2 + $0x680] sm:$0xf]
        %v3098 = vld [vmem:[#allocation2 + $0x684] sm:$0xf]
        %v3099 = vld [vmem:[#allocation2 + $0x688] sm:$0xf]
        %v3100 = vld [vmem:[#allocation2 + $0x68c] sm:$0xf]
        %v3101 = vld [vmem:[#allocation2 + $0x690] sm:$0xf]
        %v3102 = vld [vmem:[#allocation2 + $0x694] sm:$0xf]
        %v3103 = vld [vmem:[#allocation2 + $0x698] sm:$0xf]
        %v3104 = vld [vmem:[#allocation2 + $0x69c] sm:$0xf]
        %v3105 = vld [vmem:[#allocation2 + $0x6a0] sm:$0xf]
        %v3106 = vld [vmem:[#allocation2 + $0x6a4] sm:$0xf]
        %v3107 = vld [vmem:[#allocation2 + $0x6a8] sm:$0xf]
        %v3108 = vld [vmem:[#allocation2 + $0x6ac] sm:$0xf]
        %v3109 = vld [vmem:[#allocation2 + $0x6b0] sm:$0xf]
        %v3110 = vld [vmem:[#allocation2 + $0x6b4] sm:$0xf]
        %v3111 = vld [vmem:[#allocation2 + $0x6b8] sm:$0xf]
        %v3112 = vld [vmem:[#allocation2 + $0x6bc] sm:$0xf]
        %v3115 = vunpack.c.l.s4 1983009808
        %v3116 = vunpack.c.0.s8 %v3115
        %v3117 = vlaneseq
        %v3118 = vshrl.u32 %v3117, 7
        %v3119 = vsub.s32 %v3116, %v3118
        %v3120 = vrot.slane %v2885, %v3119
        %v3122 = vshrl.u32 %v3120, 16
        %v3141 = vunpack.c.l.b16 %v3097
        %v3142 = vunpack.c.l.b16 %v3098
        %v3143 = vunpack.c.l.b16 %v3099
        %v3144 = vunpack.c.l.b16 %v3100
        %v3145 = vunpack.c.l.b16 %v3101
        %v3146 = vunpack.c.l.b16 %v3102
        %v3147 = vunpack.c.l.b16 %v3103
        %v3148 = vunpack.c.l.b16 %v3104
        %v3149 = vunpack.c.l.b16 %v3105
        %v3150 = vunpack.c.l.b16 %v3106
        %v3151 = vunpack.c.l.b16 %v3107
        %v3152 = vunpack.c.l.b16 %v3108
        %v3153 = vunpack.c.l.b16 %v3109
        %v3154 = vunpack.c.l.b16 %v3110
        %v3155 = vunpack.c.l.b16 %v3111
        %v3156 = vunpack.c.l.b16 %v3112
        %v3157 = vpack.c.b16 %v3142, %v3141
        %v3158 = vpack.c.b16 %v3144, %v3143
        %v3159 = vpack.c.b16 %v3146, %v3145
        %v3160 = vpack.c.b16 %v3148, %v3147
        %v3161 = vpack.c.b16 %v3150, %v3149
        %v3162 = vpack.c.b16 %v3152, %v3151
        %v3163 = vpack.c.b16 %v3154, %v3153
        %v3164 = vpack.c.b16 %v3156, %v3155
        %3173 = vmatprep.subr.bf16.mxu0 0
        %3174 = vmatpush1.bf16.msra.mxu0 %v3164
        %3175 = vmatprep.subr.bf16.mxu0 0
        %3176 = vmatpush1.bf16.msra.mxu0 %v3163
        %3177 = vmatprep.subr.bf16.mxu0 0
        %3178 = vmatpush1.bf16.msra.mxu0 %v3162
        %3179 = vmatprep.subr.bf16.mxu0 0
        %3180 = vmatpush1.bf16.msra.mxu0 %v3161
        %3181 = vmatprep.subr.bf16.mxu0 0
        %3182 = vmatpush1.bf16.msra.mxu0 %v3160
        %3183 = vmatprep.subr.bf16.mxu0 0
        %3184 = vmatpush1.bf16.msra.mxu0 %v3159
        %3185 = vmatprep.subr.bf16.mxu0 0
        %3186 = vmatpush1.bf16.msra.mxu0 %v3158
        %3187 = vmatprep.subr.bf16.mxu0 0
        %3188 = vmatpush1.bf16.msra.mxu0 %v3157
        %3189 = vmatprep.subr.bf16.mxu0 0
        %3190 = vmatpush2.bf16.msra.mxu0 0
        %3191 = vmatprep.subr.bf16.mxu0 0
        %3192 = vmatpush2.bf16.msra.mxu0 0
        %3193 = vmatprep.subr.bf16.mxu0 0
        %3194 = vmatpush2.bf16.msra.mxu0 0
        %3195 = vmatprep.subr.bf16.mxu0 0
        %3196 = vmatpush2.bf16.msra.mxu0 0
        %3197 = vmatprep.subr.bf16.mxu0 0
        %3198 = vmatpush2.bf16.msra.mxu0 0
        %3199 = vmatprep.subr.bf16.mxu0 0
        %3200 = vmatpush2.bf16.msra.mxu0 0
        %3201 = vmatprep.subr.bf16.mxu0 0
        %3202 = vmatpush2.bf16.msra.mxu0 0
        %3203 = vmatprep.subr.bf16.mxu0 0
        %3204 = vmatpush2.bf16.msra.mxu0 0
        %3205 = vmatprep.mubr.bf16.mxu0 0
        %3206 = vmatmul.mubr.bf16.gmra.mxu0 %v3122
        %v3207 = vpop.f32.mrf.mxu0
        %v3208 = vadd.f32 0.0, %v3207
        %v3209 = vpop.f32.mrf.mxu0
        %v3210 = vpop.f32.mrf.mxu0
        %v3211 = vpop.f32.mrf.mxu0
        %3212 = vdwg.mxu0
        %v3213 = vadd.f32 %v3096, %v3208
        %v3214 = vadd.f32 %v3213, %v183
        %v3215 = vmul.f32 %v3214, 0.01
        %v3216 = vmax.f32 %v3214, %v3215
        %v3217 = vpack.c.bf16 %v3216, %v3216
        %vm3218 = vcmask 1040384
        %vm3219 = vsmask.f32 256
        %vm3220 = vmand %vm3218, %vm3219
        %v3221 = vld [vmem:[%s181] sm:$0x1]
        %v3222 = vsel %vm3220, %v3217, %v3221
        %3223 = vst [vmem:[%s181] sm:$0x1] %v3222
        %p3224 = scmp.lt.s32.totalorder %s15, 1
        %s3225 = scalar_select %p3224, %s15, 1
        %s3226 = scalar_lea.vmem %s3, %s3225
        // Predicated region
        $region37: #{wrapper_ordinal_net_forward.4} parent=31 // pred_check
          %p3227 = pneg %p101
        $region38: #{wrapper_ordinal_net_forward.4} parent=31 // pred_check_branch
          %3229 = sbr.rel (%p3227) target = $region40
        $region39: #{wrapper_ordinal_net_forward.4} parent=31 // pred_region
          _
        $region40: #{wrapper_ordinal_net_forward.4} parent=31 // pred_fallthru
          _
      $region32: #{wrapper_ordinal_net_forward.4} parent=5 // pred_fallthru
        _
      %p3230 = scmp.le.s32.totalorder 2, %s10
      // Predicated region
      $region41: #{wrapper_ordinal_net_forward.4} parent=5 // pred_check
        %p3231 = pneg %p3230
      $region42: #{wrapper_ordinal_net_forward.4} parent=5 // pred_check_branch
        %3233 = sbr.rel (%p3231) target = $region44
      $region43: #{wrapper_ordinal_net_forward.4} parent=5 // pred_region
        %s3234 = ssub.s32 %s10, 2
        // Predicated region
        $region45: #{wrapper_ordinal_net_forward.4} parent=43 // pred_check
          %p3235 = pneg %p107
        $region46: #{wrapper_ordinal_net_forward.4} parent=43 // pred_check_branch
          %3237 = sbr.rel (%p3235) target = $region48
        $region47: #{wrapper_ordinal_net_forward.4} parent=43 // pred_region
          %p3238 = scmp.lt.s32.totalorder %s16, 1
          %s3239 = scalar_select %p3238, %s16, 1
          %s3240 = scalar_lea.vmem %s3, %s3239
        $region48: #{wrapper_ordinal_net_forward.4} parent=43 // pred_fallthru
          _
      $region44: #{wrapper_ordinal_net_forward.4} parent=5 // pred_fallthru
        _
    $region6: #{wrapper_ordinal_net_forward.4} parent=1 // loop_footer
      %s14 = sadd.s32 1, %s10
    $region7: #{wrapper_ordinal_net_forward.4} parent=1 // loop_footer_branch
      %9 = sbr.rel target = $region3
    $region8: #{wrapper_ordinal_net_forward.4} parent=1 // loop_exit
      _
    %3241 = vsyncpa [#allocation3], 1
    %s3242 = scalar_lea.sflag [#allocation3], 1
    %3243 = vsyncpa %s3242, 1

</llo_original>
